<compile_context>
chip_gen: v7x
topology: tpu7x:2x2x1
jax: 0.10.0
libtpu: 0.0.40
codegen_flags: <defaults>
</compile_context>

<pallas_src>
import functools
import math

import jax
import jax.numpy as jnp
from jax.experimental import pallas as pl
from jax.experimental.pallas import tpu as pltpu

MM_DTYPE = jnp.float32      # exact f32 semantics (v5e-friendly); bf16 opt-in for v6e/v7x
LN_EPS = 1e-5
LANE = 128
NEG_INF = -1e9


def _pad8(n):
    return ((n + 7) // 8) * 8


# ----------------------------- slab layout (static) -----------------------------

def _slab_layout(input_dim, d_model, dff, n_enc, n_dec):
    """Static row offsets of every parameter inside the two packed slabs."""
    D = d_model
    n_attn = n_enc + 2 * n_dec          # enc self; per dec layer: self, cross
    n_ffn = n_enc + n_dec
    n_ln = 2 * n_enc + 3 * n_dec

    w_entries = [('in_w', input_dim, D), ('out_w', D, input_dim)]
    for i in range(n_attn):
        w_entries += [(f'attn_wi{i}', D, 3 * D), (f'attn_wo{i}', D, D)]
    for j in range(n_ffn):
        w_entries += [(f'ffn_w1{j}', D, dff), (f'ffn_w2{j}', dff, D)]
    w_off, r = {}, 0
    for name, rows, cols in w_entries:
        w_off[name] = (r, rows, cols)
        r += _pad8(rows)                 # keep every entry sublane(8)-aligned
    w_rows = _pad8(r)

    v_entries = [('in_b', D), ('out_b', input_dim)]
    for i in range(n_attn):
        v_entries += [(f'attn_bi{i}', 3 * D), (f'attn_bo{i}', D)]
    for j in range(n_ffn):
        v_entries += [(f'ffn_b1{j}', dff), (f'ffn_b2{j}', D)]
    for l in range(n_ln):
        v_entries += [(f'ln_g{l}', D), (f'ln_b{l}', D)]
    v_off, r = {}, 0
    for name, cols in v_entries:
        v_off[name] = (r, cols)
        r += 8                           # one 8-row-aligned slot per vector param
    v_rows = r
    return w_off, w_rows, v_off, v_rows, n_attn, n_ffn, n_ln


def pack_params(params, input_dim, d_model, dff, n_enc, n_dec):
    """Pack all matmul weights into one (R,128) slab and all vectors into another."""
    w_off, w_rows, v_off, v_rows, *_ = _slab_layout(input_dim, d_model, dff,
                                                    n_enc, n_dec)
    wslab = jnp.zeros((w_rows, LANE), jnp.float32)
    for name, (r, rows, cols) in w_off.items():
        wslab = wslab.at[r:r + rows, :cols].set(params[name])
    vslab = jnp.zeros((v_rows, LANE), jnp.float32)
    for name, (r, cols) in v_off.items():
        vslab = vslab.at[r, :cols].set(params[name])
    return wslab, vslab


# ---------------------------------- kernel -------------------------------------

def fused_transformer_kernel(x_ref, pe_ref, aux_ref, w_ref, v_ref, o_ref, *,
                             d_model, nhead, n_enc, n_dec, w_off, v_off, aux_off):
    N = x_ref.shape[0]                   # S * B rows, features on the lane axis
    D = d_model
    H = nhead
    dh = D // H
    NH = H * N
    scale = 1.0 / math.sqrt(dh)

    def W(name):                         # static slice of the packed weight slab
        r, rows, cols = w_off[name]
        return w_ref[r:r + rows, 0:cols]

    def V(name):                         # (1, cols) vector param, broadcasts over rows
        r, cols = v_off[name]
        return v_ref[r:r + 1, 0:cols]

    def mm(a, b):                        # rank-2 MXU matmul, f32 accumulation
        return jnp.dot(a.astype(MM_DTYPE), b.astype(MM_DTYPE),
                       preferred_element_type=jnp.float32)

    def layernorm(x2, li):
        m = jnp.mean(x2, axis=-1, keepdims=True)
        var = jnp.mean((x2 - m) ** 2, axis=-1, keepdims=True)
        return (x2 - m) * jax.lax.rsqrt(var + LN_EPS) * V(f'ln_g{li}') + V(f'ln_b{li}')

    # Attention constants (loaded once, reused by every block):
    #   segr[(h*N+m), d] = 1 if lane d belongs to head h     (NH, D)
    #   gmat[(h*N+m), h'] = 1 if h == h'                     (NH, H)
    #   amask[n, (h*N+m)] = 0 if rows n and m share the same s, else -1e9   (N, NH)
    segr_off, g_off, amask_off = aux_off
    segr = aux_ref[segr_off:segr_off + NH, 0:D]
    gmat = aux_ref[g_off:g_off + NH, 0:H]
    amask = aux_ref[amask_off:amask_off + N, 0:NH]

    def mha(q2, k2, v2, ai):
        # Head-expanded keys/values: row (h*N + m) keeps only head h's lanes of row m.
        k_exp = jnp.concatenate([k2] * H, axis=0) * segr            # (NH, D)
        v_exp = jnp.concatenate([v2] * H, axis=0) * segr            # (NH, D)
        # All heads' scores in one rank-2 matmul; additive mask kills cross-s pairs.
        s = jnp.einsum('nd,md->nm', q2, k_exp,
                       preferred_element_type=jnp.float32) * scale + amask   # (N, NH)
        z = jnp.exp(s - jnp.max(s, axis=-1, keepdims=True))         # masked cols -> 0
        den = mm(z, gmat)                                           # (N, H) head sums
        rden = pl.reciprocal(den, approx=True)                      # EUP slot
        p = z * jnp.einsum('nh,mh->nm', rden, gmat,
                           preferred_element_type=jnp.float32)      # back to (N, NH)
        ctx = mm(p, v_exp)                                          # (N, D), heads in
        return mm(ctx, W(f'attn_wo{ai}')) + V(f'attn_bo{ai}')       # standard lane order

    def attn_block(xq, xkv, ai, li, self_attn):
        wi = W(f'attn_wi{ai}')                     # (D, 3D) = [q | k | v] columns
        bi = V(f'attn_bi{ai}')                     # (1, 3D)
        if self_attn:
            qkv = mm(xq, wi) + bi                  # one fused lane-dense projection
            q2, k2, v2 = qkv[:, :D], qkv[:, D:2 * D], qkv[:, 2 * D:]
        else:
            q2 = mm(xq, wi[:, :D]) + bi[:, :D]
            kv = mm(xkv, wi[:, D:]) + bi[:, D:]
            k2, v2 = kv[:, :D], kv[:, D:]
        # TODO(synk): dropout(p=0.1) treated as identity (eval-mode semantics).
        return layernorm(xq + mha(q2, k2, v2, ai), li)

    def ffn_block(x2, fi, li):
        y = jnp.maximum(mm(x2, W(f'ffn_w1{fi}')) + V(f'ffn_b1{fi}'), 0.0)
        y = mm(y, W(f'ffn_w2{fi}')) + V(f'ffn_b2{fi}')
        return layernorm(x2 + y, li)

    # input_fc + positional encoding (PE already flattened to one row per (s, b))
    x2 = x_ref[...].astype(jnp.float32)
    h = mm(x2, W('in_w')) + V('in_b') + pe_ref[...]

    ai = fi = li = 0
    mem = h                                        # post-norm TransformerEncoderLayer
    for _ in range(n_enc):
        mem = attn_block(mem, mem, ai, li, True);  ai += 1; li += 1
        mem = ffn_block(mem, fi, li);              fi += 1; li += 1
    out = h                                        # decoder tgt = src (NOT enc output)
    for _ in range(n_dec):                         # post-norm TransformerDecoderLayer
        out = attn_block(out, out, ai, li, True);  ai += 1; li += 1
        out = attn_block(out, mem, ai, li, False); ai += 1; li += 1
        out = ffn_block(out, fi, li);              fi += 1; li += 1

    o_ref[...] = (mm(out, W('out_w')) + V('out_b')).astype(o_ref.dtype)


# ------------------------------ pallas wrapper ----------------------------------

def transformer_autoencoder_forward(wslab, vslab, pe, x, *, d_model, nhead, dff,
                                     n_enc, n_dec):
    """x: (B, S, input_dim) -> (B, S, input_dim), PyTorch-equivalent forward (eval)."""
    B, S, Din = x.shape
    D = d_model
    H = nhead
    dh = D // H
    N = S * B
    NH = H * N

    w_off, w_rows, v_off, v_rows, n_attn, n_ffn, n_ln = _slab_layout(
        Din, D, dff, n_enc, n_dec)

    # Fold (B,S,·) -> (S*B,·) once, wrapper-side; row n = s*B + b.
    xt = jnp.transpose(x, (1, 0, 2)).reshape(N, Din).astype(jnp.float32)
    pe_flat = jnp.repeat(pe[:S].astype(jnp.float32), B, axis=0)           # (N, D)

    # Attention constants (constant-foldable): head selectors + same-s additive mask.
    row_h = jnp.arange(NH, dtype=jnp.int32) // N
    row_m = jnp.arange(NH, dtype=jnp.int32) % N
    d_head = jnp.arange(D, dtype=jnp.int32) // dh
    segr = (row_h[:, None] == d_head[None, :]).astype(jnp.float32)        # (NH, D)
    gmat = (row_h[:, None] ==
            jnp.arange(H, dtype=jnp.int32)[None, :]).astype(jnp.float32)  # (NH, H)
    sgrp = jnp.arange(N, dtype=jnp.int32) // B
    same_s = sgrp[:, None] == sgrp[row_m][None, :]                        # (N, NH)
    amask = jnp.where(same_s, 0.0, NEG_INF).astype(jnp.float32)

    aux_cols = max(LANE, ((max(D, H, NH) + LANE - 1) // LANE) * LANE)
    segr_off = 0
    g_off = segr_off + _pad8(NH)
    amask_off = g_off + _pad8(NH)
    aux_rows = amask_off + _pad8(N)
    aux = jnp.zeros((aux_rows, aux_cols), jnp.float32)
    aux = aux.at[segr_off:segr_off + NH, :D].set(segr)
    aux = aux.at[g_off:g_off + NH, :H].set(gmat)
    aux = aux.at[amask_off:amask_off + N, :NH].set(amask)

    kern = functools.partial(
        fused_transformer_kernel, d_model=D, nhead=H, n_enc=n_enc, n_dec=n_dec,
        w_off=w_off, v_off=v_off, aux_off=(segr_off, g_off, amask_off))

    def full(arr):          # whole-array operand; single grid step -> no double-buffer
        return pl.BlockSpec(arr.shape, lambda i: (0,) * arr.ndim)

    flops = (4 * N * Din * D
             + n_attn * (8 * N * D * D + 4 * N * NH * (D + H))
             + n_ffn * 4 * N * D * dff)
    transcendentals = n_attn * N * (NH + H) + n_ln * N
    bytes_accessed = 4 * (xt.size + pe_flat.size + aux.size + wslab.size
                          + vslab.size + N * Din)

    y = pl.pallas_call(
        kern,
        out_shape=jax.ShapeDtypeStruct((N, Din), jnp.float32),
        grid=(1,),
        in_specs=[full(xt), full(pe_flat), full(aux), full(wslab), full(vslab)],
        out_specs=pl.BlockSpec((N, Din), lambda i: (0, 0)),
        compiler_params=pltpu.CompilerParams(
            dimension_semantics=("arbitrary",),
            vmem_limit_bytes=32 * 1024 * 1024),
        cost_estimate=pl.CostEstimate(flops=int(flops),
                                      transcendentals=int(transcendentals),
                                      bytes_accessed=int(bytes_accessed)),
    )(xt, pe_flat, aux, wslab, vslab)

    return jnp.transpose(y.reshape(S, B, Din), (1, 0, 2))                 # (B, S, Din)


# ------------------------------ parameter setup ----------------------------------

def _dense(key, din, dout, scale=0.08):
    kw, kb = jax.random.split(key)
    w = scale * jax.random.normal(kw, (din, dout), jnp.float32)
    b = scale * jax.random.normal(kb, (dout,), jnp.float32)
    return w, b


def _positional_encoding(max_len, d_model):
    pos = jnp.arange(max_len, dtype=jnp.float32)[:, None]
    div = jnp.exp(jnp.arange(0, d_model, 2, dtype=jnp.float32)
                  * (-math.log(10000.0) / d_model))
    pe = jnp.zeros((max_len, d_model), jnp.float32)
    pe = pe.at[:, 0::2].set(jnp.sin(pos * div))
    pe = pe.at[:, 1::2].set(jnp.cos(pos * div))
    return pe


def init_params(key, input_dim, d_model, nhead, n_enc, n_dec, dff, max_len=64):
    D = d_model
    n_attn = n_enc + 2 * n_dec
    n_ffn = n_enc + n_dec
    n_ln = 2 * n_enc + 3 * n_dec
    keys = iter(jax.random.split(key, 2 + 2 * n_attn + 2 * n_ffn))

    params = {}
    params['in_w'], params['in_b'] = _dense(next(keys), input_dim, D)
    params['out_w'], params['out_b'] = _dense(next(keys), D, input_dim)
    for i in range(n_attn):
        params[f'attn_wi{i}'], params[f'attn_bi{i}'] = _dense(next(keys), D, 3 * D)
        params[f'attn_wo{i}'], params[f'attn_bo{i}'] = _dense(next(keys), D, D)
    for j in range(n_ffn):
        params[f'ffn_w1{j}'], params[f'ffn_b1{j}'] = _dense(next(keys), D, dff)
        params[f'ffn_w2{j}'], params[f'ffn_b2{j}'] = _dense(next(keys), dff, D)
    for l in range(n_ln):
        params[f'ln_g{l}'] = jnp.ones((D,), jnp.float32)
        params[f'ln_b{l}'] = jnp.zeros((D,), jnp.float32)
    params['pe'] = _positional_encoding(max_len, D)
    return params


# --------------------------- pure-JAX reference (check) --------------------------

def _ref_forward(params, x, *, nhead, n_enc, n_dec):
    D = params['in_w'].shape[1]
    xt = jnp.transpose(x, (1, 0, 2)).astype(jnp.float32)        # (S, B, Din)
    S = xt.shape[0]
    h = xt @ params['in_w'] + params['in_b'] + params['pe'][:S][:, None, :]

    def ln(v, l):
        g, b = params[f'ln_g{l}'], params[f'ln_b{l}']
        m = v.mean(-1, keepdims=True)
        var = ((v - m) ** 2).mean(-1, keepdims=True)
        return (v - m) / jnp.sqrt(var + LN_EPS) * g + b

    def attn(q_in, kv_in, i):
        wi, bi = params[f'attn_wi{i}'], params[f'attn_bi{i}']
        wo, bo = params[f'attn_wo{i}'], params[f'attn_bo{i}']
        q = q_in @ wi[:, :D] + bi[:D]
        k = kv_in @ wi[:, D:2 * D] + bi[D:2 * D]
        v = kv_in @ wi[:, 2 * D:] + bi[2 * D:]
        dh = D // nhead
        outs = []
        for hh in range(nhead):
            sl = slice(hh * dh, (hh + 1) * dh)
            s = jnp.einsum('sqd,skd->sqk', q[..., sl], k[..., sl]) / math.sqrt(dh)
            p = jax.nn.softmax(s, axis=-1)
            outs.append(jnp.einsum('sqk,skd->sqd', p, v[..., sl]))
        return jnp.concatenate(outs, -1) @ wo + bo

    def ffn(v, j):
        y = jnp.maximum(v @ params[f'ffn_w1{j}'] + params[f'ffn_b1{j}'], 0.0)
        return y @ params[f'ffn_w2{j}'] + params[f'ffn_b2{j}']

    a = f = l = 0
    mem = h
    for _ in range(n_enc):
        mem = ln(mem + attn(mem, mem, a), l); a += 1; l += 1
        mem = ln(mem + ffn(mem, f), l);       f += 1; l += 1
    out = h
    for _ in range(n_dec):
        out = ln(out + attn(out, out, a), l); a += 1; l += 1
        out = ln(out + attn(out, mem, a), l); a += 1; l += 1
        out = ln(out + ffn(out, f), l);       f += 1; l += 1
    y = out @ params['out_w'] + params['out_b']
    return jnp.transpose(y, (1, 0, 2))


# ------------------------------------ main ---------------------------------------

if __name__ == "__main__":
    input_dim, d_model, nhead = 16, 32, 4
    num_encoder_layers, num_decoder_layers, dim_feedforward = 2, 2, 64
    B, S = 2, 8

    key = jax.random.PRNGKey(0)
    kp, kx = jax.random.split(key)
    params = init_params(kp, input_dim, d_model, nhead,
                         num_encoder_layers, num_decoder_layers,
                         dim_feedforward, max_len=64)
    x = jax.random.normal(kx, (B, S, input_dim), jnp.float32)

    wslab, vslab = pack_params(params, input_dim, d_model, dim_feedforward,
                               num_encoder_layers, num_decoder_layers)

    fwd = jax.jit(functools.partial(
        transformer_autoencoder_forward, d_model=d_model, nhead=nhead,
        dff=dim_feedforward, n_enc=num_encoder_layers, n_dec=num_decoder_layers))
    y = fwd(wslab, vslab, params['pe'], x)
    jax.block_until_ready(y)

    assert y.shape == (B, S, input_dim) and y.dtype == jnp.float32
    y_ref = _ref_forward(params, x, nhead=nhead,
                         n_enc=num_encoder_layers, n_dec=num_decoder_layers)
    max_err = float(jnp.max(jnp.abs(y - y_ref)))
    assert max_err < 5e-2, f"mismatch vs pure-JAX reference: {max_err}"
    print("KERNEL_OK")
</pallas_src>

<mosaic_0001>
module attributes {stable_mosaic.version = 11 : i64} {
  func.func @fused_transformer_kernel(%arg0: i32, %arg1: memref<16x16xf32, #tpu.memory_space<vmem>>, %arg2: memref<16x32xf32, #tpu.memory_space<vmem>>, %arg3: memref<144x128xf32, #tpu.memory_space<vmem>>, %arg4: memref<816x128xf32, #tpu.memory_space<vmem>>, %arg5: memref<336x128xf32, #tpu.memory_space<vmem>>, %arg6: memref<16x16xf32, #tpu.memory_space<vmem>>) attributes {dimension_semantics = [#tpu.dimension_semantics<arbitrary>], iteration_bounds = array<i64: 1>, scalar_prefetch = 0 : i64, scratch_operands = 0 : i64, tpu.core_type = #tpu.core_type<tc>, window_params = [{pipeline_mode = #tpu.pipeline_mode<synchronous>, transform_indices = @transform_0, window_bounds = array<i64: 16, 16>}, {pipeline_mode = #tpu.pipeline_mode<synchronous>, transform_indices = @transform_1, window_bounds = array<i64: 16, 32>}, {pipeline_mode = #tpu.pipeline_mode<synchronous>, transform_indices = @transform_2, window_bounds = array<i64: 144, 128>}, {pipeline_mode = #tpu.pipeline_mode<synchronous>, transform_indices = @transform_3, window_bounds = array<i64: 816, 128>}, {pipeline_mode = #tpu.pipeline_mode<synchronous>, transform_indices = @transform_4, window_bounds = array<i64: 336, 128>}, {pipeline_mode = #tpu.pipeline_mode<synchronous>, transform_indices = @transform_5, window_bounds = array<i64: 16, 16>}]} {
    %c0 = arith.constant 0 : index
    %c0_0 = arith.constant 0 : index
    %0 = vector.load %arg3[%c0, %c0_0] : memref<144x128xf32, #tpu.memory_space<vmem>>, vector<64x32xf32>
    %c64 = arith.constant 64 : index
    %c0_1 = arith.constant 0 : index
    %1 = vector.load %arg3[%c64, %c0_1] : memref<144x128xf32, #tpu.memory_space<vmem>>, vector<64x4xf32>
    %c128 = arith.constant 128 : index
    %c0_2 = arith.constant 0 : index
    %2 = vector.load %arg3[%c128, %c0_2] : memref<144x128xf32, #tpu.memory_space<vmem>>, vector<16x64xf32>
    %c0_3 = arith.constant 0 : index
    %c0_4 = arith.constant 0 : index
    %3 = vector.load %arg1[%c0_3, %c0_4] : memref<16x16xf32, #tpu.memory_space<vmem>>, vector<16x16xf32>
    %c0_5 = arith.constant 0 : index
    %c0_6 = arith.constant 0 : index
    %4 = vector.load %arg4[%c0_5, %c0_6] : memref<816x128xf32, #tpu.memory_space<vmem>>, vector<16x32xf32>
    %cst = arith.constant dense<0.000000e+00> : vector<16x32xf32>
    %5 = tpu.matmul %3, %4, %cst {dimension_numbers = #tpu.dot_dimension_numbers<[1], [0], [0], [1], [0, 0, 1, 1], [], []>} : vector<16x16xf32>, vector<16x32xf32>, vector<16x32xf32> -> vector<16x32xf32>
    %c0_7 = arith.constant 0 : index
    %c0_8 = arith.constant 0 : index
    %6 = vector.load %arg5[%c0_7, %c0_8] : memref<336x128xf32, #tpu.memory_space<vmem>>, vector<1x32xf32>
    %7 = vector.broadcast %6 : vector<1x32xf32> to vector<16x32xf32>
    %8 = arith.addf %5, %7 : vector<16x32xf32>
    %c0_9 = arith.constant 0 : index
    %c0_10 = arith.constant 0 : index
    %9 = vector.load %arg2[%c0_9, %c0_10] : memref<16x32xf32, #tpu.memory_space<vmem>>, vector<16x32xf32>
    %10 = arith.addf %8, %9 : vector<16x32xf32>
    %c48 = arith.constant 48 : index
    %c0_11 = arith.constant 0 : index
    %11 = vector.load %arg4[%c48, %c0_11] : memref<816x128xf32, #tpu.memory_space<vmem>>, vector<32x96xf32>
    %c16 = arith.constant 16 : index
    %c0_12 = arith.constant 0 : index
    %12 = vector.load %arg5[%c16, %c0_12] : memref<336x128xf32, #tpu.memory_space<vmem>>, vector<1x96xf32>
    %cst_13 = arith.constant dense<0.000000e+00> : vector<16x96xf32>
    %13 = tpu.matmul %10, %11, %cst_13 {dimension_numbers = #tpu.dot_dimension_numbers<[1], [0], [0], [1], [0, 0, 1, 1], [], []>} : vector<16x32xf32>, vector<32x96xf32>, vector<16x96xf32> -> vector<16x96xf32>
    %14 = vector.broadcast %12 : vector<1x96xf32> to vector<16x96xf32>
    %15 = arith.addf %13, %14 : vector<16x96xf32>
    %16 = vector.extract_strided_slice %15 {offsets = [0, 0], sizes = [16, 32], strides = [1, 1]} : vector<16x96xf32> to vector<16x32xf32>
    %17 = vector.extract_strided_slice %15 {offsets = [0, 32], sizes = [16, 32], strides = [1, 1]} : vector<16x96xf32> to vector<16x32xf32>
    %18 = vector.extract_strided_slice %15 {offsets = [0, 64], sizes = [16, 32], strides = [1, 1]} : vector<16x96xf32> to vector<16x32xf32>
    %19 = tpu.concatenate %17, %17, %17, %17 in 0 : vector<16x32xf32>, vector<16x32xf32>, vector<16x32xf32>, vector<16x32xf32> -> vector<64x32xf32>
    %20 = arith.mulf %19, %0 : vector<64x32xf32>
    %21 = tpu.concatenate %18, %18, %18, %18 in 0 : vector<16x32xf32>, vector<16x32xf32>, vector<16x32xf32>, vector<16x32xf32> -> vector<64x32xf32>
    %22 = arith.mulf %21, %0 : vector<64x32xf32>
    "tpu.trace_start"() <{level = 10 : i32, message = "nd,md->nm"}> : () -> ()
    %cst_14 = arith.constant dense<0.000000e+00> : vector<16x64xf32>
    %23 = tpu.matmul %16, %20, %cst_14 {dimension_numbers = #tpu.dot_dimension_numbers<[1], [1], [0], [0], [0, 0, 1, 0], [], []>} : vector<16x32xf32>, vector<64x32xf32>, vector<16x64xf32> -> vector<16x64xf32>
    "tpu.trace_stop"() : () -> ()
    %cst_15 = arith.constant 0.353553385 : f32
    %24 = vector.broadcast %cst_15 : f32 to vector<16x64xf32>
    %25 = arith.mulf %23, %24 : vector<16x64xf32>
    %26 = arith.addf %25, %2 : vector<16x64xf32>
    %cst_16 = arith.constant dense<0xFF800000> : vector<16xf32>
    %27 = vector.multi_reduction <maximumf>, %26, %cst_16 [1] : vector<16x64xf32> to vector<16xf32>
    %28 = vector.shape_cast %27 : vector<16xf32> to vector<16x1xf32>
    %29 = vector.broadcast %28 : vector<16x1xf32> to vector<16x64xf32>
    %30 = arith.subf %26, %29 : vector<16x64xf32>
    %31 = math.exp %30 : vector<16x64xf32>
    %cst_17 = arith.constant dense<0.000000e+00> : vector<16x4xf32>
    %32 = tpu.matmul %31, %1, %cst_17 {dimension_numbers = #tpu.dot_dimension_numbers<[1], [0], [0], [1], [0, 0, 1, 1], [], []>} : vector<16x64xf32>, vector<64x4xf32>, vector<16x4xf32> -> vector<16x4xf32>
    %33 = tpu.reciprocal %32 {approx = true} : vector<16x4xf32> -> vector<16x4xf32>
    "tpu.trace_start"() <{level = 10 : i32, message = "nh,mh->nm"}> : () -> ()
    %cst_18 = arith.constant dense<0.000000e+00> : vector<16x64xf32>
    %34 = tpu.matmul %33, %1, %cst_18 {dimension_numbers = #tpu.dot_dimension_numbers<[1], [1], [0], [0], [0, 0, 1, 0], [], []>} : vector<16x4xf32>, vector<64x4xf32>, vector<16x64xf32> -> vector<16x64xf32>
    "tpu.trace_stop"() : () -> ()
    %35 = arith.mulf %31, %34 : vector<16x64xf32>
    %cst_19 = arith.constant dense<0.000000e+00> : vector<16x32xf32>
    %36 = tpu.matmul %35, %22, %cst_19 {dimension_numbers = #tpu.dot_dimension_numbers<[1], [0], [0], [1], [0, 0, 1, 1], [], []>} : vector<16x64xf32>, vector<64x32xf32>, vector<16x32xf32> -> vector<16x32xf32>
    %c80 = arith.constant 80 : index
    %c0_20 = arith.constant 0 : index
    %37 = vector.load %arg4[%c80, %c0_20] : memref<816x128xf32, #tpu.memory_space<vmem>>, vector<32x32xf32>
    %cst_21 = arith.constant dense<0.000000e+00> : vector<16x32xf32>
    %38 = tpu.matmul %36, %37, %cst_21 {dimension_numbers = #tpu.dot_dimension_numbers<[1], [0], [0], [1], [0, 0, 1, 1], [], []>} : vector<16x32xf32>, vector<32x32xf32>, vector<16x32xf32> -> vector<16x32xf32>
    %c24 = arith.constant 24 : index
    %c0_22 = arith.constant 0 : index
    %39 = vector.load %arg5[%c24, %c0_22] : memref<336x128xf32, #tpu.memory_space<vmem>>, vector<1x32xf32>
    %40 = vector.broadcast %39 : vector<1x32xf32> to vector<16x32xf32>
    %41 = arith.addf %38, %40 : vector<16x32xf32>
    %42 = arith.addf %10, %41 : vector<16x32xf32>
    %cst_23 = arith.constant dense<0.000000e+00> : vector<16xf32>
    %43 = vector.multi_reduction <add>, %42, %cst_23 [1] : vector<16x32xf32> to vector<16xf32>
    %44 = vector.shape_cast %43 : vector<16xf32> to vector<16x1xf32>
    %cst_24 = arith.constant 3.200000e+01 : f32
    %45 = vector.broadcast %cst_24 : f32 to vector<16x1xf32>
    %46 = arith.divf %44, %45 : vector<16x1xf32>
    %47 = vector.broadcast %46 : vector<16x1xf32> to vector<16x32xf32>
    %48 = arith.subf %42, %47 : vector<16x32xf32>
    %49 = arith.mulf %48, %48 : vector<16x32xf32>
    %cst_25 = arith.constant dense<0.000000e+00> : vector<16xf32>
    %50 = vector.multi_reduction <add>, %49, %cst_25 [1] : vector<16x32xf32> to vector<16xf32>
    %51 = vector.shape_cast %50 : vector<16xf32> to vector<16x1xf32>
    %cst_26 = arith.constant 3.200000e+01 : f32
    %52 = vector.broadcast %cst_26 : f32 to vector<16x1xf32>
    %53 = arith.divf %51, %52 : vector<16x1xf32>
    %54 = vector.broadcast %46 : vector<16x1xf32> to vector<16x32xf32>
    %55 = arith.subf %42, %54 : vector<16x32xf32>
    %cst_27 = arith.constant 9.99999974E-6 : f32
    %56 = vector.broadcast %cst_27 : f32 to vector<16x1xf32>
    %57 = arith.addf %53, %56 : vector<16x1xf32>
    %58 = math.rsqrt %57 : vector<16x1xf32>
    %59 = vector.broadcast %58 : vector<16x1xf32> to vector<16x32xf32>
    %60 = arith.mulf %55, %59 : vector<16x32xf32>
    %c176 = arith.constant 176 : index
    %c0_28 = arith.constant 0 : index
    %61 = vector.load %arg5[%c176, %c0_28] : memref<336x128xf32, #tpu.memory_space<vmem>>, vector<1x32xf32>
    %62 = vector.broadcast %61 : vector<1x32xf32> to vector<16x32xf32>
    %63 = arith.mulf %60, %62 : vector<16x32xf32>
    %c184 = arith.constant 184 : index
    %c0_29 = arith.constant 0 : index
    %64 = vector.load %arg5[%c184, %c0_29] : memref<336x128xf32, #tpu.memory_space<vmem>>, vector<1x32xf32>
    %65 = vector.broadcast %64 : vector<1x32xf32> to vector<16x32xf32>
    %66 = arith.addf %63, %65 : vector<16x32xf32>
    %c432 = arith.constant 432 : index
    %c0_30 = arith.constant 0 : index
    %67 = vector.load %arg4[%c432, %c0_30] : memref<816x128xf32, #tpu.memory_space<vmem>>, vector<32x64xf32>
    %cst_31 = arith.constant dense<0.000000e+00> : vector<16x64xf32>
    %68 = tpu.matmul %66, %67, %cst_31 {dimension_numbers = #tpu.dot_dimension_numbers<[1], [0], [0], [1], [0, 0, 1, 1], [], []>} : vector<16x32xf32>, vector<32x64xf32>, vector<16x64xf32> -> vector<16x64xf32>
    %c112 = arith.constant 112 : index
    %c0_32 = arith.constant 0 : index
    %69 = vector.load %arg5[%c112, %c0_32] : memref<336x128xf32, #tpu.memory_space<vmem>>, vector<1x64xf32>
    %70 = vector.broadcast %69 : vector<1x64xf32> to vector<16x64xf32>
    %71 = arith.addf %68, %70 : vector<16x64xf32>
    %cst_33 = arith.constant 0.000000e+00 : f32
    %72 = vector.broadcast %cst_33 : f32 to vector<16x64xf32>
    %73 = arith.maximumf %71, %72 : vector<16x64xf32>
    %c464 = arith.constant 464 : index
    %c0_34 = arith.constant 0 : index
    %74 = vector.load %arg4[%c464, %c0_34] : memref<816x128xf32, #tpu.memory_space<vmem>>, vector<64x32xf32>
    %cst_35 = arith.constant dense<0.000000e+00> : vector<16x32xf32>
    %75 = tpu.matmul %73, %74, %cst_35 {dimension_numbers = #tpu.dot_dimension_numbers<[1], [0], [0], [1], [0, 0, 1, 1], [], []>} : vector<16x64xf32>, vector<64x32xf32>, vector<16x32xf32> -> vector<16x32xf32>
    %c120 = arith.constant 120 : index
    %c0_36 = arith.constant 0 : index
    %76 = vector.load %arg5[%c120, %c0_36] : memref<336x128xf32, #tpu.memory_space<vmem>>, vector<1x32xf32>
    %77 = vector.broadcast %76 : vector<1x32xf32> to vector<16x32xf32>
    %78 = arith.addf %75, %77 : vector<16x32xf32>
    %79 = arith.addf %66, %78 : vector<16x32xf32>
    %cst_37 = arith.constant dense<0.000000e+00> : vector<16xf32>
    %80 = vector.multi_reduction <add>, %79, %cst_37 [1] : vector<16x32xf32> to vector<16xf32>
    %81 = vector.shape_cast %80 : vector<16xf32> to vector<16x1xf32>
    %cst_38 = arith.constant 3.200000e+01 : f32
    %82 = vector.broadcast %cst_38 : f32 to vector<16x1xf32>
    %83 = arith.divf %81, %82 : vector<16x1xf32>
    %84 = vector.broadcast %83 : vector<16x1xf32> to vector<16x32xf32>
    %85 = arith.subf %79, %84 : vector<16x32xf32>
    %86 = arith.mulf %85, %85 : vector<16x32xf32>
    %cst_39 = arith.constant dense<0.000000e+00> : vector<16xf32>
    %87 = vector.multi_reduction <add>, %86, %cst_39 [1] : vector<16x32xf32> to vector<16xf32>
    %88 = vector.shape_cast %87 : vector<16xf32> to vector<16x1xf32>
    %cst_40 = arith.constant 3.200000e+01 : f32
    %89 = vector.broadcast %cst_40 : f32 to vector<16x1xf32>
    %90 = arith.divf %88, %89 : vector<16x1xf32>
    %91 = vector.broadcast %83 : vector<16x1xf32> to vector<16x32xf32>
    %92 = arith.subf %79, %91 : vector<16x32xf32>
    %cst_41 = arith.constant 9.99999974E-6 : f32
    %93 = vector.broadcast %cst_41 : f32 to vector<16x1xf32>
    %94 = arith.addf %90, %93 : vector<16x1xf32>
    %95 = math.rsqrt %94 : vector<16x1xf32>
    %96 = vector.broadcast %95 : vector<16x1xf32> to vector<16x32xf32>
    %97 = arith.mulf %92, %96 : vector<16x32xf32>
    %c192 = arith.constant 192 : index
    %c0_42 = arith.constant 0 : index
    %98 = vector.load %arg5[%c192, %c0_42] : memref<336x128xf32, #tpu.memory_space<vmem>>, vector<1x32xf32>
    %99 = vector.broadcast %98 : vector<1x32xf32> to vector<16x32xf32>
    %100 = arith.mulf %97, %99 : vector<16x32xf32>
    %c200 = arith.constant 200 : index
    %c0_43 = arith.constant 0 : index
    %101 = vector.load %arg5[%c200, %c0_43] : memref<336x128xf32, #tpu.memory_space<vmem>>, vector<1x32xf32>
    %102 = vector.broadcast %101 : vector<1x32xf32> to vector<16x32xf32>
    %103 = arith.addf %100, %102 : vector<16x32xf32>
    %c112_44 = arith.constant 112 : index
    %c0_45 = arith.constant 0 : index
    %104 = vector.load %arg4[%c112_44, %c0_45] : memref<816x128xf32, #tpu.memory_space<vmem>>, vector<32x96xf32>
    %c32 = arith.constant 32 : index
    %c0_46 = arith.constant 0 : index
    %105 = vector.load %arg5[%c32, %c0_46] : memref<336x128xf32, #tpu.memory_space<vmem>>, vector<1x96xf32>
    %cst_47 = arith.constant dense<0.000000e+00> : vector<16x96xf32>
    %106 = tpu.matmul %103, %104, %cst_47 {dimension_numbers = #tpu.dot_dimension_numbers<[1], [0], [0], [1], [0, 0, 1, 1], [], []>} : vector<16x32xf32>, vector<32x96xf32>, vector<16x96xf32> -> vector<16x96xf32>
    %107 = vector.broadcast %105 : vector<1x96xf32> to vector<16x96xf32>
    %108 = arith.addf %106, %107 : vector<16x96xf32>
    %109 = vector.extract_strided_slice %108 {offsets = [0, 0], sizes = [16, 32], strides = [1, 1]} : vector<16x96xf32> to vector<16x32xf32>
    %110 = vector.extract_strided_slice %108 {offsets = [0, 32], sizes = [16, 32], strides = [1, 1]} : vector<16x96xf32> to vector<16x32xf32>
    %111 = vector.extract_strided_slice %108 {offsets = [0, 64], sizes = [16, 32], strides = [1, 1]} : vector<16x96xf32> to vector<16x32xf32>
    %112 = tpu.concatenate %110, %110, %110, %110 in 0 : vector<16x32xf32>, vector<16x32xf32>, vector<16x32xf32>, vector<16x32xf32> -> vector<64x32xf32>
    %113 = arith.mulf %112, %0 : vector<64x32xf32>
    %114 = tpu.concatenate %111, %111, %111, %111 in 0 : vector<16x32xf32>, vector<16x32xf32>, vector<16x32xf32>, vector<16x32xf32> -> vector<64x32xf32>
    %115 = arith.mulf %114, %0 : vector<64x32xf32>
    "tpu.trace_start"() <{level = 10 : i32, message = "nd,md->nm"}> : () -> ()
    %cst_48 = arith.constant dense<0.000000e+00> : vector<16x64xf32>
    %116 = tpu.matmul %109, %113, %cst_48 {dimension_numbers = #tpu.dot_dimension_numbers<[1], [1], [0], [0], [0, 0, 1, 0], [], []>} : vector<16x32xf32>, vector<64x32xf32>, vector<16x64xf32> -> vector<16x64xf32>
    "tpu.trace_stop"() : () -> ()
    %cst_49 = arith.constant 0.353553385 : f32
    %117 = vector.broadcast %cst_49 : f32 to vector<16x64xf32>
    %118 = arith.mulf %116, %117 : vector<16x64xf32>
    %119 = arith.addf %118, %2 : vector<16x64xf32>
    %cst_50 = arith.constant dense<0xFF800000> : vector<16xf32>
    %120 = vector.multi_reduction <maximumf>, %119, %cst_50 [1] : vector<16x64xf32> to vector<16xf32>
    %121 = vector.shape_cast %120 : vector<16xf32> to vector<16x1xf32>
    %122 = vector.broadcast %121 : vector<16x1xf32> to vector<16x64xf32>
    %123 = arith.subf %119, %122 : vector<16x64xf32>
    %124 = math.exp %123 : vector<16x64xf32>
    %cst_51 = arith.constant dense<0.000000e+00> : vector<16x4xf32>
    %125 = tpu.matmul %124, %1, %cst_51 {dimension_numbers = #tpu.dot_dimension_numbers<[1], [0], [0], [1], [0, 0, 1, 1], [], []>} : vector<16x64xf32>, vector<64x4xf32>, vector<16x4xf32> -> vector<16x4xf32>
    %126 = tpu.reciprocal %125 {approx = true} : vector<16x4xf32> -> vector<16x4xf32>
    "tpu.trace_start"() <{level = 10 : i32, message = "nh,mh->nm"}> : () -> ()
    %cst_52 = arith.constant dense<0.000000e+00> : vector<16x64xf32>
    %127 = tpu.matmul %126, %1, %cst_52 {dimension_numbers = #tpu.dot_dimension_numbers<[1], [1], [0], [0], [0, 0, 1, 0], [], []>} : vector<16x4xf32>, vector<64x4xf32>, vector<16x64xf32> -> vector<16x64xf32>
    "tpu.trace_stop"() : () -> ()
    %128 = arith.mulf %124, %127 : vector<16x64xf32>
    %cst_53 = arith.constant dense<0.000000e+00> : vector<16x32xf32>
    %129 = tpu.matmul %128, %115, %cst_53 {dimension_numbers = #tpu.dot_dimension_numbers<[1], [0], [0], [1], [0, 0, 1, 1], [], []>} : vector<16x64xf32>, vector<64x32xf32>, vector<16x32xf32> -> vector<16x32xf32>
    %c144 = arith.constant 144 : index
    %c0_54 = arith.constant 0 : index
    %130 = vector.load %arg4[%c144, %c0_54] : memref<816x128xf32, #tpu.memory_space<vmem>>, vector<32x32xf32>
    %cst_55 = arith.constant dense<0.000000e+00> : vector<16x32xf32>
    %131 = tpu.matmul %129, %130, %cst_55 {dimension_numbers = #tpu.dot_dimension_numbers<[1], [0], [0], [1], [0, 0, 1, 1], [], []>} : vector<16x32xf32>, vector<32x32xf32>, vector<16x32xf32> -> vector<16x32xf32>
    %c40 = arith.constant 40 : index
    %c0_56 = arith.constant 0 : index
    %132 = vector.load %arg5[%c40, %c0_56] : memref<336x128xf32, #tpu.memory_space<vmem>>, vector<1x32xf32>
    %133 = vector.broadcast %132 : vector<1x32xf32> to vector<16x32xf32>
    %134 = arith.addf %131, %133 : vector<16x32xf32>
    %135 = arith.addf %103, %134 : vector<16x32xf32>
    %cst_57 = arith.constant dense<0.000000e+00> : vector<16xf32>
    %136 = vector.multi_reduction <add>, %135, %cst_57 [1] : vector<16x32xf32> to vector<16xf32>
    %137 = vector.shape_cast %136 : vector<16xf32> to vector<16x1xf32>
    %cst_58 = arith.constant 3.200000e+01 : f32
    %138 = vector.broadcast %cst_58 : f32 to vector<16x1xf32>
    %139 = arith.divf %137, %138 : vector<16x1xf32>
    %140 = vector.broadcast %139 : vector<16x1xf32> to vector<16x32xf32>
    %141 = arith.subf %135, %140 : vector<16x32xf32>
    %142 = arith.mulf %141, %141 : vector<16x32xf32>
    %cst_59 = arith.constant dense<0.000000e+00> : vector<16xf32>
    %143 = vector.multi_reduction <add>, %142, %cst_59 [1] : vector<16x32xf32> to vector<16xf32>
    %144 = vector.shape_cast %143 : vector<16xf32> to vector<16x1xf32>
    %cst_60 = arith.constant 3.200000e+01 : f32
    %145 = vector.broadcast %cst_60 : f32 to vector<16x1xf32>
    %146 = arith.divf %144, %145 : vector<16x1xf32>
    %147 = vector.broadcast %139 : vector<16x1xf32> to vector<16x32xf32>
    %148 = arith.subf %135, %147 : vector<16x32xf32>
    %cst_61 = arith.constant 9.99999974E-6 : f32
    %149 = vector.broadcast %cst_61 : f32 to vector<16x1xf32>
    %150 = arith.addf %146, %149 : vector<16x1xf32>
    %151 = math.rsqrt %150 : vector<16x1xf32>
    %152 = vector.broadcast %151 : vector<16x1xf32> to vector<16x32xf32>
    %153 = arith.mulf %148, %152 : vector<16x32xf32>
    %c208 = arith.constant 208 : index
    %c0_62 = arith.constant 0 : index
    %154 = vector.load %arg5[%c208, %c0_62] : memref<336x128xf32, #tpu.memory_space<vmem>>, vector<1x32xf32>
    %155 = vector.broadcast %154 : vector<1x32xf32> to vector<16x32xf32>
    %156 = arith.mulf %153, %155 : vector<16x32xf32>
    %c216 = arith.constant 216 : index
    %c0_63 = arith.constant 0 : index
    %157 = vector.load %arg5[%c216, %c0_63] : memref<336x128xf32, #tpu.memory_space<vmem>>, vector<1x32xf32>
    %158 = vector.broadcast %157 : vector<1x32xf32> to vector<16x32xf32>
    %159 = arith.addf %156, %158 : vector<16x32xf32>
    %c528 = arith.constant 528 : index
    %c0_64 = arith.constant 0 : index
    %160 = vector.load %arg4[%c528, %c0_64] : memref<816x128xf32, #tpu.memory_space<vmem>>, vector<32x64xf32>
    %cst_65 = arith.constant dense<0.000000e+00> : vector<16x64xf32>
    %161 = tpu.matmul %159, %160, %cst_65 {dimension_numbers = #tpu.dot_dimension_numbers<[1], [0], [0], [1], [0, 0, 1, 1], [], []>} : vector<16x32xf32>, vector<32x64xf32>, vector<16x64xf32> -> vector<16x64xf32>
    %c128_66 = arith.constant 128 : index
    %c0_67 = arith.constant 0 : index
    %162 = vector.load %arg5[%c128_66, %c0_67] : memref<336x128xf32, #tpu.memory_space<vmem>>, vector<1x64xf32>
    %163 = vector.broadcast %162 : vector<1x64xf32> to vector<16x64xf32>
    %164 = arith.addf %161, %163 : vector<16x64xf32>
    %cst_68 = arith.constant 0.000000e+00 : f32
    %165 = vector.broadcast %cst_68 : f32 to vector<16x64xf32>
    %166 = arith.maximumf %164, %165 : vector<16x64xf32>
    %c560 = arith.constant 560 : index
    %c0_69 = arith.constant 0 : index
    %167 = vector.load %arg4[%c560, %c0_69] : memref<816x128xf32, #tpu.memory_space<vmem>>, vector<64x32xf32>
    %cst_70 = arith.constant dense<0.000000e+00> : vector<16x32xf32>
    %168 = tpu.matmul %166, %167, %cst_70 {dimension_numbers = #tpu.dot_dimension_numbers<[1], [0], [0], [1], [0, 0, 1, 1], [], []>} : vector<16x64xf32>, vector<64x32xf32>, vector<16x32xf32> -> vector<16x32xf32>
    %c136 = arith.constant 136 : index
    %c0_71 = arith.constant 0 : index
    %169 = vector.load %arg5[%c136, %c0_71] : memref<336x128xf32, #tpu.memory_space<vmem>>, vector<1x32xf32>
    %170 = vector.broadcast %169 : vector<1x32xf32> to vector<16x32xf32>
    %171 = arith.addf %168, %170 : vector<16x32xf32>
    %172 = arith.addf %159, %171 : vector<16x32xf32>
    %cst_72 = arith.constant dense<0.000000e+00> : vector<16xf32>
    %173 = vector.multi_reduction <add>, %172, %cst_72 [1] : vector<16x32xf32> to vector<16xf32>
    %174 = vector.shape_cast %173 : vector<16xf32> to vector<16x1xf32>
    %cst_73 = arith.constant 3.200000e+01 : f32
    %175 = vector.broadcast %cst_73 : f32 to vector<16x1xf32>
    %176 = arith.divf %174, %175 : vector<16x1xf32>
    %177 = vector.broadcast %176 : vector<16x1xf32> to vector<16x32xf32>
    %178 = arith.subf %172, %177 : vector<16x32xf32>
    %179 = arith.mulf %178, %178 : vector<16x32xf32>
    %cst_74 = arith.constant dense<0.000000e+00> : vector<16xf32>
    %180 = vector.multi_reduction <add>, %179, %cst_74 [1] : vector<16x32xf32> to vector<16xf32>
    %181 = vector.shape_cast %180 : vector<16xf32> to vector<16x1xf32>
    %cst_75 = arith.constant 3.200000e+01 : f32
    %182 = vector.broadcast %cst_75 : f32 to vector<16x1xf32>
    %183 = arith.divf %181, %182 : vector<16x1xf32>
    %184 = vector.broadcast %176 : vector<16x1xf32> to vector<16x32xf32>
    %185 = arith.subf %172, %184 : vector<16x32xf32>
    %cst_76 = arith.constant 9.99999974E-6 : f32
    %186 = vector.broadcast %cst_76 : f32 to vector<16x1xf32>
    %187 = arith.addf %183, %186 : vector<16x1xf32>
    %188 = math.rsqrt %187 : vector<16x1xf32>
    %189 = vector.broadcast %188 : vector<16x1xf32> to vector<16x32xf32>
    %190 = arith.mulf %185, %189 : vector<16x32xf32>
    %c224 = arith.constant 224 : index
    %c0_77 = arith.constant 0 : index
    %191 = vector.load %arg5[%c224, %c0_77] : memref<336x128xf32, #tpu.memory_space<vmem>>, vector<1x32xf32>
    %192 = vector.broadcast %191 : vector<1x32xf32> to vector<16x32xf32>
    %193 = arith.mulf %190, %192 : vector<16x32xf32>
    %c232 = arith.constant 232 : index
    %c0_78 = arith.constant 0 : index
    %194 = vector.load %arg5[%c232, %c0_78] : memref<336x128xf32, #tpu.memory_space<vmem>>, vector<1x32xf32>
    %195 = vector.broadcast %194 : vector<1x32xf32> to vector<16x32xf32>
    %196 = arith.addf %193, %195 : vector<16x32xf32>
    %c176_79 = arith.constant 176 : index
    %c0_80 = arith.constant 0 : index
    %197 = vector.load %arg4[%c176_79, %c0_80] : memref<816x128xf32, #tpu.memory_space<vmem>>, vector<32x96xf32>
    %c48_81 = arith.constant 48 : index
    %c0_82 = arith.constant 0 : index
    %198 = vector.load %arg5[%c48_81, %c0_82] : memref<336x128xf32, #tpu.memory_space<vmem>>, vector<1x96xf32>
    %cst_83 = arith.constant dense<0.000000e+00> : vector<16x96xf32>
    %199 = tpu.matmul %10, %197, %cst_83 {dimension_numbers = #tpu.dot_dimension_numbers<[1], [0], [0], [1], [0, 0, 1, 1], [], []>} : vector<16x32xf32>, vector<32x96xf32>, vector<16x96xf32> -> vector<16x96xf32>
    %200 = vector.broadcast %198 : vector<1x96xf32> to vector<16x96xf32>
    %201 = arith.addf %199, %200 : vector<16x96xf32>
    %202 = vector.extract_strided_slice %201 {offsets = [0, 0], sizes = [16, 32], strides = [1, 1]} : vector<16x96xf32> to vector<16x32xf32>
    %203 = vector.extract_strided_slice %201 {offsets = [0, 32], sizes = [16, 32], strides = [1, 1]} : vector<16x96xf32> to vector<16x32xf32>
    %204 = vector.extract_strided_slice %201 {offsets = [0, 64], sizes = [16, 32], strides = [1, 1]} : vector<16x96xf32> to vector<16x32xf32>
    %205 = tpu.concatenate %203, %203, %203, %203 in 0 : vector<16x32xf32>, vector<16x32xf32>, vector<16x32xf32>, vector<16x32xf32> -> vector<64x32xf32>
    %206 = arith.mulf %205, %0 : vector<64x32xf32>
    %207 = tpu.concatenate %204, %204, %204, %204 in 0 : vector<16x32xf32>, vector<16x32xf32>, vector<16x32xf32>, vector<16x32xf32> -> vector<64x32xf32>
    %208 = arith.mulf %207, %0 : vector<64x32xf32>
    "tpu.trace_start"() <{level = 10 : i32, message = "nd,md->nm"}> : () -> ()
    %cst_84 = arith.constant dense<0.000000e+00> : vector<16x64xf32>
    %209 = tpu.matmul %202, %206, %cst_84 {dimension_numbers = #tpu.dot_dimension_numbers<[1], [1], [0], [0], [0, 0, 1, 0], [], []>} : vector<16x32xf32>, vector<64x32xf32>, vector<16x64xf32> -> vector<16x64xf32>
    "tpu.trace_stop"() : () -> ()
    %cst_85 = arith.constant 0.353553385 : f32
    %210 = vector.broadcast %cst_85 : f32 to vector<16x64xf32>
    %211 = arith.mulf %209, %210 : vector<16x64xf32>
    %212 = arith.addf %211, %2 : vector<16x64xf32>
    %cst_86 = arith.constant dense<0xFF800000> : vector<16xf32>
    %213 = vector.multi_reduction <maximumf>, %212, %cst_86 [1] : vector<16x64xf32> to vector<16xf32>
    %214 = vector.shape_cast %213 : vector<16xf32> to vector<16x1xf32>
    %215 = vector.broadcast %214 : vector<16x1xf32> to vector<16x64xf32>
    %216 = arith.subf %212, %215 : vector<16x64xf32>
    %217 = math.exp %216 : vector<16x64xf32>
    %cst_87 = arith.constant dense<0.000000e+00> : vector<16x4xf32>
    %218 = tpu.matmul %217, %1, %cst_87 {dimension_numbers = #tpu.dot_dimension_numbers<[1], [0], [0], [1], [0, 0, 1, 1], [], []>} : vector<16x64xf32>, vector<64x4xf32>, vector<16x4xf32> -> vector<16x4xf32>
    %219 = tpu.reciprocal %218 {approx = true} : vector<16x4xf32> -> vector<16x4xf32>
    "tpu.trace_start"() <{level = 10 : i32, message = "nh,mh->nm"}> : () -> ()
    %cst_88 = arith.constant dense<0.000000e+00> : vector<16x64xf32>
    %220 = tpu.matmul %219, %1, %cst_88 {dimension_numbers = #tpu.dot_dimension_numbers<[1], [1], [0], [0], [0, 0, 1, 0], [], []>} : vector<16x4xf32>, vector<64x4xf32>, vector<16x64xf32> -> vector<16x64xf32>
    "tpu.trace_stop"() : () -> ()
    %221 = arith.mulf %217, %220 : vector<16x64xf32>
    %cst_89 = arith.constant dense<0.000000e+00> : vector<16x32xf32>
    %222 = tpu.matmul %221, %208, %cst_89 {dimension_numbers = #tpu.dot_dimension_numbers<[1], [0], [0], [1], [0, 0, 1, 1], [], []>} : vector<16x64xf32>, vector<64x32xf32>, vector<16x32xf32> -> vector<16x32xf32>
    %c208_90 = arith.constant 208 : index
    %c0_91 = arith.constant 0 : index
    %223 = vector.load %arg4[%c208_90, %c0_91] : memref<816x128xf32, #tpu.memory_space<vmem>>, vector<32x32xf32>
    %cst_92 = arith.constant dense<0.000000e+00> : vector<16x32xf32>
    %224 = tpu.matmul %222, %223, %cst_92 {dimension_numbers = #tpu.dot_dimension_numbers<[1], [0], [0], [1], [0, 0, 1, 1], [], []>} : vector<16x32xf32>, vector<32x32xf32>, vector<16x32xf32> -> vector<16x32xf32>
    %c56 = arith.constant 56 : index
    %c0_93 = arith.constant 0 : index
    %225 = vector.load %arg5[%c56, %c0_93] : memref<336x128xf32, #tpu.memory_space<vmem>>, vector<1x32xf32>
    %226 = vector.broadcast %225 : vector<1x32xf32> to vector<16x32xf32>
    %227 = arith.addf %224, %226 : vector<16x32xf32>
    %228 = arith.addf %10, %227 : vector<16x32xf32>
    %cst_94 = arith.constant dense<0.000000e+00> : vector<16xf32>
    %229 = vector.multi_reduction <add>, %228, %cst_94 [1] : vector<16x32xf32> to vector<16xf32>
    %230 = vector.shape_cast %229 : vector<16xf32> to vector<16x1xf32>
    %cst_95 = arith.constant 3.200000e+01 : f32
    %231 = vector.broadcast %cst_95 : f32 to vector<16x1xf32>
    %232 = arith.divf %230, %231 : vector<16x1xf32>
    %233 = vector.broadcast %232 : vector<16x1xf32> to vector<16x32xf32>
    %234 = arith.subf %228, %233 : vector<16x32xf32>
    %235 = arith.mulf %234, %234 : vector<16x32xf32>
    %cst_96 = arith.constant dense<0.000000e+00> : vector<16xf32>
    %236 = vector.multi_reduction <add>, %235, %cst_96 [1] : vector<16x32xf32> to vector<16xf32>
    %237 = vector.shape_cast %236 : vector<16xf32> to vector<16x1xf32>
    %cst_97 = arith.constant 3.200000e+01 : f32
    %238 = vector.broadcast %cst_97 : f32 to vector<16x1xf32>
    %239 = arith.divf %237, %238 : vector<16x1xf32>
    %240 = vector.broadcast %232 : vector<16x1xf32> to vector<16x32xf32>
    %241 = arith.subf %228, %240 : vector<16x32xf32>
    %cst_98 = arith.constant 9.99999974E-6 : f32
    %242 = vector.broadcast %cst_98 : f32 to vector<16x1xf32>
    %243 = arith.addf %239, %242 : vector<16x1xf32>
    %244 = math.rsqrt %243 : vector<16x1xf32>
    %245 = vector.broadcast %244 : vector<16x1xf32> to vector<16x32xf32>
    %246 = arith.mulf %241, %245 : vector<16x32xf32>
    %c240 = arith.constant 240 : index
    %c0_99 = arith.constant 0 : index
    %247 = vector.load %arg5[%c240, %c0_99] : memref<336x128xf32, #tpu.memory_space<vmem>>, vector<1x32xf32>
    %248 = vector.broadcast %247 : vector<1x32xf32> to vector<16x32xf32>
    %249 = arith.mulf %246, %248 : vector<16x32xf32>
    %c248 = arith.constant 248 : index
    %c0_100 = arith.constant 0 : index
    %250 = vector.load %arg5[%c248, %c0_100] : memref<336x128xf32, #tpu.memory_space<vmem>>, vector<1x32xf32>
    %251 = vector.broadcast %250 : vector<1x32xf32> to vector<16x32xf32>
    %252 = arith.addf %249, %251 : vector<16x32xf32>
    %c240_101 = arith.constant 240 : index
    %c0_102 = arith.constant 0 : index
    %253 = vector.load %arg4[%c240_101, %c0_102] : memref<816x128xf32, #tpu.memory_space<vmem>>, vector<32x96xf32>
    %c64_103 = arith.constant 64 : index
    %c0_104 = arith.constant 0 : index
    %254 = vector.load %arg5[%c64_103, %c0_104] : memref<336x128xf32, #tpu.memory_space<vmem>>, vector<1x96xf32>
    %255 = vector.extract_strided_slice %253 {offsets = [0, 0], sizes = [32, 32], strides = [1, 1]} : vector<32x96xf32> to vector<32x32xf32>
    %cst_105 = arith.constant dense<0.000000e+00> : vector<16x32xf32>
    %256 = tpu.matmul %252, %255, %cst_105 {dimension_numbers = #tpu.dot_dimension_numbers<[1], [0], [0], [1], [0, 0, 1, 1], [], []>} : vector<16x32xf32>, vector<32x32xf32>, vector<16x32xf32> -> vector<16x32xf32>
    %257 = vector.extract_strided_slice %254 {offsets = [0, 0], sizes = [1, 32], strides = [1, 1]} : vector<1x96xf32> to vector<1x32xf32>
    %258 = vector.broadcast %257 : vector<1x32xf32> to vector<16x32xf32>
    %259 = arith.addf %256, %258 : vector<16x32xf32>
    %260 = vector.extract_strided_slice %253 {offsets = [0, 32], sizes = [32, 64], strides = [1, 1]} : vector<32x96xf32> to vector<32x64xf32>
    %cst_106 = arith.constant dense<0.000000e+00> : vector<16x64xf32>
    %261 = tpu.matmul %196, %260, %cst_106 {dimension_numbers = #tpu.dot_dimension_numbers<[1], [0], [0], [1], [0, 0, 1, 1], [], []>} : vector<16x32xf32>, vector<32x64xf32>, vector<16x64xf32> -> vector<16x64xf32>
    %262 = vector.extract_strided_slice %254 {offsets = [0, 32], sizes = [1, 64], strides = [1, 1]} : vector<1x96xf32> to vector<1x64xf32>
    %263 = vector.broadcast %262 : vector<1x64xf32> to vector<16x64xf32>
    %264 = arith.addf %261, %263 : vector<16x64xf32>
    %265 = vector.extract_strided_slice %264 {offsets = [0, 0], sizes = [16, 32], strides = [1, 1]} : vector<16x64xf32> to vector<16x32xf32>
    %266 = vector.extract_strided_slice %264 {offsets = [0, 32], sizes = [16, 32], strides = [1, 1]} : vector<16x64xf32> to vector<16x32xf32>
    %267 = tpu.concatenate %265, %265, %265, %265 in 0 : vector<16x32xf32>, vector<16x32xf32>, vector<16x32xf32>, vector<16x32xf32> -> vector<64x32xf32>
    %268 = arith.mulf %267, %0 : vector<64x32xf32>
    %269 = tpu.concatenate %266, %266, %266, %266 in 0 : vector<16x32xf32>, vector<16x32xf32>, vector<16x32xf32>, vector<16x32xf32> -> vector<64x32xf32>
    %270 = arith.mulf %269, %0 : vector<64x32xf32>
    "tpu.trace_start"() <{level = 10 : i32, message = "nd,md->nm"}> : () -> ()
    %cst_107 = arith.constant dense<0.000000e+00> : vector<16x64xf32>
    %271 = tpu.matmul %259, %268, %cst_107 {dimension_numbers = #tpu.dot_dimension_numbers<[1], [1], [0], [0], [0, 0, 1, 0], [], []>} : vector<16x32xf32>, vector<64x32xf32>, vector<16x64xf32> -> vector<16x64xf32>
    "tpu.trace_stop"() : () -> ()
    %cst_108 = arith.constant 0.353553385 : f32
    %272 = vector.broadcast %cst_108 : f32 to vector<16x64xf32>
    %273 = arith.mulf %271, %272 : vector<16x64xf32>
    %274 = arith.addf %273, %2 : vector<16x64xf32>
    %cst_109 = arith.constant dense<0xFF800000> : vector<16xf32>
    %275 = vector.multi_reduction <maximumf>, %274, %cst_109 [1] : vector<16x64xf32> to vector<16xf32>
    %276 = vector.shape_cast %275 : vector<16xf32> to vector<16x1xf32>
    %277 = vector.broadcast %276 : vector<16x1xf32> to vector<16x64xf32>
    %278 = arith.subf %274, %277 : vector<16x64xf32>
    %279 = math.exp %278 : vector<16x64xf32>
    %cst_110 = arith.constant dense<0.000000e+00> : vector<16x4xf32>
    %280 = tpu.matmul %279, %1, %cst_110 {dimension_numbers = #tpu.dot_dimension_numbers<[1], [0], [0], [1], [0, 0, 1, 1], [], []>} : vector<16x64xf32>, vector<64x4xf32>, vector<16x4xf32> -> vector<16x4xf32>
    %281 = tpu.reciprocal %280 {approx = true} : vector<16x4xf32> -> vector<16x4xf32>
    "tpu.trace_start"() <{level = 10 : i32, message = "nh,mh->nm"}> : () -> ()
    %cst_111 = arith.constant dense<0.000000e+00> : vector<16x64xf32>
    %282 = tpu.matmul %281, %1, %cst_111 {dimension_numbers = #tpu.dot_dimension_numbers<[1], [1], [0], [0], [0, 0, 1, 0], [], []>} : vector<16x4xf32>, vector<64x4xf32>, vector<16x64xf32> -> vector<16x64xf32>
    "tpu.trace_stop"() : () -> ()
    %283 = arith.mulf %279, %282 : vector<16x64xf32>
    %cst_112 = arith.constant dense<0.000000e+00> : vector<16x32xf32>
    %284 = tpu.matmul %283, %270, %cst_112 {dimension_numbers = #tpu.dot_dimension_numbers<[1], [0], [0], [1], [0, 0, 1, 1], [], []>} : vector<16x64xf32>, vector<64x32xf32>, vector<16x32xf32> -> vector<16x32xf32>
    %c272 = arith.constant 272 : index
    %c0_113 = arith.constant 0 : index
    %285 = vector.load %arg4[%c272, %c0_113] : memref<816x128xf32, #tpu.memory_space<vmem>>, vector<32x32xf32>
    %cst_114 = arith.constant dense<0.000000e+00> : vector<16x32xf32>
    %286 = tpu.matmul %284, %285, %cst_114 {dimension_numbers = #tpu.dot_dimension_numbers<[1], [0], [0], [1], [0, 0, 1, 1], [], []>} : vector<16x32xf32>, vector<32x32xf32>, vector<16x32xf32> -> vector<16x32xf32>
    %c72 = arith.constant 72 : index
    %c0_115 = arith.constant 0 : index
    %287 = vector.load %arg5[%c72, %c0_115] : memref<336x128xf32, #tpu.memory_space<vmem>>, vector<1x32xf32>
    %288 = vector.broadcast %287 : vector<1x32xf32> to vector<16x32xf32>
    %289 = arith.addf %286, %288 : vector<16x32xf32>
    %290 = arith.addf %252, %289 : vector<16x32xf32>
    %cst_116 = arith.constant dense<0.000000e+00> : vector<16xf32>
    %291 = vector.multi_reduction <add>, %290, %cst_116 [1] : vector<16x32xf32> to vector<16xf32>
    %292 = vector.shape_cast %291 : vector<16xf32> to vector<16x1xf32>
    %cst_117 = arith.constant 3.200000e+01 : f32
    %293 = vector.broadcast %cst_117 : f32 to vector<16x1xf32>
    %294 = arith.divf %292, %293 : vector<16x1xf32>
    %295 = vector.broadcast %294 : vector<16x1xf32> to vector<16x32xf32>
    %296 = arith.subf %290, %295 : vector<16x32xf32>
    %297 = arith.mulf %296, %296 : vector<16x32xf32>
    %cst_118 = arith.constant dense<0.000000e+00> : vector<16xf32>
    %298 = vector.multi_reduction <add>, %297, %cst_118 [1] : vector<16x32xf32> to vector<16xf32>
    %299 = vector.shape_cast %298 : vector<16xf32> to vector<16x1xf32>
    %cst_119 = arith.constant 3.200000e+01 : f32
    %300 = vector.broadcast %cst_119 : f32 to vector<16x1xf32>
    %301 = arith.divf %299, %300 : vector<16x1xf32>
    %302 = vector.broadcast %294 : vector<16x1xf32> to vector<16x32xf32>
    %303 = arith.subf %290, %302 : vector<16x32xf32>
    %cst_120 = arith.constant 9.99999974E-6 : f32
    %304 = vector.broadcast %cst_120 : f32 to vector<16x1xf32>
    %305 = arith.addf %301, %304 : vector<16x1xf32>
    %306 = math.rsqrt %305 : vector<16x1xf32>
    %307 = vector.broadcast %306 : vector<16x1xf32> to vector<16x32xf32>
    %308 = arith.mulf %303, %307 : vector<16x32xf32>
    %c256 = arith.constant 256 : index
    %c0_121 = arith.constant 0 : index
    %309 = vector.load %arg5[%c256, %c0_121] : memref<336x128xf32, #tpu.memory_space<vmem>>, vector<1x32xf32>
    %310 = vector.broadcast %309 : vector<1x32xf32> to vector<16x32xf32>
    %311 = arith.mulf %308, %310 : vector<16x32xf32>
    %c264 = arith.constant 264 : index
    %c0_122 = arith.constant 0 : index
    %312 = vector.load %arg5[%c264, %c0_122] : memref<336x128xf32, #tpu.memory_space<vmem>>, vector<1x32xf32>
    %313 = vector.broadcast %312 : vector<1x32xf32> to vector<16x32xf32>
    %314 = arith.addf %311, %313 : vector<16x32xf32>
    %c624 = arith.constant 624 : index
    %c0_123 = arith.constant 0 : index
    %315 = vector.load %arg4[%c624, %c0_123] : memref<816x128xf32, #tpu.memory_space<vmem>>, vector<32x64xf32>
    %cst_124 = arith.constant dense<0.000000e+00> : vector<16x64xf32>
    %316 = tpu.matmul %314, %315, %cst_124 {dimension_numbers = #tpu.dot_dimension_numbers<[1], [0], [0], [1], [0, 0, 1, 1], [], []>} : vector<16x32xf32>, vector<32x64xf32>, vector<16x64xf32> -> vector<16x64xf32>
    %c144_125 = arith.constant 144 : index
    %c0_126 = arith.constant 0 : index
    %317 = vector.load %arg5[%c144_125, %c0_126] : memref<336x128xf32, #tpu.memory_space<vmem>>, vector<1x64xf32>
    %318 = vector.broadcast %317 : vector<1x64xf32> to vector<16x64xf32>
    %319 = arith.addf %316, %318 : vector<16x64xf32>
    %cst_127 = arith.constant 0.000000e+00 : f32
    %320 = vector.broadcast %cst_127 : f32 to vector<16x64xf32>
    %321 = arith.maximumf %319, %320 : vector<16x64xf32>
    %c656 = arith.constant 656 : index
    %c0_128 = arith.constant 0 : index
    %322 = vector.load %arg4[%c656, %c0_128] : memref<816x128xf32, #tpu.memory_space<vmem>>, vector<64x32xf32>
    %cst_129 = arith.constant dense<0.000000e+00> : vector<16x32xf32>
    %323 = tpu.matmul %321, %322, %cst_129 {dimension_numbers = #tpu.dot_dimension_numbers<[1], [0], [0], [1], [0, 0, 1, 1], [], []>} : vector<16x64xf32>, vector<64x32xf32>, vector<16x32xf32> -> vector<16x32xf32>
    %c152 = arith.constant 152 : index
    %c0_130 = arith.constant 0 : index
    %324 = vector.load %arg5[%c152, %c0_130] : memref<336x128xf32, #tpu.memory_space<vmem>>, vector<1x32xf32>
    %325 = vector.broadcast %324 : vector<1x32xf32> to vector<16x32xf32>
    %326 = arith.addf %323, %325 : vector<16x32xf32>
    %327 = arith.addf %314, %326 : vector<16x32xf32>
    %cst_131 = arith.constant dense<0.000000e+00> : vector<16xf32>
    %328 = vector.multi_reduction <add>, %327, %cst_131 [1] : vector<16x32xf32> to vector<16xf32>
    %329 = vector.shape_cast %328 : vector<16xf32> to vector<16x1xf32>
    %cst_132 = arith.constant 3.200000e+01 : f32
    %330 = vector.broadcast %cst_132 : f32 to vector<16x1xf32>
    %331 = arith.divf %329, %330 : vector<16x1xf32>
    %332 = vector.broadcast %331 : vector<16x1xf32> to vector<16x32xf32>
    %333 = arith.subf %327, %332 : vector<16x32xf32>
    %334 = arith.mulf %333, %333 : vector<16x32xf32>
    %cst_133 = arith.constant dense<0.000000e+00> : vector<16xf32>
    %335 = vector.multi_reduction <add>, %334, %cst_133 [1] : vector<16x32xf32> to vector<16xf32>
    %336 = vector.shape_cast %335 : vector<16xf32> to vector<16x1xf32>
    %cst_134 = arith.constant 3.200000e+01 : f32
    %337 = vector.broadcast %cst_134 : f32 to vector<16x1xf32>
    %338 = arith.divf %336, %337 : vector<16x1xf32>
    %339 = vector.broadcast %331 : vector<16x1xf32> to vector<16x32xf32>
    %340 = arith.subf %327, %339 : vector<16x32xf32>
    %cst_135 = arith.constant 9.99999974E-6 : f32
    %341 = vector.broadcast %cst_135 : f32 to vector<16x1xf32>
    %342 = arith.addf %338, %341 : vector<16x1xf32>
    %343 = math.rsqrt %342 : vector<16x1xf32>
    %344 = vector.broadcast %343 : vector<16x1xf32> to vector<16x32xf32>
    %345 = arith.mulf %340, %344 : vector<16x32xf32>
    %c272_136 = arith.constant 272 : index
    %c0_137 = arith.constant 0 : index
    %346 = vector.load %arg5[%c272_136, %c0_137] : memref<336x128xf32, #tpu.memory_space<vmem>>, vector<1x32xf32>
    %347 = vector.broadcast %346 : vector<1x32xf32> to vector<16x32xf32>
    %348 = arith.mulf %345, %347 : vector<16x32xf32>
    %c280 = arith.constant 280 : index
    %c0_138 = arith.constant 0 : index
    %349 = vector.load %arg5[%c280, %c0_138] : memref<336x128xf32, #tpu.memory_space<vmem>>, vector<1x32xf32>
    %350 = vector.broadcast %349 : vector<1x32xf32> to vector<16x32xf32>
    %351 = arith.addf %348, %350 : vector<16x32xf32>
    %c304 = arith.constant 304 : index
    %c0_139 = arith.constant 0 : index
    %352 = vector.load %arg4[%c304, %c0_139] : memref<816x128xf32, #tpu.memory_space<vmem>>, vector<32x96xf32>
    %c80_140 = arith.constant 80 : index
    %c0_141 = arith.constant 0 : index
    %353 = vector.load %arg5[%c80_140, %c0_141] : memref<336x128xf32, #tpu.memory_space<vmem>>, vector<1x96xf32>
    %cst_142 = arith.constant dense<0.000000e+00> : vector<16x96xf32>
    %354 = tpu.matmul %351, %352, %cst_142 {dimension_numbers = #tpu.dot_dimension_numbers<[1], [0], [0], [1], [0, 0, 1, 1], [], []>} : vector<16x32xf32>, vector<32x96xf32>, vector<16x96xf32> -> vector<16x96xf32>
    %355 = vector.broadcast %353 : vector<1x96xf32> to vector<16x96xf32>
    %356 = arith.addf %354, %355 : vector<16x96xf32>
    %357 = vector.extract_strided_slice %356 {offsets = [0, 0], sizes = [16, 32], strides = [1, 1]} : vector<16x96xf32> to vector<16x32xf32>
    %358 = vector.extract_strided_slice %356 {offsets = [0, 32], sizes = [16, 32], strides = [1, 1]} : vector<16x96xf32> to vector<16x32xf32>
    %359 = vector.extract_strided_slice %356 {offsets = [0, 64], sizes = [16, 32], strides = [1, 1]} : vector<16x96xf32> to vector<16x32xf32>
    %360 = tpu.concatenate %358, %358, %358, %358 in 0 : vector<16x32xf32>, vector<16x32xf32>, vector<16x32xf32>, vector<16x32xf32> -> vector<64x32xf32>
    %361 = arith.mulf %360, %0 : vector<64x32xf32>
    %362 = tpu.concatenate %359, %359, %359, %359 in 0 : vector<16x32xf32>, vector<16x32xf32>, vector<16x32xf32>, vector<16x32xf32> -> vector<64x32xf32>
    %363 = arith.mulf %362, %0 : vector<64x32xf32>
    "tpu.trace_start"() <{level = 10 : i32, message = "nd,md->nm"}> : () -> ()
    %cst_143 = arith.constant dense<0.000000e+00> : vector<16x64xf32>
    %364 = tpu.matmul %357, %361, %cst_143 {dimension_numbers = #tpu.dot_dimension_numbers<[1], [1], [0], [0], [0, 0, 1, 0], [], []>} : vector<16x32xf32>, vector<64x32xf32>, vector<16x64xf32> -> vector<16x64xf32>
    "tpu.trace_stop"() : () -> ()
    %cst_144 = arith.constant 0.353553385 : f32
    %365 = vector.broadcast %cst_144 : f32 to vector<16x64xf32>
    %366 = arith.mulf %364, %365 : vector<16x64xf32>
    %367 = arith.addf %366, %2 : vector<16x64xf32>
    %cst_145 = arith.constant dense<0xFF800000> : vector<16xf32>
    %368 = vector.multi_reduction <maximumf>, %367, %cst_145 [1] : vector<16x64xf32> to vector<16xf32>
    %369 = vector.shape_cast %368 : vector<16xf32> to vector<16x1xf32>
    %370 = vector.broadcast %369 : vector<16x1xf32> to vector<16x64xf32>
    %371 = arith.subf %367, %370 : vector<16x64xf32>
    %372 = math.exp %371 : vector<16x64xf32>
    %cst_146 = arith.constant dense<0.000000e+00> : vector<16x4xf32>
    %373 = tpu.matmul %372, %1, %cst_146 {dimension_numbers = #tpu.dot_dimension_numbers<[1], [0], [0], [1], [0, 0, 1, 1], [], []>} : vector<16x64xf32>, vector<64x4xf32>, vector<16x4xf32> -> vector<16x4xf32>
    %374 = tpu.reciprocal %373 {approx = true} : vector<16x4xf32> -> vector<16x4xf32>
    "tpu.trace_start"() <{level = 10 : i32, message = "nh,mh->nm"}> : () -> ()
    %cst_147 = arith.constant dense<0.000000e+00> : vector<16x64xf32>
    %375 = tpu.matmul %374, %1, %cst_147 {dimension_numbers = #tpu.dot_dimension_numbers<[1], [1], [0], [0], [0, 0, 1, 0], [], []>} : vector<16x4xf32>, vector<64x4xf32>, vector<16x64xf32> -> vector<16x64xf32>
    "tpu.trace_stop"() : () -> ()
    %376 = arith.mulf %372, %375 : vector<16x64xf32>
    %cst_148 = arith.constant dense<0.000000e+00> : vector<16x32xf32>
    %377 = tpu.matmul %376, %363, %cst_148 {dimension_numbers = #tpu.dot_dimension_numbers<[1], [0], [0], [1], [0, 0, 1, 1], [], []>} : vector<16x64xf32>, vector<64x32xf32>, vector<16x32xf32> -> vector<16x32xf32>
    %c336 = arith.constant 336 : index
    %c0_149 = arith.constant 0 : index
    %378 = vector.load %arg4[%c336, %c0_149] : memref<816x128xf32, #tpu.memory_space<vmem>>, vector<32x32xf32>
    %cst_150 = arith.constant dense<0.000000e+00> : vector<16x32xf32>
    %379 = tpu.matmul %377, %378, %cst_150 {dimension_numbers = #tpu.dot_dimension_numbers<[1], [0], [0], [1], [0, 0, 1, 1], [], []>} : vector<16x32xf32>, vector<32x32xf32>, vector<16x32xf32> -> vector<16x32xf32>
    %c88 = arith.constant 88 : index
    %c0_151 = arith.constant 0 : index
    %380 = vector.load %arg5[%c88, %c0_151] : memref<336x128xf32, #tpu.memory_space<vmem>>, vector<1x32xf32>
    %381 = vector.broadcast %380 : vector<1x32xf32> to vector<16x32xf32>
    %382 = arith.addf %379, %381 : vector<16x32xf32>
    %383 = arith.addf %351, %382 : vector<16x32xf32>
    %cst_152 = arith.constant dense<0.000000e+00> : vector<16xf32>
    %384 = vector.multi_reduction <add>, %383, %cst_152 [1] : vector<16x32xf32> to vector<16xf32>
    %385 = vector.shape_cast %384 : vector<16xf32> to vector<16x1xf32>
    %cst_153 = arith.constant 3.200000e+01 : f32
    %386 = vector.broadcast %cst_153 : f32 to vector<16x1xf32>
    %387 = arith.divf %385, %386 : vector<16x1xf32>
    %388 = vector.broadcast %387 : vector<16x1xf32> to vector<16x32xf32>
    %389 = arith.subf %383, %388 : vector<16x32xf32>
    %390 = arith.mulf %389, %389 : vector<16x32xf32>
    %cst_154 = arith.constant dense<0.000000e+00> : vector<16xf32>
    %391 = vector.multi_reduction <add>, %390, %cst_154 [1] : vector<16x32xf32> to vector<16xf32>
    %392 = vector.shape_cast %391 : vector<16xf32> to vector<16x1xf32>
    %cst_155 = arith.constant 3.200000e+01 : f32
    %393 = vector.broadcast %cst_155 : f32 to vector<16x1xf32>
    %394 = arith.divf %392, %393 : vector<16x1xf32>
    %395 = vector.broadcast %387 : vector<16x1xf32> to vector<16x32xf32>
    %396 = arith.subf %383, %395 : vector<16x32xf32>
    %cst_156 = arith.constant 9.99999974E-6 : f32
    %397 = vector.broadcast %cst_156 : f32 to vector<16x1xf32>
    %398 = arith.addf %394, %397 : vector<16x1xf32>
    %399 = math.rsqrt %398 : vector<16x1xf32>
    %400 = vector.broadcast %399 : vector<16x1xf32> to vector<16x32xf32>
    %401 = arith.mulf %396, %400 : vector<16x32xf32>
    %c288 = arith.constant 288 : index
    %c0_157 = arith.constant 0 : index
    %402 = vector.load %arg5[%c288, %c0_157] : memref<336x128xf32, #tpu.memory_space<vmem>>, vector<1x32xf32>
    %403 = vector.broadcast %402 : vector<1x32xf32> to vector<16x32xf32>
    %404 = arith.mulf %401, %403 : vector<16x32xf32>
    %c296 = arith.constant 296 : index
    %c0_158 = arith.constant 0 : index
    %405 = vector.load %arg5[%c296, %c0_158] : memref<336x128xf32, #tpu.memory_space<vmem>>, vector<1x32xf32>
    %406 = vector.broadcast %405 : vector<1x32xf32> to vector<16x32xf32>
    %407 = arith.addf %404, %406 : vector<16x32xf32>
    %c368 = arith.constant 368 : index
    %c0_159 = arith.constant 0 : index
    %408 = vector.load %arg4[%c368, %c0_159] : memref<816x128xf32, #tpu.memory_space<vmem>>, vector<32x96xf32>
    %c96 = arith.constant 96 : index
    %c0_160 = arith.constant 0 : index
    %409 = vector.load %arg5[%c96, %c0_160] : memref<336x128xf32, #tpu.memory_space<vmem>>, vector<1x96xf32>
    %410 = vector.extract_strided_slice %408 {offsets = [0, 0], sizes = [32, 32], strides = [1, 1]} : vector<32x96xf32> to vector<32x32xf32>
    %cst_161 = arith.constant dense<0.000000e+00> : vector<16x32xf32>
    %411 = tpu.matmul %407, %410, %cst_161 {dimension_numbers = #tpu.dot_dimension_numbers<[1], [0], [0], [1], [0, 0, 1, 1], [], []>} : vector<16x32xf32>, vector<32x32xf32>, vector<16x32xf32> -> vector<16x32xf32>
    %412 = vector.extract_strided_slice %409 {offsets = [0, 0], sizes = [1, 32], strides = [1, 1]} : vector<1x96xf32> to vector<1x32xf32>
    %413 = vector.broadcast %412 : vector<1x32xf32> to vector<16x32xf32>
    %414 = arith.addf %411, %413 : vector<16x32xf32>
    %415 = vector.extract_strided_slice %408 {offsets = [0, 32], sizes = [32, 64], strides = [1, 1]} : vector<32x96xf32> to vector<32x64xf32>
    %cst_162 = arith.constant dense<0.000000e+00> : vector<16x64xf32>
    %416 = tpu.matmul %196, %415, %cst_162 {dimension_numbers = #tpu.dot_dimension_numbers<[1], [0], [0], [1], [0, 0, 1, 1], [], []>} : vector<16x32xf32>, vector<32x64xf32>, vector<16x64xf32> -> vector<16x64xf32>
    %417 = vector.extract_strided_slice %409 {offsets = [0, 32], sizes = [1, 64], strides = [1, 1]} : vector<1x96xf32> to vector<1x64xf32>
    %418 = vector.broadcast %417 : vector<1x64xf32> to vector<16x64xf32>
    %419 = arith.addf %416, %418 : vector<16x64xf32>
    %420 = vector.extract_strided_slice %419 {offsets = [0, 0], sizes = [16, 32], strides = [1, 1]} : vector<16x64xf32> to vector<16x32xf32>
    %421 = vector.extract_strided_slice %419 {offsets = [0, 32], sizes = [16, 32], strides = [1, 1]} : vector<16x64xf32> to vector<16x32xf32>
    %422 = tpu.concatenate %420, %420, %420, %420 in 0 : vector<16x32xf32>, vector<16x32xf32>, vector<16x32xf32>, vector<16x32xf32> -> vector<64x32xf32>
    %423 = arith.mulf %422, %0 : vector<64x32xf32>
    %424 = tpu.concatenate %421, %421, %421, %421 in 0 : vector<16x32xf32>, vector<16x32xf32>, vector<16x32xf32>, vector<16x32xf32> -> vector<64x32xf32>
    %425 = arith.mulf %424, %0 : vector<64x32xf32>
    "tpu.trace_start"() <{level = 10 : i32, message = "nd,md->nm"}> : () -> ()
    %cst_163 = arith.constant dense<0.000000e+00> : vector<16x64xf32>
    %426 = tpu.matmul %414, %423, %cst_163 {dimension_numbers = #tpu.dot_dimension_numbers<[1], [1], [0], [0], [0, 0, 1, 0], [], []>} : vector<16x32xf32>, vector<64x32xf32>, vector<16x64xf32> -> vector<16x64xf32>
    "tpu.trace_stop"() : () -> ()
    %cst_164 = arith.constant 0.353553385 : f32
    %427 = vector.broadcast %cst_164 : f32 to vector<16x64xf32>
    %428 = arith.mulf %426, %427 : vector<16x64xf32>
    %429 = arith.addf %428, %2 : vector<16x64xf32>
    %cst_165 = arith.constant dense<0xFF800000> : vector<16xf32>
    %430 = vector.multi_reduction <maximumf>, %429, %cst_165 [1] : vector<16x64xf32> to vector<16xf32>
    %431 = vector.shape_cast %430 : vector<16xf32> to vector<16x1xf32>
    %432 = vector.broadcast %431 : vector<16x1xf32> to vector<16x64xf32>
    %433 = arith.subf %429, %432 : vector<16x64xf32>
    %434 = math.exp %433 : vector<16x64xf32>
    %cst_166 = arith.constant dense<0.000000e+00> : vector<16x4xf32>
    %435 = tpu.matmul %434, %1, %cst_166 {dimension_numbers = #tpu.dot_dimension_numbers<[1], [0], [0], [1], [0, 0, 1, 1], [], []>} : vector<16x64xf32>, vector<64x4xf32>, vector<16x4xf32> -> vector<16x4xf32>
    %436 = tpu.reciprocal %435 {approx = true} : vector<16x4xf32> -> vector<16x4xf32>
    "tpu.trace_start"() <{level = 10 : i32, message = "nh,mh->nm"}> : () -> ()
    %cst_167 = arith.constant dense<0.000000e+00> : vector<16x64xf32>
    %437 = tpu.matmul %436, %1, %cst_167 {dimension_numbers = #tpu.dot_dimension_numbers<[1], [1], [0], [0], [0, 0, 1, 0], [], []>} : vector<16x4xf32>, vector<64x4xf32>, vector<16x64xf32> -> vector<16x64xf32>
    "tpu.trace_stop"() : () -> ()
    %438 = arith.mulf %434, %437 : vector<16x64xf32>
    %cst_168 = arith.constant dense<0.000000e+00> : vector<16x32xf32>
    %439 = tpu.matmul %438, %425, %cst_168 {dimension_numbers = #tpu.dot_dimension_numbers<[1], [0], [0], [1], [0, 0, 1, 1], [], []>} : vector<16x64xf32>, vector<64x32xf32>, vector<16x32xf32> -> vector<16x32xf32>
    %c400 = arith.constant 400 : index
    %c0_169 = arith.constant 0 : index
    %440 = vector.load %arg4[%c400, %c0_169] : memref<816x128xf32, #tpu.memory_space<vmem>>, vector<32x32xf32>
    %cst_170 = arith.constant dense<0.000000e+00> : vector<16x32xf32>
    %441 = tpu.matmul %439, %440, %cst_170 {dimension_numbers = #tpu.dot_dimension_numbers<[1], [0], [0], [1], [0, 0, 1, 1], [], []>} : vector<16x32xf32>, vector<32x32xf32>, vector<16x32xf32> -> vector<16x32xf32>
    %c104 = arith.constant 104 : index
    %c0_171 = arith.constant 0 : index
    %442 = vector.load %arg5[%c104, %c0_171] : memref<336x128xf32, #tpu.memory_space<vmem>>, vector<1x32xf32>
    %443 = vector.broadcast %442 : vector<1x32xf32> to vector<16x32xf32>
    %444 = arith.addf %441, %443 : vector<16x32xf32>
    %445 = arith.addf %407, %444 : vector<16x32xf32>
    %cst_172 = arith.constant dense<0.000000e+00> : vector<16xf32>
    %446 = vector.multi_reduction <add>, %445, %cst_172 [1] : vector<16x32xf32> to vector<16xf32>
    %447 = vector.shape_cast %446 : vector<16xf32> to vector<16x1xf32>
    %cst_173 = arith.constant 3.200000e+01 : f32
    %448 = vector.broadcast %cst_173 : f32 to vector<16x1xf32>
    %449 = arith.divf %447, %448 : vector<16x1xf32>
    %450 = vector.broadcast %449 : vector<16x1xf32> to vector<16x32xf32>
    %451 = arith.subf %445, %450 : vector<16x32xf32>
    %452 = arith.mulf %451, %451 : vector<16x32xf32>
    %cst_174 = arith.constant dense<0.000000e+00> : vector<16xf32>
    %453 = vector.multi_reduction <add>, %452, %cst_174 [1] : vector<16x32xf32> to vector<16xf32>
    %454 = vector.shape_cast %453 : vector<16xf32> to vector<16x1xf32>
    %cst_175 = arith.constant 3.200000e+01 : f32
    %455 = vector.broadcast %cst_175 : f32 to vector<16x1xf32>
    %456 = arith.divf %454, %455 : vector<16x1xf32>
    %457 = vector.broadcast %449 : vector<16x1xf32> to vector<16x32xf32>
    %458 = arith.subf %445, %457 : vector<16x32xf32>
    %cst_176 = arith.constant 9.99999974E-6 : f32
    %459 = vector.broadcast %cst_176 : f32 to vector<16x1xf32>
    %460 = arith.addf %456, %459 : vector<16x1xf32>
    %461 = math.rsqrt %460 : vector<16x1xf32>
    %462 = vector.broadcast %461 : vector<16x1xf32> to vector<16x32xf32>
    %463 = arith.mulf %458, %462 : vector<16x32xf32>
    %c304_177 = arith.constant 304 : index
    %c0_178 = arith.constant 0 : index
    %464 = vector.load %arg5[%c304_177, %c0_178] : memref<336x128xf32, #tpu.memory_space<vmem>>, vector<1x32xf32>
    %465 = vector.broadcast %464 : vector<1x32xf32> to vector<16x32xf32>
    %466 = arith.mulf %463, %465 : vector<16x32xf32>
    %c312 = arith.constant 312 : index
    %c0_179 = arith.constant 0 : index
    %467 = vector.load %arg5[%c312, %c0_179] : memref<336x128xf32, #tpu.memory_space<vmem>>, vector<1x32xf32>
    %468 = vector.broadcast %467 : vector<1x32xf32> to vector<16x32xf32>
    %469 = arith.addf %466, %468 : vector<16x32xf32>
    %c720 = arith.constant 720 : index
    %c0_180 = arith.constant 0 : index
    %470 = vector.load %arg4[%c720, %c0_180] : memref<816x128xf32, #tpu.memory_space<vmem>>, vector<32x64xf32>
    %cst_181 = arith.constant dense<0.000000e+00> : vector<16x64xf32>
    %471 = tpu.matmul %469, %470, %cst_181 {dimension_numbers = #tpu.dot_dimension_numbers<[1], [0], [0], [1], [0, 0, 1, 1], [], []>} : vector<16x32xf32>, vector<32x64xf32>, vector<16x64xf32> -> vector<16x64xf32>
    %c160 = arith.constant 160 : index
    %c0_182 = arith.constant 0 : index
    %472 = vector.load %arg5[%c160, %c0_182] : memref<336x128xf32, #tpu.memory_space<vmem>>, vector<1x64xf32>
    %473 = vector.broadcast %472 : vector<1x64xf32> to vector<16x64xf32>
    %474 = arith.addf %471, %473 : vector<16x64xf32>
    %cst_183 = arith.constant 0.000000e+00 : f32
    %475 = vector.broadcast %cst_183 : f32 to vector<16x64xf32>
    %476 = arith.maximumf %474, %475 : vector<16x64xf32>
    %c752 = arith.constant 752 : index
    %c0_184 = arith.constant 0 : index
    %477 = vector.load %arg4[%c752, %c0_184] : memref<816x128xf32, #tpu.memory_space<vmem>>, vector<64x32xf32>
    %cst_185 = arith.constant dense<0.000000e+00> : vector<16x32xf32>
    %478 = tpu.matmul %476, %477, %cst_185 {dimension_numbers = #tpu.dot_dimension_numbers<[1], [0], [0], [1], [0, 0, 1, 1], [], []>} : vector<16x64xf32>, vector<64x32xf32>, vector<16x32xf32> -> vector<16x32xf32>
    %c168 = arith.constant 168 : index
    %c0_186 = arith.constant 0 : index
    %479 = vector.load %arg5[%c168, %c0_186] : memref<336x128xf32, #tpu.memory_space<vmem>>, vector<1x32xf32>
    %480 = vector.broadcast %479 : vector<1x32xf32> to vector<16x32xf32>
    %481 = arith.addf %478, %480 : vector<16x32xf32>
    %482 = arith.addf %469, %481 : vector<16x32xf32>
    %cst_187 = arith.constant dense<0.000000e+00> : vector<16xf32>
    %483 = vector.multi_reduction <add>, %482, %cst_187 [1] : vector<16x32xf32> to vector<16xf32>
    %484 = vector.shape_cast %483 : vector<16xf32> to vector<16x1xf32>
    %cst_188 = arith.constant 3.200000e+01 : f32
    %485 = vector.broadcast %cst_188 : f32 to vector<16x1xf32>
    %486 = arith.divf %484, %485 : vector<16x1xf32>
    %487 = vector.broadcast %486 : vector<16x1xf32> to vector<16x32xf32>
    %488 = arith.subf %482, %487 : vector<16x32xf32>
    %489 = arith.mulf %488, %488 : vector<16x32xf32>
    %cst_189 = arith.constant dense<0.000000e+00> : vector<16xf32>
    %490 = vector.multi_reduction <add>, %489, %cst_189 [1] : vector<16x32xf32> to vector<16xf32>
    %491 = vector.shape_cast %490 : vector<16xf32> to vector<16x1xf32>
    %cst_190 = arith.constant 3.200000e+01 : f32
    %492 = vector.broadcast %cst_190 : f32 to vector<16x1xf32>
    %493 = arith.divf %491, %492 : vector<16x1xf32>
    %494 = vector.broadcast %486 : vector<16x1xf32> to vector<16x32xf32>
    %495 = arith.subf %482, %494 : vector<16x32xf32>
    %cst_191 = arith.constant 9.99999974E-6 : f32
    %496 = vector.broadcast %cst_191 : f32 to vector<16x1xf32>
    %497 = arith.addf %493, %496 : vector<16x1xf32>
    %498 = math.rsqrt %497 : vector<16x1xf32>
    %499 = vector.broadcast %498 : vector<16x1xf32> to vector<16x32xf32>
    %500 = arith.mulf %495, %499 : vector<16x32xf32>
    %c320 = arith.constant 320 : index
    %c0_192 = arith.constant 0 : index
    %501 = vector.load %arg5[%c320, %c0_192] : memref<336x128xf32, #tpu.memory_space<vmem>>, vector<1x32xf32>
    %502 = vector.broadcast %501 : vector<1x32xf32> to vector<16x32xf32>
    %503 = arith.mulf %500, %502 : vector<16x32xf32>
    %c328 = arith.constant 328 : index
    %c0_193 = arith.constant 0 : index
    %504 = vector.load %arg5[%c328, %c0_193] : memref<336x128xf32, #tpu.memory_space<vmem>>, vector<1x32xf32>
    %505 = vector.broadcast %504 : vector<1x32xf32> to vector<16x32xf32>
    %506 = arith.addf %503, %505 : vector<16x32xf32>
    %c16_194 = arith.constant 16 : index
    %c0_195 = arith.constant 0 : index
    %507 = vector.load %arg4[%c16_194, %c0_195] : memref<816x128xf32, #tpu.memory_space<vmem>>, vector<32x16xf32>
    %cst_196 = arith.constant dense<0.000000e+00> : vector<16x16xf32>
    %508 = tpu.matmul %506, %507, %cst_196 {dimension_numbers = #tpu.dot_dimension_numbers<[1], [0], [0], [1], [0, 0, 1, 1], [], []>} : vector<16x32xf32>, vector<32x16xf32>, vector<16x16xf32> -> vector<16x16xf32>
    %c8 = arith.constant 8 : index
    %c0_197 = arith.constant 0 : index
    %509 = vector.load %arg5[%c8, %c0_197] : memref<336x128xf32, #tpu.memory_space<vmem>>, vector<1x16xf32>
    %510 = vector.broadcast %509 : vector<1x16xf32> to vector<16x16xf32>
    %511 = arith.addf %508, %510 : vector<16x16xf32>
    %c0_198 = arith.constant 0 : index
    %c0_199 = arith.constant 0 : index
    %512 = vector.load %arg6[%c0_198, %c0_199] : memref<16x16xf32, #tpu.memory_space<vmem>>, vector<16x16xf32>
    tpu.vector_store %arg6[%c0_198, %c0_199], %511 {strides = array<i32>} : memref<16x16xf32, #tpu.memory_space<vmem>>, vector<16x16xf32>,
    return
  }
  func.func @transform_0(%arg0: i32) -> (i32, i32) {
    %c0_i32 = arith.constant 0 : i32
    %c0_i32_0 = arith.constant 0 : i32
    %c0_i32_1 = arith.constant 0 : i32
    return %c0_i32, %c0_i32_0 : i32, i32
  }
  func.func @transform_1(%arg0: i32) -> (i32, i32) {
    %c0_i32 = arith.constant 0 : i32
    %c0_i32_0 = arith.constant 0 : i32
    %c0_i32_1 = arith.constant 0 : i32
    return %c0_i32, %c0_i32_0 : i32, i32
  }
  func.func @transform_2(%arg0: i32) -> (i32, i32) {
    %c0_i32 = arith.constant 0 : i32
    %c0_i32_0 = arith.constant 0 : i32
    %c0_i32_1 = arith.constant 0 : i32
    return %c0_i32, %c0_i32_0 : i32, i32
  }
  func.func @transform_3(%arg0: i32) -> (i32, i32) {
    %c0_i32 = arith.constant 0 : i32
    %c0_i32_0 = arith.constant 0 : i32
    %c0_i32_1 = arith.constant 0 : i32
    return %c0_i32, %c0_i32_0 : i32, i32
  }
  func.func @transform_4(%arg0: i32) -> (i32, i32) {
    %c0_i32 = arith.constant 0 : i32
    %c0_i32_0 = arith.constant 0 : i32
    %c0_i32_1 = arith.constant 0 : i32
    return %c0_i32, %c0_i32_0 : i32, i32
  }
  func.func @transform_5(%arg0: i32) -> (i32, i32) {
    %c0_i32 = arith.constant 0 : i32
    %c0_i32_0 = arith.constant 0 : i32
    %c0_i32_1 = arith.constant 0 : i32
    return %c0_i32, %c0_i32_0 : i32, i32
  }
}

</mosaic_0001>

<llo_original>
// kernel: transformer_autoencoder_forward.1
$region0: #{transformer_autoencoder_forward.1}
  #allocation0 [shape = 'u32[]', space=smem, size = 0x4, offset = 0x4, fixed_abs, tag = 'smem constant byte address 0x4 - core index']
  #allocation1 [shape = 'u32[144,128]{1,0:T(1,128)}', space=vmem, size = 0x12000, scoped, tag = 'internal scratch']
  %s0 = inlined_call_operand.vmem [shape: f32[16,16], index: 0, kind: input, shape index: {}]
  %s1 = inlined_call_operand.vmem [shape: f32[16,32], index: 1, kind: input, shape index: {}]
  %s2 = inlined_call_operand.vmem [shape: f32[144,128], index: 2, kind: input, shape index: {}]
  %s3 = inlined_call_operand.vmem [shape: f32[816,128], index: 3, kind: input, shape index: {}]
  %s4 = inlined_call_operand.vmem [shape: f32[336,128], index: 4, kind: input, shape index: {}]
  %s5 = inlined_call_operand.vmem [shape: f32[16,16], index: 5, kind: output, shape index: {}]
  %s6 = sld [smem:[#allocation0]]
  $region30: #{transformer_autoencoder_forward.1} parent=0
    _
  %s8 = ssub.s32 1, %s6
  %s9 = scalar_select 0, %s8, %s6
  // Predicated region
  $region2: #{transformer_autoencoder_forward.1} parent=0 // pred_check
    _
  $region3: #{transformer_autoencoder_forward.1} parent=0 // pred_check_branch
    %11 = sbr.rel (0) target = $region5
  $region4: #{transformer_autoencoder_forward.1} parent=0 // pred_region
    _
  $region5: #{transformer_autoencoder_forward.1} parent=0 // pred_fallthru
    _
  // Predicated region
  $region6: #{transformer_autoencoder_forward.1} parent=0 // pred_check
    _
  $region7: #{transformer_autoencoder_forward.1} parent=0 // pred_check_branch
    %13 = sbr.rel (0) target = $region9
  $region8: #{transformer_autoencoder_forward.1} parent=0 // pred_region
    _
  $region9: #{transformer_autoencoder_forward.1} parent=0 // pred_fallthru
    _
  // Predicated region
  $region10: #{transformer_autoencoder_forward.1} parent=0 // pred_check
    _
  $region11: #{transformer_autoencoder_forward.1} parent=0 // pred_check_branch
    %15 = sbr.rel (0) target = $region13
  $region12: #{transformer_autoencoder_forward.1} parent=0 // pred_region
    _
  $region13: #{transformer_autoencoder_forward.1} parent=0 // pred_fallthru
    _
  // Predicated region
  $region14: #{transformer_autoencoder_forward.1} parent=0 // pred_check
    _
  $region15: #{transformer_autoencoder_forward.1} parent=0 // pred_check_branch
    %17 = sbr.rel (0) target = $region17
  $region16: #{transformer_autoencoder_forward.1} parent=0 // pred_region
    _
  $region17: #{transformer_autoencoder_forward.1} parent=0 // pred_fallthru
    _
  // Predicated region
  $region18: #{transformer_autoencoder_forward.1} parent=0 // pred_check
    _
  $region19: #{transformer_autoencoder_forward.1} parent=0 // pred_check_branch
    %19 = sbr.rel (0) target = $region21
  $region20: #{transformer_autoencoder_forward.1} parent=0 // pred_region
    _
  $region21: #{transformer_autoencoder_forward.1} parent=0 // pred_fallthru
    _
  %v20 = vld [vmem:[%s2] sm:$0xff]
  %v21 = vld [vmem:[%s2 + $0x8] sm:$0xff]
  %v22 = vld [vmem:[%s2 + $0x10] sm:$0xff]
  %v23 = vld [vmem:[%s2 + $0x18] sm:$0xff]
  %v24 = vld [vmem:[%s2 + $0x20] sm:$0xff]
  %v25 = vld [vmem:[%s2 + $0x28] sm:$0xff]
  %v26 = vld [vmem:[%s2 + $0x30] sm:$0xff]
  %v27 = vld [vmem:[%s2 + $0x38] sm:$0xff]
  %v28 = vld [vmem:[%s2 + $0x40] sm:$0xff]
  %v29 = vld [vmem:[%s2 + $0x48] sm:$0xff]
  %v30 = vld [vmem:[%s2 + $0x50] sm:$0xff]
  %v31 = vld [vmem:[%s2 + $0x58] sm:$0xff]
  %v32 = vld [vmem:[%s2 + $0x60] sm:$0xff]
  %v33 = vld [vmem:[%s2 + $0x68] sm:$0xff]
  %v34 = vld [vmem:[%s2 + $0x70] sm:$0xff]
  %v35 = vld [vmem:[%s2 + $0x78] sm:$0xff]
  %v36 = vld [vmem:[%s2 + $0x80] sm:$0xff]
  %v37 = vld [vmem:[%s2 + $0x88] sm:$0xff]
  %v38 = vld [vmem:[%s0] sm:$0xff]
  %v39 = vld [vmem:[%s0 + $0x8] sm:$0xff]
  %v40 = vld [vmem:[%s3] sm:$0xff]
  %v41 = vld [vmem:[%s3 + $0x8] sm:$0xff]
  %v42 = vld [vmem:[%s4] sm:$0x1]
  %v43 = vlaneseq
  %v44 = vshrl.u32 %v43, 7
  %v45 = vsub.s32 0, %v44
  %v46 = vrot.slane %v42, %v45
  %vm47 = vcmask 130048
  %v49 = vsel %vm47, %v38, 0
  %v52 = vsel %vm47, %v39, 0
  %54 = vmatprep.subr.mxu0 0.0
  %55 = vmatpush1.msra.mxu0 %v40
  %56 = vmatprep.subr.mxu0 0.0
  %57 = vmatpush1.msra.mxu0 %v41
  %58 = vmatprep.subr.mxu0 0.0
  %59 = vmatpush1.msra.mxu0 0.0
  %60 = vmatprep.subr.mxu0 0.0
  %61 = vmatpush1.msra.mxu0 0.0
  %62 = vmatprep.subr.mxu0 0.0
  %63 = vmatpush1.msra.mxu0 0.0
  %64 = vmatprep.subr.mxu0 0.0
  %65 = vmatpush1.msra.mxu0 0.0
  %66 = vmatprep.subr.mxu0 0.0
  %67 = vmatpush1.msra.mxu0 0.0
  %68 = vmatprep.subr.mxu0 0.0
  %69 = vmatpush1.msra.mxu0 0.0
  %70 = vmatprep.subr.mxu0 0.0
  %71 = vmatpush1.msra.mxu0 0.0
  %72 = vmatprep.subr.mxu0 0.0
  %73 = vmatpush1.msra.mxu0 0.0
  %74 = vmatprep.subr.mxu0 0.0
  %75 = vmatpush1.msra.mxu0 0.0
  %76 = vmatprep.subr.mxu0 0.0
  %77 = vmatpush1.msra.mxu0 0.0
  %78 = vmatprep.subr.mxu0 0.0
  %79 = vmatpush1.msra.mxu0 0.0
  %80 = vmatprep.subr.mxu0 0.0
  %81 = vmatpush1.msra.mxu0 0.0
  %82 = vmatprep.subr.mxu0 0.0
  %83 = vmatpush1.msra.mxu0 0.0
  %84 = vmatprep.subr.mxu0 0.0
  %85 = vmatpush1.msra.mxu0 0.0
  %86 = vmatprep.subr.mxu0 0.0
  %87 = vmatpush1.msra.mxu0 0.0
  %88 = vmatprep.subr.mxu0 0.0
  %89 = vmatpush1.msra.mxu0 0.0
  %90 = vmatprep.subr.mxu0 0.0
  %91 = vmatpush1.msra.mxu0 0.0
  %92 = vmatprep.subr.mxu0 0.0
  %93 = vmatpush1.msra.mxu0 0.0
  %94 = vmatprep.subr.mxu0 0.0
  %95 = vmatpush1.msra.mxu0 0.0
  %96 = vmatprep.subr.mxu0 0.0
  %97 = vmatpush1.msra.mxu0 0.0
  %98 = vmatprep.subr.mxu0 0.0
  %99 = vmatpush1.msra.mxu0 0.0
  %100 = vmatprep.subr.mxu0 0.0
  %101 = vmatpush1.msra.mxu0 0.0
  %102 = vmatprep.subr.mxu0 0.0
  %103 = vmatpush1.msra.mxu0 0.0
  %104 = vmatprep.subr.mxu0 0.0
  %105 = vmatpush1.msra.mxu0 0.0
  %106 = vmatprep.subr.mxu0 0.0
  %107 = vmatpush1.msra.mxu0 0.0
  %108 = vmatprep.subr.mxu0 0.0
  %109 = vmatpush1.msra.mxu0 0.0
  %110 = vmatprep.subr.mxu0 0.0
  %111 = vmatpush1.msra.mxu0 0.0
  %112 = vmatprep.subr.mxu0 0.0
  %113 = vmatpush1.msra.mxu0 0.0
  %114 = vmatprep.subr.mxu0 0.0
  %115 = vmatpush1.msra.mxu0 0.0
  %116 = vmatprep.subr.mxu0 0.0
  %117 = vmatpush1.msra.mxu0 0.0
  %118 = vmatprep.mubr.f32.mxu0 0.0
  %119 = vmatmul.mubr.f32.gmra.mrb[0].mxu0 %v49
  %v120 = vpop.f32.mrb[0].mxu0
  %v121 = vadd.f32 %v46, %v120
  %v122 = vpop.f32.mrb[0].mxu0
  %123 = vmatprep.mubr.f32.mxu0 0.0
  %124 = vmatmul.mubr.f32.gmra.mrb[0].mxu0 %v52
  %v125 = vpop.f32.mrb[0].mxu0
  %v126 = vadd.f32 %v46, %v125
  %v127 = vpop.f32.mrb[0].mxu0
  %128 = vdwg.mxu0
  %v129 = vld [vmem:[%s1] sm:$0xff]
  %v130 = vld [vmem:[%s1 + $0x8] sm:$0xff]
  %v131 = vadd.f32 %v121, %v129
  %v132 = vadd.f32 %v126, %v130
  %v133 = vld [vmem:[%s3 + $0x30] sm:$0xff]
  %v134 = vld [vmem:[%s3 + $0x38] sm:$0xff]
  %v135 = vld [vmem:[%s3 + $0x40] sm:$0xff]
  %v136 = vld [vmem:[%s3 + $0x48] sm:$0xff]
  %v137 = vld [vmem:[%s4 + $0x10] sm:$0x1]
  %v138 = vlaneseq
  %v139 = vshrl.u32 %v138, 7
  %v140 = vsub.s32 0, %v139
  %v141 = vrot.slane %v137, %v140
  %vm142 = vcmask 261120
  %v144 = vsel %vm142, %v131, 0
  %v147 = vsel %vm142, %v132, 0
  %149 = vmatprep.subr.mxu0 0.0
  %150 = vmatpush1.msra.mxu0 %v133
  %151 = vmatprep.subr.mxu0 0.0
  %152 = vmatpush1.msra.mxu0 %v134
  %153 = vmatprep.subr.mxu0 0.0
  %154 = vmatpush1.msra.mxu0 %v135
  %155 = vmatprep.subr.mxu0 0.0
  %156 = vmatpush1.msra.mxu0 %v136
  %157 = vmatprep.subr.mxu0 0.0
  %158 = vmatpush1.msra.mxu0 0.0
  %159 = vmatprep.subr.mxu0 0.0
  %160 = vmatpush1.msra.mxu0 0.0
  %161 = vmatprep.subr.mxu0 0.0
  %162 = vmatpush1.msra.mxu0 0.0
  %163 = vmatprep.subr.mxu0 0.0
  %164 = vmatpush1.msra.mxu0 0.0
  %165 = vmatprep.subr.mxu0 0.0
  %166 = vmatpush1.msra.mxu0 0.0
  %167 = vmatprep.subr.mxu0 0.0
  %168 = vmatpush1.msra.mxu0 0.0
  %169 = vmatprep.subr.mxu0 0.0
  %170 = vmatpush1.msra.mxu0 0.0
  %171 = vmatprep.subr.mxu0 0.0
  %172 = vmatpush1.msra.mxu0 0.0
  %173 = vmatprep.subr.mxu0 0.0
  %174 = vmatpush1.msra.mxu0 0.0
  %175 = vmatprep.subr.mxu0 0.0
  %176 = vmatpush1.msra.mxu0 0.0
  %177 = vmatprep.subr.mxu0 0.0
  %178 = vmatpush1.msra.mxu0 0.0
  %179 = vmatprep.subr.mxu0 0.0
  %180 = vmatpush1.msra.mxu0 0.0
  %181 = vmatprep.subr.mxu0 0.0
  %182 = vmatpush1.msra.mxu0 0.0
  %183 = vmatprep.subr.mxu0 0.0
  %184 = vmatpush1.msra.mxu0 0.0
  %185 = vmatprep.subr.mxu0 0.0
  %186 = vmatpush1.msra.mxu0 0.0
  %187 = vmatprep.subr.mxu0 0.0
  %188 = vmatpush1.msra.mxu0 0.0
  %189 = vmatprep.subr.mxu0 0.0
  %190 = vmatpush1.msra.mxu0 0.0
  %191 = vmatprep.subr.mxu0 0.0
  %192 = vmatpush1.msra.mxu0 0.0
  %193 = vmatprep.subr.mxu0 0.0
  %194 = vmatpush1.msra.mxu0 0.0
  %195 = vmatprep.subr.mxu0 0.0
  %196 = vmatpush1.msra.mxu0 0.0
  %197 = vmatprep.subr.mxu0 0.0
  %198 = vmatpush1.msra.mxu0 0.0
  %199 = vmatprep.subr.mxu0 0.0
  %200 = vmatpush1.msra.mxu0 0.0
  %201 = vmatprep.subr.mxu0 0.0
  %202 = vmatpush1.msra.mxu0 0.0
  %203 = vmatprep.subr.mxu0 0.0
  %204 = vmatpush1.msra.mxu0 0.0
  %205 = vmatprep.subr.mxu0 0.0
  %206 = vmatpush1.msra.mxu0 0.0
  %207 = vmatprep.subr.mxu0 0.0
  %208 = vmatpush1.msra.mxu0 0.0
  %209 = vmatprep.subr.mxu0 0.0
  %210 = vmatpush1.msra.mxu0 0.0
  %211 = vmatprep.subr.mxu0 0.0
  %212 = vmatpush1.msra.mxu0 0.0
  %213 = vmatprep.mubr.f32.mxu0 0.0
  %214 = vmatmul.mubr.f32.gmra.mrb[0].mxu0 %v144
  %v215 = vpop.f32.mrb[0].mxu0
  %v216 = vadd.f32 %v141, %v215
  %v217 = vpop.f32.mrb[0].mxu0
  %218 = vmatprep.mubr.f32.mxu0 0.0
  %219 = vmatmul.mubr.f32.gmra.mrb[0].mxu0 %v147
  %v220 = vpop.f32.mrb[0].mxu0
  %v221 = vadd.f32 %v141, %v220
  %v222 = vpop.f32.mrb[0].mxu0
  %223 = vdwg.mxu0
  %232 = vrot.lane.b32.xlu0 %v20, 32
  %v233 = vpop.permute.xlu0 %232
  %234 = vrot.lane.b32.xlu0 %v21, 32
  %v235 = vpop.permute.xlu0 %234
  %236 = vrot.lane.b32.xlu0 %v22, 32
  %v237 = vpop.permute.xlu0 %236
  %238 = vrot.lane.b32.xlu0 %v23, 32
  %v239 = vpop.permute.xlu0 %238
  %240 = vrot.lane.b32.xlu0 %v24, 32
  %v241 = vpop.permute.xlu0 %240
  %242 = vrot.lane.b32.xlu0 %v25, 32
  %v243 = vpop.permute.xlu0 %242
  %244 = vrot.lane.b32.xlu0 %v26, 32
  %v245 = vpop.permute.xlu0 %244
  %246 = vrot.lane.b32.xlu0 %v27, 32
  %v247 = vpop.permute.xlu0 %246
  %v256 = vmul.f32 %v216, %v233
  %v257 = vmul.f32 %v221, %v235
  %v258 = vmul.f32 %v216, %v237
  %v259 = vmul.f32 %v221, %v239
  %v260 = vmul.f32 %v216, %v241
  %v261 = vmul.f32 %v221, %v243
  %v262 = vmul.f32 %v216, %v245
  %v263 = vmul.f32 %v221, %v247
  %264 = vrot.lane.b32.xlu0 %v20, 64
  %v265 = vpop.permute.xlu0 %264
  %266 = vrot.lane.b32.xlu0 %v21, 64
  %v267 = vpop.permute.xlu0 %266
  %268 = vrot.lane.b32.xlu0 %v22, 64
  %v269 = vpop.permute.xlu0 %268
  %270 = vrot.lane.b32.xlu0 %v23, 64
  %v271 = vpop.permute.xlu0 %270
  %272 = vrot.lane.b32.xlu0 %v24, 64
  %v273 = vpop.permute.xlu0 %272
  %274 = vrot.lane.b32.xlu0 %v25, 64
  %v275 = vpop.permute.xlu0 %274
  %276 = vrot.lane.b32.xlu0 %v26, 64
  %v277 = vpop.permute.xlu0 %276
  %278 = vrot.lane.b32.xlu0 %v27, 64
  %v279 = vpop.permute.xlu0 %278
  %v288 = vmul.f32 %v216, %v265
  %v289 = vmul.f32 %v221, %v267
  %v290 = vmul.f32 %v216, %v269
  %v291 = vmul.f32 %v221, %v271
  %v292 = vmul.f32 %v216, %v273
  %v293 = vmul.f32 %v221, %v275
  %v294 = vmul.f32 %v216, %v277
  %v295 = vmul.f32 %v221, %v279
  %304 = vrot.lane.b32.xlu0 %v256, 96
  %v305 = vpop.permute.xlu0 %304
  %306 = vrot.lane.b32.xlu0 %v257, 96
  %v307 = vpop.permute.xlu0 %306
  %308 = vrot.lane.b32.xlu0 %v258, 96
  %v309 = vpop.permute.xlu0 %308
  %310 = vrot.lane.b32.xlu0 %v259, 96
  %v311 = vpop.permute.xlu0 %310
  %312 = vrot.lane.b32.xlu0 %v260, 96
  %v313 = vpop.permute.xlu0 %312
  %314 = vrot.lane.b32.xlu0 %v261, 96
  %v315 = vpop.permute.xlu0 %314
  %316 = vrot.lane.b32.xlu0 %v262, 96
  %v317 = vpop.permute.xlu0 %316
  %318 = vrot.lane.b32.xlu0 %v263, 96
  %v319 = vpop.permute.xlu0 %318
  %v321 = vsel %vm142, %v216, 0
  %v324 = vsel %vm142, %v221, 0
  %v326 = vsel %vm142, %v305, 0
  %v328 = vsel %vm142, %v307, 0
  %v330 = vsel %vm142, %v309, 0
  %v332 = vsel %vm142, %v311, 0
  %v334 = vsel %vm142, %v313, 0
  %v336 = vsel %vm142, %v315, 0
  %v338 = vsel %vm142, %v317, 0
  %v340 = vsel %vm142, %v319, 0
  %342 = vmatprep.subr.mxu0 0.0
  %343 = vmatpush1.xpose.msra.mxu0 %v326
  %344 = vmatprep.subr.mxu0 0.0
  %345 = vmatpush1.xpose.msra.mxu0 %v328
  %346 = vmatprep.subr.mxu0 0.0
  %347 = vmatpush1.xpose.msra.mxu0 %v330
  %348 = vmatprep.subr.mxu0 0.0
  %349 = vmatpush1.xpose.msra.mxu0 %v332
  %350 = vmatprep.subr.mxu0 0.0
  %351 = vmatpush1.xpose.msra.mxu0 %v334
  %352 = vmatprep.subr.mxu0 0.0
  %353 = vmatpush1.xpose.msra.mxu0 %v336
  %354 = vmatprep.subr.mxu0 0.0
  %355 = vmatpush1.xpose.msra.mxu0 %v338
  %356 = vmatprep.subr.mxu0 0.0
  %357 = vmatpush1.xpose.msra.mxu0 %v340
  %358 = vmatprep.subr.mxu0 0.0
  %359 = vmatpush1.xpose.msra.mxu0 0.0
  %360 = vmatprep.subr.mxu0 0.0
  %361 = vmatpush1.xpose.msra.mxu0 0.0
  %362 = vmatprep.subr.mxu0 0.0
  %363 = vmatpush1.xpose.msra.mxu0 0.0
  %364 = vmatprep.subr.mxu0 0.0
  %365 = vmatpush1.xpose.msra.mxu0 0.0
  %366 = vmatprep.subr.mxu0 0.0
  %367 = vmatpush1.xpose.msra.mxu0 0.0
  %368 = vmatprep.subr.mxu0 0.0
  %369 = vmatpush1.xpose.msra.mxu0 0.0
  %370 = vmatprep.subr.mxu0 0.0
  %371 = vmatpush1.xpose.msra.mxu0 0.0
  %372 = vmatprep.subr.mxu0 0.0
  %373 = vmatpush1.xpose.msra.mxu0 0.0
  %374 = vmatprep.subr.mxu0 0.0
  %375 = vmatpush1.xpose.msra.mxu0 0.0
  %376 = vmatprep.subr.mxu0 0.0
  %377 = vmatpush1.xpose.msra.mxu0 0.0
  %378 = vmatprep.subr.mxu0 0.0
  %379 = vmatpush1.xpose.msra.mxu0 0.0
  %380 = vmatprep.subr.mxu0 0.0
  %381 = vmatpush1.xpose.msra.mxu0 0.0
  %382 = vmatprep.subr.mxu0 0.0
  %383 = vmatpush1.xpose.msra.mxu0 0.0
  %384 = vmatprep.subr.mxu0 0.0
  %385 = vmatpush1.xpose.msra.mxu0 0.0
  %386 = vmatprep.subr.mxu0 0.0
  %387 = vmatpush1.xpose.msra.mxu0 0.0
  %388 = vmatprep.subr.mxu0 0.0
  %389 = vmatpush1.xpose.msra.mxu0 0.0
  %390 = vmatprep.subr.mxu0 0.0
  %391 = vmatpush1.xpose.msra.mxu0 0.0
  %392 = vmatprep.subr.mxu0 0.0
  %393 = vmatpush1.xpose.msra.mxu0 0.0
  %394 = vmatprep.subr.mxu0 0.0
  %395 = vmatpush1.xpose.msra.mxu0 0.0
  %396 = vmatprep.subr.mxu0 0.0
  %397 = vmatpush1.xpose.msra.mxu0 0.0
  %398 = vmatprep.subr.mxu0 0.0
  %399 = vmatpush1.xpose.msra.mxu0 0.0
  %400 = vmatprep.subr.mxu0 0.0
  %401 = vmatpush1.xpose.msra.mxu0 0.0
  %402 = vmatprep.subr.mxu0 0.0
  %403 = vmatpush1.xpose.msra.mxu0 0.0
  %404 = vmatprep.subr.mxu0 0.0
  %405 = vmatpush1.xpose.msra.mxu0 0.0
  %406 = vmatprep.mubr.f32.mxu0 0.0
  %407 = vmatmul.mubr.f32.gmra.mrb[0].mxu0 %v321
  %v408 = vpop.f32.mrb[0].mxu0
  %v409 = vadd.f32 0.0, %v408
  %v410 = vpop.f32.mrb[0].mxu0
  %411 = vmatprep.mubr.f32.mxu0 0.0
  %412 = vmatmul.mubr.f32.gmra.mrb[0].mxu0 %v324
  %v413 = vpop.f32.mrb[0].mxu0
  %v414 = vadd.f32 0.0, %v413
  %v415 = vpop.f32.mrb[0].mxu0
  %416 = vdwg.mxu0
  %v417 = vmul.f32 %v409, 0.35355338
  %v418 = vmul.f32 %v414, 0.35355338
  %v419 = vadd.f32 %v417, %v36
  %v420 = vadd.f32 %v418, %v37
  %vm421 = vcmask 523264
  %v422 = vsel %vm421, %v419, -inf
  %423 = vmax.xlane.f32.xlu0 %v422
  %v424 = vpop.xlane.xlu0 %423
  %v425 = vsel %vm421, %v420, -inf
  %426 = vmax.xlane.f32.xlu0 %v425
  %v427 = vpop.xlane.xlu0 %426
  %v428 = vsub.f32 %v419, %v424
  %v429 = vsub.f32 %v420, %v427
  %v430 = vmul.f32 %v428, 1.442695
  %v431 = vpow.pop %v430
  %v432 = vmul.f32 %v429, 1.442695
  %v433 = vpow.pop %v432
  %v435 = vsel %vm421, %v431, 0
  %v438 = vsel %vm421, %v433, 0
  %440 = vmatprep.subr.mxu0 0.0
  %441 = vmatpush1.msra.mxu0 %v28
  %442 = vmatprep.subr.mxu0 0.0
  %443 = vmatpush1.msra.mxu0 %v29
  %444 = vmatprep.subr.mxu0 0.0
  %445 = vmatpush1.msra.mxu0 %v30
  %446 = vmatprep.subr.mxu0 0.0
  %447 = vmatpush1.msra.mxu0 %v31
  %448 = vmatprep.subr.mxu0 0.0
  %449 = vmatpush1.msra.mxu0 %v32
  %450 = vmatprep.subr.mxu0 0.0
  %451 = vmatpush1.msra.mxu0 %v33
  %452 = vmatprep.subr.mxu0 0.0
  %453 = vmatpush1.msra.mxu0 %v34
  %454 = vmatprep.subr.mxu0 0.0
  %455 = vmatpush1.msra.mxu0 %v35
  %456 = vmatprep.subr.mxu0 0.0
  %457 = vmatpush1.msra.mxu0 0.0
  %458 = vmatprep.subr.mxu0 0.0
  %459 = vmatpush1.msra.mxu0 0.0
  %460 = vmatprep.subr.mxu0 0.0
  %461 = vmatpush1.msra.mxu0 0.0
  %462 = vmatprep.subr.mxu0 0.0
  %463 = vmatpush1.msra.mxu0 0.0
  %464 = vmatprep.subr.mxu0 0.0
  %465 = vmatpush1.msra.mxu0 0.0
  %466 = vmatprep.subr.mxu0 0.0
  %467 = vmatpush1.msra.mxu0 0.0
  %468 = vmatprep.subr.mxu0 0.0
  %469 = vmatpush1.msra.mxu0 0.0
  %470 = vmatprep.subr.mxu0 0.0
  %471 = vmatpush1.msra.mxu0 0.0
  %472 = vmatprep.subr.mxu0 0.0
  %473 = vmatpush1.msra.mxu0 0.0
  %474 = vmatprep.subr.mxu0 0.0
  %475 = vmatpush1.msra.mxu0 0.0
  %476 = vmatprep.subr.mxu0 0.0
  %477 = vmatpush1.msra.mxu0 0.0
  %478 = vmatprep.subr.mxu0 0.0
  %479 = vmatpush1.msra.mxu0 0.0
  %480 = vmatprep.subr.mxu0 0.0
  %481 = vmatpush1.msra.mxu0 0.0
  %482 = vmatprep.subr.mxu0 0.0
  %483 = vmatpush1.msra.mxu0 0.0
  %484 = vmatprep.subr.mxu0 0.0
  %485 = vmatpush1.msra.mxu0 0.0
  %486 = vmatprep.subr.mxu0 0.0
  %487 = vmatpush1.msra.mxu0 0.0
  %488 = vmatprep.subr.mxu0 0.0
  %489 = vmatpush1.msra.mxu0 0.0
  %490 = vmatprep.subr.mxu0 0.0
  %491 = vmatpush1.msra.mxu0 0.0
  %492 = vmatprep.subr.mxu0 0.0
  %493 = vmatpush1.msra.mxu0 0.0
  %494 = vmatprep.subr.mxu0 0.0
  %495 = vmatpush1.msra.mxu0 0.0
  %496 = vmatprep.subr.mxu0 0.0
  %497 = vmatpush1.msra.mxu0 0.0
  %498 = vmatprep.subr.mxu0 0.0
  %499 = vmatpush1.msra.mxu0 0.0
  %500 = vmatprep.subr.mxu0 0.0
  %501 = vmatpush1.msra.mxu0 0.0
  %502 = vmatprep.subr.mxu0 0.0
  %503 = vmatpush1.msra.mxu0 0.0
  %504 = vmatprep.mubr.f32.mxu0 0.0
  %505 = vmatmul.mubr.f32.gmra.mrb[0].mxu0 %v435
  %v506 = vpop.f32.mrb[0].mxu0
  %v507 = vadd.f32 0.0, %v506
  %v508 = vpop.f32.mrb[0].mxu0
  %509 = vmatprep.mubr.f32.mxu0 0.0
  %510 = vmatmul.mubr.f32.gmra.mrb[0].mxu0 %v438
  %v511 = vpop.f32.mrb[0].mxu0
  %v512 = vadd.f32 0.0, %v511
  %v513 = vpop.f32.mrb[0].mxu0
  %514 = vdwg.mxu0
  %v515 = vrcp.pop %v507
  %v516 = vrcp.pop %v512
  %vm517 = vcmask 31744
  %v519 = vsel %vm517, %v515, 0
  %v522 = vsel %vm517, %v516, 0
  %v525 = vsel %vm517, %v28, 0
  %v528 = vsel %vm517, %v29, 0
  %v531 = vsel %vm517, %v30, 0
  %v534 = vsel %vm517, %v31, 0
  %v537 = vsel %vm517, %v32, 0
  %v540 = vsel %vm517, %v33, 0
  %v543 = vsel %vm517, %v34, 0
  %v546 = vsel %vm517, %v35, 0
  %548 = vmatprep.subr.mxu0 0.0
  %549 = vmatpush1.xpose.msra.mxu0 %v525
  %550 = vmatprep.subr.mxu0 0.0
  %551 = vmatpush1.xpose.msra.mxu0 %v528
  %552 = vmatprep.subr.mxu0 0.0
  %553 = vmatpush1.xpose.msra.mxu0 %v531
  %554 = vmatprep.subr.mxu0 0.0
  %555 = vmatpush1.xpose.msra.mxu0 %v534
  %556 = vmatprep.subr.mxu0 0.0
  %557 = vmatpush1.xpose.msra.mxu0 %v537
  %558 = vmatprep.subr.mxu0 0.0
  %559 = vmatpush1.xpose.msra.mxu0 %v540
  %560 = vmatprep.subr.mxu0 0.0
  %561 = vmatpush1.xpose.msra.mxu0 %v543
  %562 = vmatprep.subr.mxu0 0.0
  %563 = vmatpush1.xpose.msra.mxu0 %v546
  %564 = vmatprep.subr.mxu0 0.0
  %565 = vmatpush1.xpose.msra.mxu0 0.0
  %566 = vmatprep.subr.mxu0 0.0
  %567 = vmatpush1.xpose.msra.mxu0 0.0
  %568 = vmatprep.subr.mxu0 0.0
  %569 = vmatpush1.xpose.msra.mxu0 0.0
  %570 = vmatprep.subr.mxu0 0.0
  %571 = vmatpush1.xpose.msra.mxu0 0.0
  %572 = vmatprep.subr.mxu0 0.0
  %573 = vmatpush1.xpose.msra.mxu0 0.0
  %574 = vmatprep.subr.mxu0 0.0
  %575 = vmatpush1.xpose.msra.mxu0 0.0
  %576 = vmatprep.subr.mxu0 0.0
  %577 = vmatpush1.xpose.msra.mxu0 0.0
  %578 = vmatprep.subr.mxu0 0.0
  %579 = vmatpush1.xpose.msra.mxu0 0.0
  %580 = vmatprep.subr.mxu0 0.0
  %581 = vmatpush1.xpose.msra.mxu0 0.0
  %582 = vmatprep.subr.mxu0 0.0
  %583 = vmatpush1.xpose.msra.mxu0 0.0
  %584 = vmatprep.subr.mxu0 0.0
  %585 = vmatpush1.xpose.msra.mxu0 0.0
  %586 = vmatprep.subr.mxu0 0.0
  %587 = vmatpush1.xpose.msra.mxu0 0.0
  %588 = vmatprep.subr.mxu0 0.0
  %589 = vmatpush1.xpose.msra.mxu0 0.0
  %590 = vmatprep.subr.mxu0 0.0
  %591 = vmatpush1.xpose.msra.mxu0 0.0
  %592 = vmatprep.subr.mxu0 0.0
  %593 = vmatpush1.xpose.msra.mxu0 0.0
  %594 = vmatprep.subr.mxu0 0.0
  %595 = vmatpush1.xpose.msra.mxu0 0.0
  %596 = vmatprep.subr.mxu0 0.0
  %597 = vmatpush1.xpose.msra.mxu0 0.0
  %598 = vmatprep.subr.mxu0 0.0
  %599 = vmatpush1.xpose.msra.mxu0 0.0
  %600 = vmatprep.subr.mxu0 0.0
  %601 = vmatpush1.xpose.msra.mxu0 0.0
  %602 = vmatprep.subr.mxu0 0.0
  %603 = vmatpush1.xpose.msra.mxu0 0.0
  %604 = vmatprep.subr.mxu0 0.0
  %605 = vmatpush1.xpose.msra.mxu0 0.0
  %606 = vmatprep.subr.mxu0 0.0
  %607 = vmatpush1.xpose.msra.mxu0 0.0
  %608 = vmatprep.subr.mxu0 0.0
  %609 = vmatpush1.xpose.msra.mxu0 0.0
  %610 = vmatprep.subr.mxu0 0.0
  %611 = vmatpush1.xpose.msra.mxu0 0.0
  %612 = vmatprep.mubr.f32.mxu0 0.0
  %613 = vmatmul.mubr.f32.gmra.mrb[0].mxu0 %v519
  %v614 = vpop.f32.mrb[0].mxu0
  %v615 = vadd.f32 0.0, %v614
  %v616 = vpop.f32.mrb[0].mxu0
  %617 = vmatprep.mubr.f32.mxu0 0.0
  %618 = vmatmul.mubr.f32.gmra.mrb[0].mxu0 %v522
  %v619 = vpop.f32.mrb[0].mxu0
  %v620 = vadd.f32 0.0, %v619
  %v621 = vpop.f32.mrb[0].mxu0
  %622 = vdwg.mxu0
  %v623 = vmul.f32 %v431, %v615
  %v624 = vmul.f32 %v433, %v620
  %633 = vrot.lane.b32.xlu0 %v288, 64
  %v634 = vpop.permute.xlu0 %633
  %635 = vrot.lane.b32.xlu0 %v289, 64
  %v636 = vpop.permute.xlu0 %635
  %637 = vrot.lane.b32.xlu0 %v290, 64
  %v638 = vpop.permute.xlu0 %637
  %639 = vrot.lane.b32.xlu0 %v291, 64
  %v640 = vpop.permute.xlu0 %639
  %641 = vrot.lane.b32.xlu0 %v292, 64
  %v642 = vpop.permute.xlu0 %641
  %643 = vrot.lane.b32.xlu0 %v293, 64
  %v644 = vpop.permute.xlu0 %643
  %645 = vrot.lane.b32.xlu0 %v294, 64
  %v646 = vpop.permute.xlu0 %645
  %647 = vrot.lane.b32.xlu0 %v295, 64
  %v648 = vpop.permute.xlu0 %647
  %v658 = vsel %vm421, %v623, 0
  %v661 = vsel %vm421, %v624, 0
  %663 = vmatprep.subr.mxu0 0.0
  %664 = vmatpush1.msra.mxu0 %v634
  %665 = vmatprep.subr.mxu0 0.0
  %666 = vmatpush1.msra.mxu0 %v636
  %667 = vmatprep.subr.mxu0 0.0
  %668 = vmatpush1.msra.mxu0 %v638
  %669 = vmatprep.subr.mxu0 0.0
  %670 = vmatpush1.msra.mxu0 %v640
  %671 = vmatprep.subr.mxu0 0.0
  %672 = vmatpush1.msra.mxu0 %v642
  %673 = vmatprep.subr.mxu0 0.0
  %674 = vmatpush1.msra.mxu0 %v644
  %675 = vmatprep.subr.mxu0 0.0
  %676 = vmatpush1.msra.mxu0 %v646
  %677 = vmatprep.subr.mxu0 0.0
  %678 = vmatpush1.msra.mxu0 %v648
  %679 = vmatprep.subr.mxu0 0.0
  %680 = vmatpush1.msra.mxu0 0.0
  %681 = vmatprep.subr.mxu0 0.0
  %682 = vmatpush1.msra.mxu0 0.0
  %683 = vmatprep.subr.mxu0 0.0
  %684 = vmatpush1.msra.mxu0 0.0
  %685 = vmatprep.subr.mxu0 0.0
  %686 = vmatpush1.msra.mxu0 0.0
  %687 = vmatprep.subr.mxu0 0.0
  %688 = vmatpush1.msra.mxu0 0.0
  %689 = vmatprep.subr.mxu0 0.0
  %690 = vmatpush1.msra.mxu0 0.0
  %691 = vmatprep.subr.mxu0 0.0
  %692 = vmatpush1.msra.mxu0 0.0
  %693 = vmatprep.subr.mxu0 0.0
  %694 = vmatpush1.msra.mxu0 0.0
  %695 = vmatprep.subr.mxu0 0.0
  %696 = vmatpush1.msra.mxu0 0.0
  %697 = vmatprep.subr.mxu0 0.0
  %698 = vmatpush1.msra.mxu0 0.0
  %699 = vmatprep.subr.mxu0 0.0
  %700 = vmatpush1.msra.mxu0 0.0
  %701 = vmatprep.subr.mxu0 0.0
  %702 = vmatpush1.msra.mxu0 0.0
  %703 = vmatprep.subr.mxu0 0.0
  %704 = vmatpush1.msra.mxu0 0.0
  %705 = vmatprep.subr.mxu0 0.0
  %706 = vmatpush1.msra.mxu0 0.0
  %707 = vmatprep.subr.mxu0 0.0
  %708 = vmatpush1.msra.mxu0 0.0
  %709 = vmatprep.subr.mxu0 0.0
  %710 = vmatpush1.msra.mxu0 0.0
  %711 = vmatprep.subr.mxu0 0.0
  %712 = vmatpush1.msra.mxu0 0.0
  %713 = vmatprep.subr.mxu0 0.0
  %714 = vmatpush1.msra.mxu0 0.0
  %715 = vmatprep.subr.mxu0 0.0
  %716 = vmatpush1.msra.mxu0 0.0
  %717 = vmatprep.subr.mxu0 0.0
  %718 = vmatpush1.msra.mxu0 0.0
  %719 = vmatprep.subr.mxu0 0.0
  %720 = vmatpush1.msra.mxu0 0.0
  %721 = vmatprep.subr.mxu0 0.0
  %722 = vmatpush1.msra.mxu0 0.0
  %723 = vmatprep.subr.mxu0 0.0
  %724 = vmatpush1.msra.mxu0 0.0
  %725 = vmatprep.subr.mxu0 0.0
  %726 = vmatpush1.msra.mxu0 0.0
  %727 = vmatprep.mubr.f32.mxu0 0.0
  %728 = vmatmul.mubr.f32.gmra.mrb[0].mxu0 %v658
  %v729 = vpop.f32.mrb[0].mxu0
  %v730 = vadd.f32 0.0, %v729
  %v731 = vpop.f32.mrb[0].mxu0
  %732 = vmatprep.mubr.f32.mxu0 0.0
  %733 = vmatmul.mubr.f32.gmra.mrb[0].mxu0 %v661
  %v734 = vpop.f32.mrb[0].mxu0
  %v735 = vadd.f32 0.0, %v734
  %v736 = vpop.f32.mrb[0].mxu0
  %737 = vdwg.mxu0
  %v738 = vld [vmem:[%s3 + $0x50] sm:$0xff]
  %v739 = vld [vmem:[%s3 + $0x58] sm:$0xff]
  %v740 = vld [vmem:[%s3 + $0x60] sm:$0xff]
  %v741 = vld [vmem:[%s3 + $0x68] sm:$0xff]
  %v742 = vld [vmem:[%s4 + $0x18] sm:$0x1]
  %v743 = vlaneseq
  %v744 = vshrl.u32 %v743, 7
  %v745 = vsub.s32 0, %v744
  %v746 = vrot.slane %v742, %v745
  %v748 = vsel %vm142, %v730, 0
  %v751 = vsel %vm142, %v735, 0
  %753 = vmatprep.subr.mxu0 0.0
  %754 = vmatpush1.msra.mxu0 %v738
  %755 = vmatprep.subr.mxu0 0.0
  %756 = vmatpush1.msra.mxu0 %v739
  %757 = vmatprep.subr.mxu0 0.0
  %758 = vmatpush1.msra.mxu0 %v740
  %759 = vmatprep.subr.mxu0 0.0
  %760 = vmatpush1.msra.mxu0 %v741
  %761 = vmatprep.subr.mxu0 0.0
  %762 = vmatpush1.msra.mxu0 0.0
  %763 = vmatprep.subr.mxu0 0.0
  %764 = vmatpush1.msra.mxu0 0.0
  %765 = vmatprep.subr.mxu0 0.0
  %766 = vmatpush1.msra.mxu0 0.0
  %767 = vmatprep.subr.mxu0 0.0
  %768 = vmatpush1.msra.mxu0 0.0
  %769 = vmatprep.subr.mxu0 0.0
  %770 = vmatpush1.msra.mxu0 0.0
  %771 = vmatprep.subr.mxu0 0.0
  %772 = vmatpush1.msra.mxu0 0.0
  %773 = vmatprep.subr.mxu0 0.0
  %774 = vmatpush1.msra.mxu0 0.0
  %775 = vmatprep.subr.mxu0 0.0
  %776 = vmatpush1.msra.mxu0 0.0
  %777 = vmatprep.subr.mxu0 0.0
  %778 = vmatpush1.msra.mxu0 0.0
  %779 = vmatprep.subr.mxu0 0.0
  %780 = vmatpush1.msra.mxu0 0.0
  %781 = vmatprep.subr.mxu0 0.0
  %782 = vmatpush1.msra.mxu0 0.0
  %783 = vmatprep.subr.mxu0 0.0
  %784 = vmatpush1.msra.mxu0 0.0
  %785 = vmatprep.subr.mxu0 0.0
  %786 = vmatpush1.msra.mxu0 0.0
  %787 = vmatprep.subr.mxu0 0.0
  %788 = vmatpush1.msra.mxu0 0.0
  %789 = vmatprep.subr.mxu0 0.0
  %790 = vmatpush1.msra.mxu0 0.0
  %791 = vmatprep.subr.mxu0 0.0
  %792 = vmatpush1.msra.mxu0 0.0
  %793 = vmatprep.subr.mxu0 0.0
  %794 = vmatpush1.msra.mxu0 0.0
  %795 = vmatprep.subr.mxu0 0.0
  %796 = vmatpush1.msra.mxu0 0.0
  %797 = vmatprep.subr.mxu0 0.0
  %798 = vmatpush1.msra.mxu0 0.0
  %799 = vmatprep.subr.mxu0 0.0
  %800 = vmatpush1.msra.mxu0 0.0
  %801 = vmatprep.subr.mxu0 0.0
  %802 = vmatpush1.msra.mxu0 0.0
  %803 = vmatprep.subr.mxu0 0.0
  %804 = vmatpush1.msra.mxu0 0.0
  %805 = vmatprep.subr.mxu0 0.0
  %806 = vmatpush1.msra.mxu0 0.0
  %807 = vmatprep.subr.mxu0 0.0
  %808 = vmatpush1.msra.mxu0 0.0
  %809 = vmatprep.subr.mxu0 0.0
  %810 = vmatpush1.msra.mxu0 0.0
  %811 = vmatprep.subr.mxu0 0.0
  %812 = vmatpush1.msra.mxu0 0.0
  %813 = vmatprep.subr.mxu0 0.0
  %814 = vmatpush1.msra.mxu0 0.0
  %815 = vmatprep.subr.mxu0 0.0
  %816 = vmatpush1.msra.mxu0 0.0
  %817 = vmatprep.mubr.f32.mxu0 0.0
  %818 = vmatmul.mubr.f32.gmra.mrb[0].mxu0 %v748
  %v819 = vpop.f32.mrb[0].mxu0
  %v820 = vadd.f32 %v746, %v819
  %v821 = vpop.f32.mrb[0].mxu0
  %822 = vmatprep.mubr.f32.mxu0 0.0
  %823 = vmatmul.mubr.f32.gmra.mrb[0].mxu0 %v751
  %v824 = vpop.f32.mrb[0].mxu0
  %v825 = vadd.f32 %v746, %v824
  %v826 = vpop.f32.mrb[0].mxu0
  %827 = vdwg.mxu0
  %v828 = vadd.f32 %v131, %v820
  %v829 = vadd.f32 %v132, %v825
  %v830 = vsel %vm142, %v828, 0.0
  %831 = vadd.xlane.f32.xlu0 %v830
  %v832 = vpop.xlane.xlu0 %831
  %v833 = vsel %vm142, %v829, 0.0
  %834 = vadd.xlane.f32.xlu0 %v833
  %v835 = vpop.xlane.xlu0 %834
  %v836 = vrcp.pop 32.0
  %v837 = vmul.f32 %v832, %v836
  %v838 = vmul.f32 %v835, %v836
  %v839 = vsub.f32 %v828, %v837
  %v840 = vsub.f32 %v829, %v838
  %v841 = vmul.f32 %v839, %v839
  %v842 = vmul.f32 %v840, %v840
  %v843 = vsel %vm142, %v841, 0.0
  %844 = vadd.xlane.f32.xlu0 %v843
  %v845 = vpop.xlane.xlu0 %844
  %v846 = vsel %vm142, %v842, 0.0
  %847 = vadd.xlane.f32.xlu0 %v846
  %v848 = vpop.xlane.xlu0 %847
  %v849 = vmul.f32 %v845, %v836
  %v850 = vmul.f32 %v848, %v836
  %v851 = vadd.f32 %v849, 1e-05
  %v852 = vadd.f32 %v850, 1e-05
  %v853 = vrsqrt.pop %v851
  %v854 = vrsqrt.pop %v852
  %v855 = vmul.f32 %v839, %v853
  %v856 = vmul.f32 %v840, %v854
  %v857 = vld [vmem:[%s4 + $0xb0] sm:$0x1]
  %v858 = vlaneseq
  %v859 = vshrl.u32 %v858, 7
  %v860 = vsub.s32 0, %v859
  %v861 = vrot.slane %v857, %v860
  %v862 = vmul.f32 %v855, %v861
  %v863 = vmul.f32 %v856, %v861
  %v864 = vld [vmem:[%s4 + $0xb8] sm:$0x1]
  %v865 = vlaneseq
  %v866 = vshrl.u32 %v865, 7
  %v867 = vsub.s32 0, %v866
  %v868 = vrot.slane %v864, %v867
  %v869 = vadd.f32 %v862, %v868
  %v870 = vadd.f32 %v863, %v868
  %v871 = vld [vmem:[%s3 + $0x1b0] sm:$0xff]
  %v872 = vld [vmem:[%s3 + $0x1b8] sm:$0xff]
  %v873 = vld [vmem:[%s3 + $0x1c0] sm:$0xff]
  %v874 = vld [vmem:[%s3 + $0x1c8] sm:$0xff]
  %v875 = vld [vmem:[%s4 + $0x70] sm:$0x1]
  %v876 = vlaneseq
  %v877 = vshrl.u32 %v876, 7
  %v878 = vsub.s32 0, %v877
  %v879 = vrot.slane %v875, %v878
  %v881 = vsel %vm142, %v869, 0
  %v884 = vsel %vm142, %v870, 0
  %886 = vmatprep.subr.mxu0 0.0
  %887 = vmatpush1.msra.mxu0 %v871
  %888 = vmatprep.subr.mxu0 0.0
  %889 = vmatpush1.msra.mxu0 %v872
  %890 = vmatprep.subr.mxu0 0.0
  %891 = vmatpush1.msra.mxu0 %v873
  %892 = vmatprep.subr.mxu0 0.0
  %893 = vmatpush1.msra.mxu0 %v874
  %894 = vmatprep.subr.mxu0 0.0
  %895 = vmatpush1.msra.mxu0 0.0
  %896 = vmatprep.subr.mxu0 0.0
  %897 = vmatpush1.msra.mxu0 0.0
  %898 = vmatprep.subr.mxu0 0.0
  %899 = vmatpush1.msra.mxu0 0.0
  %900 = vmatprep.subr.mxu0 0.0
  %901 = vmatpush1.msra.mxu0 0.0
  %902 = vmatprep.subr.mxu0 0.0
  %903 = vmatpush1.msra.mxu0 0.0
  %904 = vmatprep.subr.mxu0 0.0
  %905 = vmatpush1.msra.mxu0 0.0
  %906 = vmatprep.subr.mxu0 0.0
  %907 = vmatpush1.msra.mxu0 0.0
  %908 = vmatprep.subr.mxu0 0.0
  %909 = vmatpush1.msra.mxu0 0.0
  %910 = vmatprep.subr.mxu0 0.0
  %911 = vmatpush1.msra.mxu0 0.0
  %912 = vmatprep.subr.mxu0 0.0
  %913 = vmatpush1.msra.mxu0 0.0
  %914 = vmatprep.subr.mxu0 0.0
  %915 = vmatpush1.msra.mxu0 0.0
  %916 = vmatprep.subr.mxu0 0.0
  %917 = vmatpush1.msra.mxu0 0.0
  %918 = vmatprep.subr.mxu0 0.0
  %919 = vmatpush1.msra.mxu0 0.0
  %920 = vmatprep.subr.mxu0 0.0
  %921 = vmatpush1.msra.mxu0 0.0
  %922 = vmatprep.subr.mxu0 0.0
  %923 = vmatpush1.msra.mxu0 0.0
  %924 = vmatprep.subr.mxu0 0.0
  %925 = vmatpush1.msra.mxu0 0.0
  %926 = vmatprep.subr.mxu0 0.0
  %927 = vmatpush1.msra.mxu0 0.0
  %928 = vmatprep.subr.mxu0 0.0
  %929 = vmatpush1.msra.mxu0 0.0
  %930 = vmatprep.subr.mxu0 0.0
  %931 = vmatpush1.msra.mxu0 0.0
  %932 = vmatprep.subr.mxu0 0.0
  %933 = vmatpush1.msra.mxu0 0.0
  %934 = vmatprep.subr.mxu0 0.0
  %935 = vmatpush1.msra.mxu0 0.0
  %936 = vmatprep.subr.mxu0 0.0
  %937 = vmatpush1.msra.mxu0 0.0
  %938 = vmatprep.subr.mxu0 0.0
  %939 = vmatpush1.msra.mxu0 0.0
  %940 = vmatprep.subr.mxu0 0.0
  %941 = vmatpush1.msra.mxu0 0.0
  %942 = vmatprep.subr.mxu0 0.0
  %943 = vmatpush1.msra.mxu0 0.0
  %944 = vmatprep.subr.mxu0 0.0
  %945 = vmatpush1.msra.mxu0 0.0
  %946 = vmatprep.subr.mxu0 0.0
  %947 = vmatpush1.msra.mxu0 0.0
  %948 = vmatprep.subr.mxu0 0.0
  %949 = vmatpush1.msra.mxu0 0.0
  %950 = vmatprep.mubr.f32.mxu0 0.0
  %951 = vmatmul.mubr.f32.gmra.mrb[0].mxu0 %v881
  %v952 = vpop.f32.mrb[0].mxu0
  %v953 = vadd.f32 %v879, %v952
  %v954 = vpop.f32.mrb[0].mxu0
  %955 = vmatprep.mubr.f32.mxu0 0.0
  %956 = vmatmul.mubr.f32.gmra.mrb[0].mxu0 %v884
  %v957 = vpop.f32.mrb[0].mxu0
  %v958 = vadd.f32 %v879, %v957
  %v959 = vpop.f32.mrb[0].mxu0
  %960 = vdwg.mxu0
  %v961 = vmax.f32 %v953, 0.0
  %v962 = vmax.f32 %v958, 0.0
  %v963 = vld [vmem:[%s3 + $0x1d0] sm:$0xff]
  %v964 = vld [vmem:[%s3 + $0x1d8] sm:$0xff]
  %v965 = vld [vmem:[%s3 + $0x1e0] sm:$0xff]
  %v966 = vld [vmem:[%s3 + $0x1e8] sm:$0xff]
  %v967 = vld [vmem:[%s3 + $0x1f0] sm:$0xff]
  %v968 = vld [vmem:[%s3 + $0x1f8] sm:$0xff]
  %v969 = vld [vmem:[%s3 + $0x200] sm:$0xff]
  %v970 = vld [vmem:[%s3 + $0x208] sm:$0xff]
  %v971 = vld [vmem:[%s4 + $0x78] sm:$0x1]
  %v972 = vlaneseq
  %v973 = vshrl.u32 %v972, 7
  %v974 = vsub.s32 0, %v973
  %v975 = vrot.slane %v971, %v974
  %v977 = vsel %vm421, %v961, 0
  %v980 = vsel %vm421, %v962, 0
  %982 = vmatprep.subr.mxu0 0.0
  %983 = vmatpush1.msra.mxu0 %v963
  %984 = vmatprep.subr.mxu0 0.0
  %985 = vmatpush1.msra.mxu0 %v964
  %986 = vmatprep.subr.mxu0 0.0
  %987 = vmatpush1.msra.mxu0 %v965
  %988 = vmatprep.subr.mxu0 0.0
  %989 = vmatpush1.msra.mxu0 %v966
  %990 = vmatprep.subr.mxu0 0.0
  %991 = vmatpush1.msra.mxu0 %v967
  %992 = vmatprep.subr.mxu0 0.0
  %993 = vmatpush1.msra.mxu0 %v968
  %994 = vmatprep.subr.mxu0 0.0
  %995 = vmatpush1.msra.mxu0 %v969
  %996 = vmatprep.subr.mxu0 0.0
  %997 = vmatpush1.msra.mxu0 %v970
  %998 = vmatprep.subr.mxu0 0.0
  %999 = vmatpush1.msra.mxu0 0.0
  %1000 = vmatprep.subr.mxu0 0.0
  %1001 = vmatpush1.msra.mxu0 0.0
  %1002 = vmatprep.subr.mxu0 0.0
  %1003 = vmatpush1.msra.mxu0 0.0
  %1004 = vmatprep.subr.mxu0 0.0
  %1005 = vmatpush1.msra.mxu0 0.0
  %1006 = vmatprep.subr.mxu0 0.0
  %1007 = vmatpush1.msra.mxu0 0.0
  %1008 = vmatprep.subr.mxu0 0.0
  %1009 = vmatpush1.msra.mxu0 0.0
  %1010 = vmatprep.subr.mxu0 0.0
  %1011 = vmatpush1.msra.mxu0 0.0
  %1012 = vmatprep.subr.mxu0 0.0
  %1013 = vmatpush1.msra.mxu0 0.0
  %1014 = vmatprep.subr.mxu0 0.0
  %1015 = vmatpush1.msra.mxu0 0.0
  %1016 = vmatprep.subr.mxu0 0.0
  %1017 = vmatpush1.msra.mxu0 0.0
  %1018 = vmatprep.subr.mxu0 0.0
  %1019 = vmatpush1.msra.mxu0 0.0
  %1020 = vmatprep.subr.mxu0 0.0
  %1021 = vmatpush1.msra.mxu0 0.0
  %1022 = vmatprep.subr.mxu0 0.0
  %1023 = vmatpush1.msra.mxu0 0.0
  %1024 = vmatprep.subr.mxu0 0.0
  %1025 = vmatpush1.msra.mxu0 0.0
  %1026 = vmatprep.subr.mxu0 0.0
  %1027 = vmatpush1.msra.mxu0 0.0
  %1028 = vmatprep.subr.mxu0 0.0
  %1029 = vmatpush1.msra.mxu0 0.0
  %1030 = vmatprep.subr.mxu0 0.0
  %1031 = vmatpush1.msra.mxu0 0.0
  %1032 = vmatprep.subr.mxu0 0.0
  %1033 = vmatpush1.msra.mxu0 0.0
  %1034 = vmatprep.subr.mxu0 0.0
  %1035 = vmatpush1.msra.mxu0 0.0
  %1036 = vmatprep.subr.mxu0 0.0
  %1037 = vmatpush1.msra.mxu0 0.0
  %1038 = vmatprep.subr.mxu0 0.0
  %1039 = vmatpush1.msra.mxu0 0.0
  %1040 = vmatprep.subr.mxu0 0.0
  %1041 = vmatpush1.msra.mxu0 0.0
  %1042 = vmatprep.subr.mxu0 0.0
  %1043 = vmatpush1.msra.mxu0 0.0
  %1044 = vmatprep.subr.mxu0 0.0
  %1045 = vmatpush1.msra.mxu0 0.0
  %1046 = vmatprep.mubr.f32.mxu0 0.0
  %1047 = vmatmul.mubr.f32.gmra.mrb[0].mxu0 %v977
  %v1048 = vpop.f32.mrb[0].mxu0
  %v1049 = vadd.f32 %v975, %v1048
  %v1050 = vpop.f32.mrb[0].mxu0
  %1051 = vmatprep.mubr.f32.mxu0 0.0
  %1052 = vmatmul.mubr.f32.gmra.mrb[0].mxu0 %v980
  %v1053 = vpop.f32.mrb[0].mxu0
  %v1054 = vadd.f32 %v975, %v1053
  %v1055 = vpop.f32.mrb[0].mxu0
  %1056 = vdwg.mxu0
  %v1057 = vadd.f32 %v869, %v1049
  %v1058 = vadd.f32 %v870, %v1054
  %v1059 = vsel %vm142, %v1057, 0.0
  %1060 = vadd.xlane.f32.xlu0 %v1059
  %v1061 = vpop.xlane.xlu0 %1060
  %v1062 = vsel %vm142, %v1058, 0.0
  %1063 = vadd.xlane.f32.xlu0 %v1062
  %v1064 = vpop.xlane.xlu0 %1063
  %v1065 = vmul.f32 %v1061, %v836
  %v1066 = vmul.f32 %v1064, %v836
  %v1067 = vsub.f32 %v1057, %v1065
  %v1068 = vsub.f32 %v1058, %v1066
  %v1069 = vmul.f32 %v1067, %v1067
  %v1070 = vmul.f32 %v1068, %v1068
  %v1071 = vsel %vm142, %v1069, 0.0
  %1072 = vadd.xlane.f32.xlu0 %v1071
  %v1073 = vpop.xlane.xlu0 %1072
  %v1074 = vsel %vm142, %v1070, 0.0
  %1075 = vadd.xlane.f32.xlu0 %v1074
  %v1076 = vpop.xlane.xlu0 %1075
  %v1077 = vmul.f32 %v1073, %v836
  %v1078 = vmul.f32 %v1076, %v836
  %v1079 = vadd.f32 %v1077, 1e-05
  %v1080 = vadd.f32 %v1078, 1e-05
  %v1081 = vrsqrt.pop %v1079
  %v1082 = vrsqrt.pop %v1080
  %v1083 = vmul.f32 %v1067, %v1081
  %v1084 = vmul.f32 %v1068, %v1082
  %v1085 = vld [vmem:[%s4 + $0xc0] sm:$0x1]
  %v1086 = vlaneseq
  %v1087 = vshrl.u32 %v1086, 7
  %v1088 = vsub.s32 0, %v1087
  %v1089 = vrot.slane %v1085, %v1088
  %v1090 = vmul.f32 %v1083, %v1089
  %v1091 = vmul.f32 %v1084, %v1089
  %v1092 = vld [vmem:[%s4 + $0xc8] sm:$0x1]
  %v1093 = vlaneseq
  %v1094 = vshrl.u32 %v1093, 7
  %v1095 = vsub.s32 0, %v1094
  %v1096 = vrot.slane %v1092, %v1095
  %v1097 = vadd.f32 %v1090, %v1096
  %v1098 = vadd.f32 %v1091, %v1096
  %v1099 = vld [vmem:[%s3 + $0x70] sm:$0xff]
  %v1100 = vld [vmem:[%s3 + $0x78] sm:$0xff]
  %v1101 = vld [vmem:[%s3 + $0x80] sm:$0xff]
  %v1102 = vld [vmem:[%s3 + $0x88] sm:$0xff]
  %v1103 = vld [vmem:[%s4 + $0x20] sm:$0x1]
  %v1104 = vlaneseq
  %v1105 = vshrl.u32 %v1104, 7
  %v1106 = vsub.s32 0, %v1105
  %v1107 = vrot.slane %v1103, %v1106
  %v1109 = vsel %vm142, %v1097, 0
  %v1112 = vsel %vm142, %v1098, 0
  %1114 = vmatprep.subr.mxu0 0.0
  %1115 = vmatpush1.msra.mxu0 %v1099
  %1116 = vmatprep.subr.mxu0 0.0
  %1117 = vmatpush1.msra.mxu0 %v1100
  %1118 = vmatprep.subr.mxu0 0.0
  %1119 = vmatpush1.msra.mxu0 %v1101
  %1120 = vmatprep.subr.mxu0 0.0
  %1121 = vmatpush1.msra.mxu0 %v1102
  %1122 = vmatprep.subr.mxu0 0.0
  %1123 = vmatpush1.msra.mxu0 0.0
  %1124 = vmatprep.subr.mxu0 0.0
  %1125 = vmatpush1.msra.mxu0 0.0
  %1126 = vmatprep.subr.mxu0 0.0
  %1127 = vmatpush1.msra.mxu0 0.0
  %1128 = vmatprep.subr.mxu0 0.0
  %1129 = vmatpush1.msra.mxu0 0.0
  %1130 = vmatprep.subr.mxu0 0.0
  %1131 = vmatpush1.msra.mxu0 0.0
  %1132 = vmatprep.subr.mxu0 0.0
  %1133 = vmatpush1.msra.mxu0 0.0
  %1134 = vmatprep.subr.mxu0 0.0
  %1135 = vmatpush1.msra.mxu0 0.0
  %1136 = vmatprep.subr.mxu0 0.0
  %1137 = vmatpush1.msra.mxu0 0.0
  %1138 = vmatprep.subr.mxu0 0.0
  %1139 = vmatpush1.msra.mxu0 0.0
  %1140 = vmatprep.subr.mxu0 0.0
  %1141 = vmatpush1.msra.mxu0 0.0
  %1142 = vmatprep.subr.mxu0 0.0
  %1143 = vmatpush1.msra.mxu0 0.0
  %1144 = vmatprep.subr.mxu0 0.0
  %1145 = vmatpush1.msra.mxu0 0.0
  %1146 = vmatprep.subr.mxu0 0.0
  %1147 = vmatpush1.msra.mxu0 0.0
  %1148 = vmatprep.subr.mxu0 0.0
  %1149 = vmatpush1.msra.mxu0 0.0
  %1150 = vmatprep.subr.mxu0 0.0
  %1151 = vmatpush1.msra.mxu0 0.0
  %1152 = vmatprep.subr.mxu0 0.0
  %1153 = vmatpush1.msra.mxu0 0.0
  %1154 = vmatprep.subr.mxu0 0.0
  %1155 = vmatpush1.msra.mxu0 0.0
  %1156 = vmatprep.subr.mxu0 0.0
  %1157 = vmatpush1.msra.mxu0 0.0
  %1158 = vmatprep.subr.mxu0 0.0
  %1159 = vmatpush1.msra.mxu0 0.0
  %1160 = vmatprep.subr.mxu0 0.0
  %1161 = vmatpush1.msra.mxu0 0.0
  %1162 = vmatprep.subr.mxu0 0.0
  %1163 = vmatpush1.msra.mxu0 0.0
  %1164 = vmatprep.subr.mxu0 0.0
  %1165 = vmatpush1.msra.mxu0 0.0
  %1166 = vmatprep.subr.mxu0 0.0
  %1167 = vmatpush1.msra.mxu0 0.0
  %1168 = vmatprep.subr.mxu0 0.0
  %1169 = vmatpush1.msra.mxu0 0.0
  %1170 = vmatprep.subr.mxu0 0.0
  %1171 = vmatpush1.msra.mxu0 0.0
  %1172 = vmatprep.subr.mxu0 0.0
  %1173 = vmatpush1.msra.mxu0 0.0
  %1174 = vmatprep.subr.mxu0 0.0
  %1175 = vmatpush1.msra.mxu0 0.0
  %1176 = vmatprep.subr.mxu0 0.0
  %1177 = vmatpush1.msra.mxu0 0.0
  %1178 = vmatprep.mubr.f32.mxu0 0.0
  %1179 = vmatmul.mubr.f32.gmra.mrb[0].mxu0 %v1109
  %v1180 = vpop.f32.mrb[0].mxu0
  %v1181 = vadd.f32 %v1107, %v1180
  %v1182 = vpop.f32.mrb[0].mxu0
  %1183 = vmatprep.mubr.f32.mxu0 0.0
  %1184 = vmatmul.mubr.f32.gmra.mrb[0].mxu0 %v1112
  %v1185 = vpop.f32.mrb[0].mxu0
  %v1186 = vadd.f32 %v1107, %v1185
  %v1187 = vpop.f32.mrb[0].mxu0
  %1188 = vdwg.mxu0
  %v1189 = vmul.f32 %v1181, %v233
  %v1190 = vmul.f32 %v1186, %v235
  %v1191 = vmul.f32 %v1181, %v237
  %v1192 = vmul.f32 %v1186, %v239
  %v1193 = vmul.f32 %v1181, %v241
  %v1194 = vmul.f32 %v1186, %v243
  %v1195 = vmul.f32 %v1181, %v245
  %v1196 = vmul.f32 %v1186, %v247
  %v1197 = vmul.f32 %v1181, %v265
  %v1198 = vmul.f32 %v1186, %v267
  %v1199 = vmul.f32 %v1181, %v269
  %v1200 = vmul.f32 %v1186, %v271
  %v1201 = vmul.f32 %v1181, %v273
  %v1202 = vmul.f32 %v1186, %v275
  %v1203 = vmul.f32 %v1181, %v277
  %v1204 = vmul.f32 %v1186, %v279
  %1213 = vrot.lane.b32.xlu0 %v1189, 96
  %v1214 = vpop.permute.xlu0 %1213
  %1215 = vrot.lane.b32.xlu0 %v1190, 96
  %v1216 = vpop.permute.xlu0 %1215
  %1217 = vrot.lane.b32.xlu0 %v1191, 96
  %v1218 = vpop.permute.xlu0 %1217
  %1219 = vrot.lane.b32.xlu0 %v1192, 96
  %v1220 = vpop.permute.xlu0 %1219
  %1221 = vrot.lane.b32.xlu0 %v1193, 96
  %v1222 = vpop.permute.xlu0 %1221
  %1223 = vrot.lane.b32.xlu0 %v1194, 96
  %v1224 = vpop.permute.xlu0 %1223
  %1225 = vrot.lane.b32.xlu0 %v1195, 96
  %v1226 = vpop.permute.xlu0 %1225
  %1227 = vrot.lane.b32.xlu0 %v1196, 96
  %v1228 = vpop.permute.xlu0 %1227
  %v1230 = vsel %vm142, %v1181, 0
  %v1233 = vsel %vm142, %v1186, 0
  %v1235 = vsel %vm142, %v1214, 0
  %v1237 = vsel %vm142, %v1216, 0
  %v1239 = vsel %vm142, %v1218, 0
  %v1241 = vsel %vm142, %v1220, 0
  %v1243 = vsel %vm142, %v1222, 0
  %v1245 = vsel %vm142, %v1224, 0
  %v1247 = vsel %vm142, %v1226, 0
  %v1249 = vsel %vm142, %v1228, 0
  %1251 = vmatprep.subr.mxu0 0.0
  %1252 = vmatpush1.xpose.msra.mxu0 %v1235
  %1253 = vmatprep.subr.mxu0 0.0
  %1254 = vmatpush1.xpose.msra.mxu0 %v1237
  %1255 = vmatprep.subr.mxu0 0.0
  %1256 = vmatpush1.xpose.msra.mxu0 %v1239
  %1257 = vmatprep.subr.mxu0 0.0
  %1258 = vmatpush1.xpose.msra.mxu0 %v1241
  %1259 = vmatprep.subr.mxu0 0.0
  %1260 = vmatpush1.xpose.msra.mxu0 %v1243
  %1261 = vmatprep.subr.mxu0 0.0
  %1262 = vmatpush1.xpose.msra.mxu0 %v1245
  %1263 = vmatprep.subr.mxu0 0.0
  %1264 = vmatpush1.xpose.msra.mxu0 %v1247
  %1265 = vmatprep.subr.mxu0 0.0
  %1266 = vmatpush1.xpose.msra.mxu0 %v1249
  %1267 = vmatprep.subr.mxu0 0.0
  %1268 = vmatpush1.xpose.msra.mxu0 0.0
  %1269 = vmatprep.subr.mxu0 0.0
  %1270 = vmatpush1.xpose.msra.mxu0 0.0
  %1271 = vmatprep.subr.mxu0 0.0
  %1272 = vmatpush1.xpose.msra.mxu0 0.0
  %1273 = vmatprep.subr.mxu0 0.0
  %1274 = vmatpush1.xpose.msra.mxu0 0.0
  %1275 = vmatprep.subr.mxu0 0.0
  %1276 = vmatpush1.xpose.msra.mxu0 0.0
  %1277 = vmatprep.subr.mxu0 0.0
  %1278 = vmatpush1.xpose.msra.mxu0 0.0
  %1279 = vmatprep.subr.mxu0 0.0
  %1280 = vmatpush1.xpose.msra.mxu0 0.0
  %1281 = vmatprep.subr.mxu0 0.0
  %1282 = vmatpush1.xpose.msra.mxu0 0.0
  %1283 = vmatprep.subr.mxu0 0.0
  %1284 = vmatpush1.xpose.msra.mxu0 0.0
  %1285 = vmatprep.subr.mxu0 0.0
  %1286 = vmatpush1.xpose.msra.mxu0 0.0
  %1287 = vmatprep.subr.mxu0 0.0
  %1288 = vmatpush1.xpose.msra.mxu0 0.0
  %1289 = vmatprep.subr.mxu0 0.0
  %1290 = vmatpush1.xpose.msra.mxu0 0.0
  %1291 = vmatprep.subr.mxu0 0.0
  %1292 = vmatpush1.xpose.msra.mxu0 0.0
  %1293 = vmatprep.subr.mxu0 0.0
  %1294 = vmatpush1.xpose.msra.mxu0 0.0
  %1295 = vmatprep.subr.mxu0 0.0
  %1296 = vmatpush1.xpose.msra.mxu0 0.0
  %1297 = vmatprep.subr.mxu0 0.0
  %1298 = vmatpush1.xpose.msra.mxu0 0.0
  %1299 = vmatprep.subr.mxu0 0.0
  %1300 = vmatpush1.xpose.msra.mxu0 0.0
  %1301 = vmatprep.subr.mxu0 0.0
  %1302 = vmatpush1.xpose.msra.mxu0 0.0
  %1303 = vmatprep.subr.mxu0 0.0
  %1304 = vmatpush1.xpose.msra.mxu0 0.0
  %1305 = vmatprep.subr.mxu0 0.0
  %1306 = vmatpush1.xpose.msra.mxu0 0.0
  %1307 = vmatprep.subr.mxu0 0.0
  %1308 = vmatpush1.xpose.msra.mxu0 0.0
  %1309 = vmatprep.subr.mxu0 0.0
  %1310 = vmatpush1.xpose.msra.mxu0 0.0
  %1311 = vmatprep.subr.mxu0 0.0
  %1312 = vmatpush1.xpose.msra.mxu0 0.0
  %1313 = vmatprep.subr.mxu0 0.0
  %1314 = vmatpush1.xpose.msra.mxu0 0.0
  %1315 = vmatprep.mubr.f32.mxu0 0.0
  %1316 = vmatmul.mubr.f32.gmra.mrb[0].mxu0 %v1230
  %v1317 = vpop.f32.mrb[0].mxu0
  %v1318 = vadd.f32 0.0, %v1317
  %v1319 = vpop.f32.mrb[0].mxu0
  %1320 = vmatprep.mubr.f32.mxu0 0.0
  %1321 = vmatmul.mubr.f32.gmra.mrb[0].mxu0 %v1233
  %v1322 = vpop.f32.mrb[0].mxu0
  %v1323 = vadd.f32 0.0, %v1322
  %v1324 = vpop.f32.mrb[0].mxu0
  %1325 = vdwg.mxu0
  %v1326 = vmul.f32 %v1318, 0.35355338
  %v1327 = vmul.f32 %v1323, 0.35355338
  %v1328 = vadd.f32 %v1326, %v36
  %v1329 = vadd.f32 %v1327, %v37
  %v1330 = vsel %vm421, %v1328, -inf
  %1331 = vmax.xlane.f32.xlu0 %v1330
  %v1332 = vpop.xlane.xlu0 %1331
  %v1333 = vsel %vm421, %v1329, -inf
  %1334 = vmax.xlane.f32.xlu0 %v1333
  %v1335 = vpop.xlane.xlu0 %1334
  %v1336 = vsub.f32 %v1328, %v1332
  %v1337 = vsub.f32 %v1329, %v1335
  %v1338 = vmul.f32 %v1336, 1.442695
  %v1339 = vpow.pop %v1338
  %v1340 = vmul.f32 %v1337, 1.442695
  %v1341 = vpow.pop %v1340
  %v1343 = vsel %vm421, %v1339, 0
  %v1346 = vsel %vm421, %v1341, 0
  %1348 = vmatprep.subr.mxu0 0.0
  %1349 = vmatpush1.msra.mxu0 %v28
  %1350 = vmatprep.subr.mxu0 0.0
  %1351 = vmatpush1.msra.mxu0 %v29
  %1352 = vmatprep.subr.mxu0 0.0
  %1353 = vmatpush1.msra.mxu0 %v30
  %1354 = vmatprep.subr.mxu0 0.0
  %1355 = vmatpush1.msra.mxu0 %v31
  %1356 = vmatprep.subr.mxu0 0.0
  %1357 = vmatpush1.msra.mxu0 %v32
  %1358 = vmatprep.subr.mxu0 0.0
  %1359 = vmatpush1.msra.mxu0 %v33
  %1360 = vmatprep.subr.mxu0 0.0
  %1361 = vmatpush1.msra.mxu0 %v34
  %1362 = vmatprep.subr.mxu0 0.0
  %1363 = vmatpush1.msra.mxu0 %v35
  %1364 = vmatprep.subr.mxu0 0.0
  %1365 = vmatpush1.msra.mxu0 0.0
  %1366 = vmatprep.subr.mxu0 0.0
  %1367 = vmatpush1.msra.mxu0 0.0
  %1368 = vmatprep.subr.mxu0 0.0
  %1369 = vmatpush1.msra.mxu0 0.0
  %1370 = vmatprep.subr.mxu0 0.0
  %1371 = vmatpush1.msra.mxu0 0.0
  %1372 = vmatprep.subr.mxu0 0.0
  %1373 = vmatpush1.msra.mxu0 0.0
  %1374 = vmatprep.subr.mxu0 0.0
  %1375 = vmatpush1.msra.mxu0 0.0
  %1376 = vmatprep.subr.mxu0 0.0
  %1377 = vmatpush1.msra.mxu0 0.0
  %1378 = vmatprep.subr.mxu0 0.0
  %1379 = vmatpush1.msra.mxu0 0.0
  %1380 = vmatprep.subr.mxu0 0.0
  %1381 = vmatpush1.msra.mxu0 0.0
  %1382 = vmatprep.subr.mxu0 0.0
  %1383 = vmatpush1.msra.mxu0 0.0
  %1384 = vmatprep.subr.mxu0 0.0
  %1385 = vmatpush1.msra.mxu0 0.0
  %1386 = vmatprep.subr.mxu0 0.0
  %1387 = vmatpush1.msra.mxu0 0.0
  %1388 = vmatprep.subr.mxu0 0.0
  %1389 = vmatpush1.msra.mxu0 0.0
  %1390 = vmatprep.subr.mxu0 0.0
  %1391 = vmatpush1.msra.mxu0 0.0
  %1392 = vmatprep.subr.mxu0 0.0
  %1393 = vmatpush1.msra.mxu0 0.0
  %1394 = vmatprep.subr.mxu0 0.0
  %1395 = vmatpush1.msra.mxu0 0.0
  %1396 = vmatprep.subr.mxu0 0.0
  %1397 = vmatpush1.msra.mxu0 0.0
  %1398 = vmatprep.subr.mxu0 0.0
  %1399 = vmatpush1.msra.mxu0 0.0
  %1400 = vmatprep.subr.mxu0 0.0
  %1401 = vmatpush1.msra.mxu0 0.0
  %1402 = vmatprep.subr.mxu0 0.0
  %1403 = vmatpush1.msra.mxu0 0.0
  %1404 = vmatprep.subr.mxu0 0.0
  %1405 = vmatpush1.msra.mxu0 0.0
  %1406 = vmatprep.subr.mxu0 0.0
  %1407 = vmatpush1.msra.mxu0 0.0
  %1408 = vmatprep.subr.mxu0 0.0
  %1409 = vmatpush1.msra.mxu0 0.0
  %1410 = vmatprep.subr.mxu0 0.0
  %1411 = vmatpush1.msra.mxu0 0.0
  %1412 = vmatprep.mubr.f32.mxu0 0.0
  %1413 = vmatmul.mubr.f32.gmra.mrb[0].mxu0 %v1343
  %v1414 = vpop.f32.mrb[0].mxu0
  %v1415 = vadd.f32 0.0, %v1414
  %v1416 = vpop.f32.mrb[0].mxu0
  %1417 = vmatprep.mubr.f32.mxu0 0.0
  %1418 = vmatmul.mubr.f32.gmra.mrb[0].mxu0 %v1346
  %v1419 = vpop.f32.mrb[0].mxu0
  %v1420 = vadd.f32 0.0, %v1419
  %v1421 = vpop.f32.mrb[0].mxu0
  %1422 = vdwg.mxu0
  %v1423 = vrcp.pop %v1415
  %v1424 = vrcp.pop %v1420
  %v1426 = vsel %vm517, %v1423, 0
  %v1429 = vsel %vm517, %v1424, 0
  %1431 = vmatprep.subr.mxu0 0.0
  %1432 = vmatpush1.xpose.msra.mxu0 %v525
  %1433 = vmatprep.subr.mxu0 0.0
  %1434 = vmatpush1.xpose.msra.mxu0 %v528
  %1435 = vmatprep.subr.mxu0 0.0
  %1436 = vmatpush1.xpose.msra.mxu0 %v531
  %1437 = vmatprep.subr.mxu0 0.0
  %1438 = vmatpush1.xpose.msra.mxu0 %v534
  %1439 = vmatprep.subr.mxu0 0.0
  %1440 = vmatpush1.xpose.msra.mxu0 %v537
  %1441 = vmatprep.subr.mxu0 0.0
  %1442 = vmatpush1.xpose.msra.mxu0 %v540
  %1443 = vmatprep.subr.mxu0 0.0
  %1444 = vmatpush1.xpose.msra.mxu0 %v543
  %1445 = vmatprep.subr.mxu0 0.0
  %1446 = vmatpush1.xpose.msra.mxu0 %v546
  %1447 = vmatprep.subr.mxu0 0.0
  %1448 = vmatpush1.xpose.msra.mxu0 0.0
  %1449 = vmatprep.subr.mxu0 0.0
  %1450 = vmatpush1.xpose.msra.mxu0 0.0
  %1451 = vmatprep.subr.mxu0 0.0
  %1452 = vmatpush1.xpose.msra.mxu0 0.0
  %1453 = vmatprep.subr.mxu0 0.0
  %1454 = vmatpush1.xpose.msra.mxu0 0.0
  %1455 = vmatprep.subr.mxu0 0.0
  %1456 = vmatpush1.xpose.msra.mxu0 0.0
  %1457 = vmatprep.subr.mxu0 0.0
  %1458 = vmatpush1.xpose.msra.mxu0 0.0
  %1459 = vmatprep.subr.mxu0 0.0
  %1460 = vmatpush1.xpose.msra.mxu0 0.0
  %1461 = vmatprep.subr.mxu0 0.0
  %1462 = vmatpush1.xpose.msra.mxu0 0.0
  %1463 = vmatprep.subr.mxu0 0.0
  %1464 = vmatpush1.xpose.msra.mxu0 0.0
  %1465 = vmatprep.subr.mxu0 0.0
  %1466 = vmatpush1.xpose.msra.mxu0 0.0
  %1467 = vmatprep.subr.mxu0 0.0
  %1468 = vmatpush1.xpose.msra.mxu0 0.0
  %1469 = vmatprep.subr.mxu0 0.0
  %1470 = vmatpush1.xpose.msra.mxu0 0.0
  %1471 = vmatprep.subr.mxu0 0.0
  %1472 = vmatpush1.xpose.msra.mxu0 0.0
  %1473 = vmatprep.subr.mxu0 0.0
  %1474 = vmatpush1.xpose.msra.mxu0 0.0
  %1475 = vmatprep.subr.mxu0 0.0
  %1476 = vmatpush1.xpose.msra.mxu0 0.0
  %1477 = vmatprep.subr.mxu0 0.0
  %1478 = vmatpush1.xpose.msra.mxu0 0.0
  %1479 = vmatprep.subr.mxu0 0.0
  %1480 = vmatpush1.xpose.msra.mxu0 0.0
  %1481 = vmatprep.subr.mxu0 0.0
  %1482 = vmatpush1.xpose.msra.mxu0 0.0
  %1483 = vmatprep.subr.mxu0 0.0
  %1484 = vmatpush1.xpose.msra.mxu0 0.0
  %1485 = vmatprep.subr.mxu0 0.0
  %1486 = vmatpush1.xpose.msra.mxu0 0.0
  %1487 = vmatprep.subr.mxu0 0.0
  %1488 = vmatpush1.xpose.msra.mxu0 0.0
  %1489 = vmatprep.subr.mxu0 0.0
  %1490 = vmatpush1.xpose.msra.mxu0 0.0
  %1491 = vmatprep.subr.mxu0 0.0
  %1492 = vmatpush1.xpose.msra.mxu0 0.0
  %1493 = vmatprep.subr.mxu0 0.0
  %1494 = vmatpush1.xpose.msra.mxu0 0.0
  %1495 = vmatprep.mubr.f32.mxu0 0.0
  %1496 = vmatmul.mubr.f32.gmra.mrb[0].mxu0 %v1426
  %v1497 = vpop.f32.mrb[0].mxu0
  %v1498 = vadd.f32 0.0, %v1497
  %v1499 = vpop.f32.mrb[0].mxu0
  %1500 = vmatprep.mubr.f32.mxu0 0.0
  %1501 = vmatmul.mubr.f32.gmra.mrb[0].mxu0 %v1429
  %v1502 = vpop.f32.mrb[0].mxu0
  %v1503 = vadd.f32 0.0, %v1502
  %v1504 = vpop.f32.mrb[0].mxu0
  %1505 = vdwg.mxu0
  %v1506 = vmul.f32 %v1339, %v1498
  %v1507 = vmul.f32 %v1341, %v1503
  %1516 = vrot.lane.b32.xlu0 %v1197, 64
  %v1517 = vpop.permute.xlu0 %1516
  %1518 = vrot.lane.b32.xlu0 %v1198, 64
  %v1519 = vpop.permute.xlu0 %1518
  %1520 = vrot.lane.b32.xlu0 %v1199, 64
  %v1521 = vpop.permute.xlu0 %1520
  %1522 = vrot.lane.b32.xlu0 %v1200, 64
  %v1523 = vpop.permute.xlu0 %1522
  %1524 = vrot.lane.b32.xlu0 %v1201, 64
  %v1525 = vpop.permute.xlu0 %1524
  %1526 = vrot.lane.b32.xlu0 %v1202, 64
  %v1527 = vpop.permute.xlu0 %1526
  %1528 = vrot.lane.b32.xlu0 %v1203, 64
  %v1529 = vpop.permute.xlu0 %1528
  %1530 = vrot.lane.b32.xlu0 %v1204, 64
  %v1531 = vpop.permute.xlu0 %1530
  %v1541 = vsel %vm421, %v1506, 0
  %v1544 = vsel %vm421, %v1507, 0
  %1546 = vmatprep.subr.mxu0 0.0
  %1547 = vmatpush1.msra.mxu0 %v1517
  %1548 = vmatprep.subr.mxu0 0.0
  %1549 = vmatpush1.msra.mxu0 %v1519
  %1550 = vmatprep.subr.mxu0 0.0
  %1551 = vmatpush1.msra.mxu0 %v1521
  %1552 = vmatprep.subr.mxu0 0.0
  %1553 = vmatpush1.msra.mxu0 %v1523
  %1554 = vmatprep.subr.mxu0 0.0
  %1555 = vmatpush1.msra.mxu0 %v1525
  %1556 = vmatprep.subr.mxu0 0.0
  %1557 = vmatpush1.msra.mxu0 %v1527
  %1558 = vmatprep.subr.mxu0 0.0
  %1559 = vmatpush1.msra.mxu0 %v1529
  %1560 = vmatprep.subr.mxu0 0.0
  %1561 = vmatpush1.msra.mxu0 %v1531
  %1562 = vmatprep.subr.mxu0 0.0
  %1563 = vmatpush1.msra.mxu0 0.0
  %1564 = vmatprep.subr.mxu0 0.0
  %1565 = vmatpush1.msra.mxu0 0.0
  %1566 = vmatprep.subr.mxu0 0.0
  %1567 = vmatpush1.msra.mxu0 0.0
  %1568 = vmatprep.subr.mxu0 0.0
  %1569 = vmatpush1.msra.mxu0 0.0
  %1570 = vmatprep.subr.mxu0 0.0
  %1571 = vmatpush1.msra.mxu0 0.0
  %1572 = vmatprep.subr.mxu0 0.0
  %1573 = vmatpush1.msra.mxu0 0.0
  %1574 = vmatprep.subr.mxu0 0.0
  %1575 = vmatpush1.msra.mxu0 0.0
  %1576 = vmatprep.subr.mxu0 0.0
  %1577 = vmatpush1.msra.mxu0 0.0
  %1578 = vmatprep.subr.mxu0 0.0
  %1579 = vmatpush1.msra.mxu0 0.0
  %1580 = vmatprep.subr.mxu0 0.0
  %1581 = vmatpush1.msra.mxu0 0.0
  %1582 = vmatprep.subr.mxu0 0.0
  %1583 = vmatpush1.msra.mxu0 0.0
  %1584 = vmatprep.subr.mxu0 0.0
  %1585 = vmatpush1.msra.mxu0 0.0
  %1586 = vmatprep.subr.mxu0 0.0
  %1587 = vmatpush1.msra.mxu0 0.0
  %1588 = vmatprep.subr.mxu0 0.0
  %1589 = vmatpush1.msra.mxu0 0.0
  %1590 = vmatprep.subr.mxu0 0.0
  %1591 = vmatpush1.msra.mxu0 0.0
  %1592 = vmatprep.subr.mxu0 0.0
  %1593 = vmatpush1.msra.mxu0 0.0
  %1594 = vmatprep.subr.mxu0 0.0
  %1595 = vmatpush1.msra.mxu0 0.0
  %1596 = vmatprep.subr.mxu0 0.0
  %1597 = vmatpush1.msra.mxu0 0.0
  %1598 = vmatprep.subr.mxu0 0.0
  %1599 = vmatpush1.msra.mxu0 0.0
  %1600 = vmatprep.subr.mxu0 0.0
  %1601 = vmatpush1.msra.mxu0 0.0
  %1602 = vmatprep.subr.mxu0 0.0
  %1603 = vmatpush1.msra.mxu0 0.0
  %1604 = vmatprep.subr.mxu0 0.0
  %1605 = vmatpush1.msra.mxu0 0.0
  %1606 = vmatprep.subr.mxu0 0.0
  %1607 = vmatpush1.msra.mxu0 0.0
  %1608 = vmatprep.subr.mxu0 0.0
  %1609 = vmatpush1.msra.mxu0 0.0
  %1610 = vmatprep.mubr.f32.mxu0 0.0
  %1611 = vmatmul.mubr.f32.gmra.mrb[0].mxu0 %v1541
  %v1612 = vpop.f32.mrb[0].mxu0
  %v1613 = vadd.f32 0.0, %v1612
  %v1614 = vpop.f32.mrb[0].mxu0
  %1615 = vmatprep.mubr.f32.mxu0 0.0
  %1616 = vmatmul.mubr.f32.gmra.mrb[0].mxu0 %v1544
  %v1617 = vpop.f32.mrb[0].mxu0
  %v1618 = vadd.f32 0.0, %v1617
  %v1619 = vpop.f32.mrb[0].mxu0
  %1620 = vdwg.mxu0
  %v1621 = vld [vmem:[%s3 + $0x90] sm:$0xff]
  %v1622 = vld [vmem:[%s3 + $0x98] sm:$0xff]
  %v1623 = vld [vmem:[%s3 + $0xa0] sm:$0xff]
  %v1624 = vld [vmem:[%s3 + $0xa8] sm:$0xff]
  %v1625 = vld [vmem:[%s4 + $0x28] sm:$0x1]
  %v1626 = vlaneseq
  %v1627 = vshrl.u32 %v1626, 7
  %v1628 = vsub.s32 0, %v1627
  %v1629 = vrot.slane %v1625, %v1628
  %v1631 = vsel %vm142, %v1613, 0
  %v1634 = vsel %vm142, %v1618, 0
  %1636 = vmatprep.subr.mxu0 0.0
  %1637 = vmatpush1.msra.mxu0 %v1621
  %1638 = vmatprep.subr.mxu0 0.0
  %1639 = vmatpush1.msra.mxu0 %v1622
  %1640 = vmatprep.subr.mxu0 0.0
  %1641 = vmatpush1.msra.mxu0 %v1623
  %1642 = vmatprep.subr.mxu0 0.0
  %1643 = vmatpush1.msra.mxu0 %v1624
  %1644 = vmatprep.subr.mxu0 0.0
  %1645 = vmatpush1.msra.mxu0 0.0
  %1646 = vmatprep.subr.mxu0 0.0
  %1647 = vmatpush1.msra.mxu0 0.0
  %1648 = vmatprep.subr.mxu0 0.0
  %1649 = vmatpush1.msra.mxu0 0.0
  %1650 = vmatprep.subr.mxu0 0.0
  %1651 = vmatpush1.msra.mxu0 0.0
  %1652 = vmatprep.subr.mxu0 0.0
  %1653 = vmatpush1.msra.mxu0 0.0
  %1654 = vmatprep.subr.mxu0 0.0
  %1655 = vmatpush1.msra.mxu0 0.0
  %1656 = vmatprep.subr.mxu0 0.0
  %1657 = vmatpush1.msra.mxu0 0.0
  %1658 = vmatprep.subr.mxu0 0.0
  %1659 = vmatpush1.msra.mxu0 0.0
  %1660 = vmatprep.subr.mxu0 0.0
  %1661 = vmatpush1.msra.mxu0 0.0
  %1662 = vmatprep.subr.mxu0 0.0
  %1663 = vmatpush1.msra.mxu0 0.0
  %1664 = vmatprep.subr.mxu0 0.0
  %1665 = vmatpush1.msra.mxu0 0.0
  %1666 = vmatprep.subr.mxu0 0.0
  %1667 = vmatpush1.msra.mxu0 0.0
  %1668 = vmatprep.subr.mxu0 0.0
  %1669 = vmatpush1.msra.mxu0 0.0
  %1670 = vmatprep.subr.mxu0 0.0
  %1671 = vmatpush1.msra.mxu0 0.0
  %1672 = vmatprep.subr.mxu0 0.0
  %1673 = vmatpush1.msra.mxu0 0.0
  %1674 = vmatprep.subr.mxu0 0.0
  %1675 = vmatpush1.msra.mxu0 0.0
  %1676 = vmatprep.subr.mxu0 0.0
  %1677 = vmatpush1.msra.mxu0 0.0
  %1678 = vmatprep.subr.mxu0 0.0
  %1679 = vmatpush1.msra.mxu0 0.0
  %1680 = vmatprep.subr.mxu0 0.0
  %1681 = vmatpush1.msra.mxu0 0.0
  %1682 = vmatprep.subr.mxu0 0.0
  %1683 = vmatpush1.msra.mxu0 0.0
  %1684 = vmatprep.subr.mxu0 0.0
  %1685 = vmatpush1.msra.mxu0 0.0
  %1686 = vmatprep.subr.mxu0 0.0
  %1687 = vmatpush1.msra.mxu0 0.0
  %1688 = vmatprep.subr.mxu0 0.0
  %1689 = vmatpush1.msra.mxu0 0.0
  %1690 = vmatprep.subr.mxu0 0.0
  %1691 = vmatpush1.msra.mxu0 0.0
  %1692 = vmatprep.subr.mxu0 0.0
  %1693 = vmatpush1.msra.mxu0 0.0
  %1694 = vmatprep.subr.mxu0 0.0
  %1695 = vmatpush1.msra.mxu0 0.0
  %1696 = vmatprep.subr.mxu0 0.0
  %1697 = vmatpush1.msra.mxu0 0.0
  %1698 = vmatprep.subr.mxu0 0.0
  %1699 = vmatpush1.msra.mxu0 0.0
  %1700 = vmatprep.mubr.f32.mxu0 0.0
  %1701 = vmatmul.mubr.f32.gmra.mrb[0].mxu0 %v1631
  %v1702 = vpop.f32.mrb[0].mxu0
  %v1703 = vadd.f32 %v1629, %v1702
  %v1704 = vpop.f32.mrb[0].mxu0
  %1705 = vmatprep.mubr.f32.mxu0 0.0
  %1706 = vmatmul.mubr.f32.gmra.mrb[0].mxu0 %v1634
  %v1707 = vpop.f32.mrb[0].mxu0
  %v1708 = vadd.f32 %v1629, %v1707
  %v1709 = vpop.f32.mrb[0].mxu0
  %1710 = vdwg.mxu0
  %v1711 = vadd.f32 %v1097, %v1703
  %v1712 = vadd.f32 %v1098, %v1708
  %v1713 = vsel %vm142, %v1711, 0.0
  %1714 = vadd.xlane.f32.xlu0 %v1713
  %v1715 = vpop.xlane.xlu0 %1714
  %v1716 = vsel %vm142, %v1712, 0.0
  %1717 = vadd.xlane.f32.xlu0 %v1716
  %v1718 = vpop.xlane.xlu0 %1717
  %v1719 = vmul.f32 %v1715, %v836
  %v1720 = vmul.f32 %v1718, %v836
  %v1721 = vsub.f32 %v1711, %v1719
  %v1722 = vsub.f32 %v1712, %v1720
  %v1723 = vmul.f32 %v1721, %v1721
  %v1724 = vmul.f32 %v1722, %v1722
  %v1725 = vsel %vm142, %v1723, 0.0
  %1726 = vadd.xlane.f32.xlu0 %v1725
  %v1727 = vpop.xlane.xlu0 %1726
  %v1728 = vsel %vm142, %v1724, 0.0
  %1729 = vadd.xlane.f32.xlu0 %v1728
  %v1730 = vpop.xlane.xlu0 %1729
  %v1731 = vmul.f32 %v1727, %v836
  %v1732 = vmul.f32 %v1730, %v836
  %v1733 = vadd.f32 %v1731, 1e-05
  %v1734 = vadd.f32 %v1732, 1e-05
  %v1735 = vrsqrt.pop %v1733
  %v1736 = vrsqrt.pop %v1734
  %v1737 = vmul.f32 %v1721, %v1735
  %v1738 = vmul.f32 %v1722, %v1736
  %v1739 = vld [vmem:[%s4 + $0xd0] sm:$0x1]
  %v1740 = vlaneseq
  %v1741 = vshrl.u32 %v1740, 7
  %v1742 = vsub.s32 0, %v1741
  %v1743 = vrot.slane %v1739, %v1742
  %v1744 = vmul.f32 %v1737, %v1743
  %v1745 = vmul.f32 %v1738, %v1743
  %v1746 = vld [vmem:[%s4 + $0xd8] sm:$0x1]
  %v1747 = vlaneseq
  %v1748 = vshrl.u32 %v1747, 7
  %v1749 = vsub.s32 0, %v1748
  %v1750 = vrot.slane %v1746, %v1749
  %v1751 = vadd.f32 %v1744, %v1750
  %v1752 = vadd.f32 %v1745, %v1750
  %v1753 = vld [vmem:[%s3 + $0x210] sm:$0xff]
  %v1754 = vld [vmem:[%s3 + $0x218] sm:$0xff]
  %v1755 = vld [vmem:[%s3 + $0x220] sm:$0xff]
  %v1756 = vld [vmem:[%s3 + $0x228] sm:$0xff]
  %v1757 = vld [vmem:[%s4 + $0x80] sm:$0x1]
  %v1758 = vlaneseq
  %v1759 = vshrl.u32 %v1758, 7
  %v1760 = vsub.s32 0, %v1759
  %v1761 = vrot.slane %v1757, %v1760
  %v1763 = vsel %vm142, %v1751, 0
  %v1766 = vsel %vm142, %v1752, 0
  %1768 = vmatprep.subr.mxu0 0.0
  %1769 = vmatpush1.msra.mxu0 %v1753
  %1770 = vmatprep.subr.mxu0 0.0
  %1771 = vmatpush1.msra.mxu0 %v1754
  %1772 = vmatprep.subr.mxu0 0.0
  %1773 = vmatpush1.msra.mxu0 %v1755
  %1774 = vmatprep.subr.mxu0 0.0
  %1775 = vmatpush1.msra.mxu0 %v1756
  %1776 = vmatprep.subr.mxu0 0.0
  %1777 = vmatpush1.msra.mxu0 0.0
  %1778 = vmatprep.subr.mxu0 0.0
  %1779 = vmatpush1.msra.mxu0 0.0
  %1780 = vmatprep.subr.mxu0 0.0
  %1781 = vmatpush1.msra.mxu0 0.0
  %1782 = vmatprep.subr.mxu0 0.0
  %1783 = vmatpush1.msra.mxu0 0.0
  %1784 = vmatprep.subr.mxu0 0.0
  %1785 = vmatpush1.msra.mxu0 0.0
  %1786 = vmatprep.subr.mxu0 0.0
  %1787 = vmatpush1.msra.mxu0 0.0
  %1788 = vmatprep.subr.mxu0 0.0
  %1789 = vmatpush1.msra.mxu0 0.0
  %1790 = vmatprep.subr.mxu0 0.0
  %1791 = vmatpush1.msra.mxu0 0.0
  %1792 = vmatprep.subr.mxu0 0.0
  %1793 = vmatpush1.msra.mxu0 0.0
  %1794 = vmatprep.subr.mxu0 0.0
  %1795 = vmatpush1.msra.mxu0 0.0
  %1796 = vmatprep.subr.mxu0 0.0
  %1797 = vmatpush1.msra.mxu0 0.0
  %1798 = vmatprep.subr.mxu0 0.0
  %1799 = vmatpush1.msra.mxu0 0.0
  %1800 = vmatprep.subr.mxu0 0.0
  %1801 = vmatpush1.msra.mxu0 0.0
  %1802 = vmatprep.subr.mxu0 0.0
  %1803 = vmatpush1.msra.mxu0 0.0
  %1804 = vmatprep.subr.mxu0 0.0
  %1805 = vmatpush1.msra.mxu0 0.0
  %1806 = vmatprep.subr.mxu0 0.0
  %1807 = vmatpush1.msra.mxu0 0.0
  %1808 = vmatprep.subr.mxu0 0.0
  %1809 = vmatpush1.msra.mxu0 0.0
  %1810 = vmatprep.subr.mxu0 0.0
  %1811 = vmatpush1.msra.mxu0 0.0
  %1812 = vmatprep.subr.mxu0 0.0
  %1813 = vmatpush1.msra.mxu0 0.0
  %1814 = vmatprep.subr.mxu0 0.0
  %1815 = vmatpush1.msra.mxu0 0.0
  %1816 = vmatprep.subr.mxu0 0.0
  %1817 = vmatpush1.msra.mxu0 0.0
  %1818 = vmatprep.subr.mxu0 0.0
  %1819 = vmatpush1.msra.mxu0 0.0
  %1820 = vmatprep.subr.mxu0 0.0
  %1821 = vmatpush1.msra.mxu0 0.0
  %1822 = vmatprep.subr.mxu0 0.0
  %1823 = vmatpush1.msra.mxu0 0.0
  %1824 = vmatprep.subr.mxu0 0.0
  %1825 = vmatpush1.msra.mxu0 0.0
  %1826 = vmatprep.subr.mxu0 0.0
  %1827 = vmatpush1.msra.mxu0 0.0
  %1828 = vmatprep.subr.mxu0 0.0
  %1829 = vmatpush1.msra.mxu0 0.0
  %1830 = vmatprep.subr.mxu0 0.0
  %1831 = vmatpush1.msra.mxu0 0.0
  %1832 = vmatprep.mubr.f32.mxu0 0.0
  %1833 = vmatmul.mubr.f32.gmra.mrb[0].mxu0 %v1763
  %v1834 = vpop.f32.mrb[0].mxu0
  %v1835 = vadd.f32 %v1761, %v1834
  %v1836 = vpop.f32.mrb[0].mxu0
  %1837 = vmatprep.mubr.f32.mxu0 0.0
  %1838 = vmatmul.mubr.f32.gmra.mrb[0].mxu0 %v1766
  %v1839 = vpop.f32.mrb[0].mxu0
  %v1840 = vadd.f32 %v1761, %v1839
  %v1841 = vpop.f32.mrb[0].mxu0
  %1842 = vdwg.mxu0
  %v1843 = vmax.f32 %v1835, 0.0
  %v1844 = vmax.f32 %v1840, 0.0
  %v1845 = vld [vmem:[%s3 + $0x230] sm:$0xff]
  %v1846 = vld [vmem:[%s3 + $0x238] sm:$0xff]
  %v1847 = vld [vmem:[%s3 + $0x240] sm:$0xff]
  %v1848 = vld [vmem:[%s3 + $0x248] sm:$0xff]
  %v1849 = vld [vmem:[%s3 + $0x250] sm:$0xff]
  %v1850 = vld [vmem:[%s3 + $0x258] sm:$0xff]
  %v1851 = vld [vmem:[%s3 + $0x260] sm:$0xff]
  %v1852 = vld [vmem:[%s3 + $0x268] sm:$0xff]
  %v1853 = vld [vmem:[%s4 + $0x88] sm:$0x1]
  %v1854 = vlaneseq
  %v1855 = vshrl.u32 %v1854, 7
  %v1856 = vsub.s32 0, %v1855
  %v1857 = vrot.slane %v1853, %v1856
  %v1859 = vsel %vm421, %v1843, 0
  %v1862 = vsel %vm421, %v1844, 0
  %1864 = vmatprep.subr.mxu0 0.0
  %1865 = vmatpush1.msra.mxu0 %v1845
  %1866 = vmatprep.subr.mxu0 0.0
  %1867 = vmatpush1.msra.mxu0 %v1846
  %1868 = vmatprep.subr.mxu0 0.0
  %1869 = vmatpush1.msra.mxu0 %v1847
  %1870 = vmatprep.subr.mxu0 0.0
  %1871 = vmatpush1.msra.mxu0 %v1848
  %1872 = vmatprep.subr.mxu0 0.0
  %1873 = vmatpush1.msra.mxu0 %v1849
  %1874 = vmatprep.subr.mxu0 0.0
  %1875 = vmatpush1.msra.mxu0 %v1850
  %1876 = vmatprep.subr.mxu0 0.0
  %1877 = vmatpush1.msra.mxu0 %v1851
  %1878 = vmatprep.subr.mxu0 0.0
  %1879 = vmatpush1.msra.mxu0 %v1852
  %1880 = vmatprep.subr.mxu0 0.0
  %1881 = vmatpush1.msra.mxu0 0.0
  %1882 = vmatprep.subr.mxu0 0.0
  %1883 = vmatpush1.msra.mxu0 0.0
  %1884 = vmatprep.subr.mxu0 0.0
  %1885 = vmatpush1.msra.mxu0 0.0
  %1886 = vmatprep.subr.mxu0 0.0
  %1887 = vmatpush1.msra.mxu0 0.0
  %1888 = vmatprep.subr.mxu0 0.0
  %1889 = vmatpush1.msra.mxu0 0.0
  %1890 = vmatprep.subr.mxu0 0.0
  %1891 = vmatpush1.msra.mxu0 0.0
  %1892 = vmatprep.subr.mxu0 0.0
  %1893 = vmatpush1.msra.mxu0 0.0
  %1894 = vmatprep.subr.mxu0 0.0
  %1895 = vmatpush1.msra.mxu0 0.0
  %1896 = vmatprep.subr.mxu0 0.0
  %1897 = vmatpush1.msra.mxu0 0.0
  %1898 = vmatprep.subr.mxu0 0.0
  %1899 = vmatpush1.msra.mxu0 0.0
  %1900 = vmatprep.subr.mxu0 0.0
  %1901 = vmatpush1.msra.mxu0 0.0
  %1902 = vmatprep.subr.mxu0 0.0
  %1903 = vmatpush1.msra.mxu0 0.0
  %1904 = vmatprep.subr.mxu0 0.0
  %1905 = vmatpush1.msra.mxu0 0.0
  %1906 = vmatprep.subr.mxu0 0.0
  %1907 = vmatpush1.msra.mxu0 0.0
  %1908 = vmatprep.subr.mxu0 0.0
  %1909 = vmatpush1.msra.mxu0 0.0
  %1910 = vmatprep.subr.mxu0 0.0
  %1911 = vmatpush1.msra.mxu0 0.0
  %1912 = vmatprep.subr.mxu0 0.0
  %1913 = vmatpush1.msra.mxu0 0.0
  %1914 = vmatprep.subr.mxu0 0.0
  %1915 = vmatpush1.msra.mxu0 0.0
  %1916 = vmatprep.subr.mxu0 0.0
  %1917 = vmatpush1.msra.mxu0 0.0
  %1918 = vmatprep.subr.mxu0 0.0
  %1919 = vmatpush1.msra.mxu0 0.0
  %1920 = vmatprep.subr.mxu0 0.0
  %1921 = vmatpush1.msra.mxu0 0.0
  %1922 = vmatprep.subr.mxu0 0.0
  %1923 = vmatpush1.msra.mxu0 0.0
  %1924 = vmatprep.subr.mxu0 0.0
  %1925 = vmatpush1.msra.mxu0 0.0
  %1926 = vmatprep.subr.mxu0 0.0
  %1927 = vmatpush1.msra.mxu0 0.0
  %1928 = vmatprep.mubr.f32.mxu0 0.0
  %1929 = vmatmul.mubr.f32.gmra.mrb[0].mxu0 %v1859
  %v1930 = vpop.f32.mrb[0].mxu0
  %v1931 = vadd.f32 %v1857, %v1930
  %v1932 = vpop.f32.mrb[0].mxu0
  %1933 = vmatprep.mubr.f32.mxu0 0.0
  %1934 = vmatmul.mubr.f32.gmra.mrb[0].mxu0 %v1862
  %v1935 = vpop.f32.mrb[0].mxu0
  %v1936 = vadd.f32 %v1857, %v1935
  %v1937 = vpop.f32.mrb[0].mxu0
  %1938 = vdwg.mxu0
  %v1939 = vadd.f32 %v1751, %v1931
  %v1940 = vadd.f32 %v1752, %v1936
  %v1941 = vsel %vm142, %v1939, 0.0
  %1942 = vadd.xlane.f32.xlu0 %v1941
  %v1943 = vpop.xlane.xlu0 %1942
  %v1944 = vsel %vm142, %v1940, 0.0
  %1945 = vadd.xlane.f32.xlu0 %v1944
  %v1946 = vpop.xlane.xlu0 %1945
  %v1947 = vmul.f32 %v1943, %v836
  %v1948 = vmul.f32 %v1946, %v836
  %v1949 = vsub.f32 %v1939, %v1947
  %v1950 = vsub.f32 %v1940, %v1948
  %v1951 = vmul.f32 %v1949, %v1949
  %v1952 = vmul.f32 %v1950, %v1950
  %v1953 = vsel %vm142, %v1951, 0.0
  %1954 = vadd.xlane.f32.xlu0 %v1953
  %v1955 = vpop.xlane.xlu0 %1954
  %v1956 = vsel %vm142, %v1952, 0.0
  %1957 = vadd.xlane.f32.xlu0 %v1956
  %v1958 = vpop.xlane.xlu0 %1957
  %v1959 = vmul.f32 %v1955, %v836
  %v1960 = vmul.f32 %v1958, %v836
  %v1961 = vadd.f32 %v1959, 1e-05
  %v1962 = vadd.f32 %v1960, 1e-05
  %v1963 = vrsqrt.pop %v1961
  %v1964 = vrsqrt.pop %v1962
  %v1965 = vmul.f32 %v1949, %v1963
  %v1966 = vmul.f32 %v1950, %v1964
  %v1967 = vld [vmem:[%s4 + $0xe0] sm:$0x1]
  %v1968 = vlaneseq
  %v1969 = vshrl.u32 %v1968, 7
  %v1970 = vsub.s32 0, %v1969
  %v1971 = vrot.slane %v1967, %v1970
  %v1972 = vmul.f32 %v1965, %v1971
  %v1973 = vmul.f32 %v1966, %v1971
  %v1974 = vld [vmem:[%s4 + $0xe8] sm:$0x1]
  %v1975 = vlaneseq
  %v1976 = vshrl.u32 %v1975, 7
  %v1977 = vsub.s32 0, %v1976
  %v1978 = vrot.slane %v1974, %v1977
  %v1979 = vadd.f32 %v1972, %v1978
  %v1980 = vadd.f32 %v1973, %v1978
  %v1981 = vld [vmem:[%s3 + $0xb0] sm:$0xff]
  %v1982 = vld [vmem:[%s3 + $0xb8] sm:$0xff]
  %v1983 = vld [vmem:[%s3 + $0xc0] sm:$0xff]
  %v1984 = vld [vmem:[%s3 + $0xc8] sm:$0xff]
  %v1985 = vld [vmem:[%s4 + $0x30] sm:$0x1]
  %v1986 = vlaneseq
  %v1987 = vshrl.u32 %v1986, 7
  %v1988 = vsub.s32 0, %v1987
  %v1989 = vrot.slane %v1985, %v1988
  %1990 = vmatprep.subr.mxu0 0.0
  %1991 = vmatpush1.msra.mxu0 %v1981
  %1992 = vmatprep.subr.mxu0 0.0
  %1993 = vmatpush1.msra.mxu0 %v1982
  %1994 = vmatprep.subr.mxu0 0.0
  %1995 = vmatpush1.msra.mxu0 %v1983
  %1996 = vmatprep.subr.mxu0 0.0
  %1997 = vmatpush1.msra.mxu0 %v1984
  %1998 = vmatprep.subr.mxu0 0.0
  %1999 = vmatpush1.msra.mxu0 0.0
  %2000 = vmatprep.subr.mxu0 0.0
  %2001 = vmatpush1.msra.mxu0 0.0
  %2002 = vmatprep.subr.mxu0 0.0
  %2003 = vmatpush1.msra.mxu0 0.0
  %2004 = vmatprep.subr.mxu0 0.0
  %2005 = vmatpush1.msra.mxu0 0.0
  %2006 = vmatprep.subr.mxu0 0.0
  %2007 = vmatpush1.msra.mxu0 0.0
  %2008 = vmatprep.subr.mxu0 0.0
  %2009 = vmatpush1.msra.mxu0 0.0
  %2010 = vmatprep.subr.mxu0 0.0
  %2011 = vmatpush1.msra.mxu0 0.0
  %2012 = vmatprep.subr.mxu0 0.0
  %2013 = vmatpush1.msra.mxu0 0.0
  %2014 = vmatprep.subr.mxu0 0.0
  %2015 = vmatpush1.msra.mxu0 0.0
  %2016 = vmatprep.subr.mxu0 0.0
  %2017 = vmatpush1.msra.mxu0 0.0
  %2018 = vmatprep.subr.mxu0 0.0
  %2019 = vmatpush1.msra.mxu0 0.0
  %2020 = vmatprep.subr.mxu0 0.0
  %2021 = vmatpush1.msra.mxu0 0.0
  %2022 = vmatprep.subr.mxu0 0.0
  %2023 = vmatpush1.msra.mxu0 0.0
  %2024 = vmatprep.subr.mxu0 0.0
  %2025 = vmatpush1.msra.mxu0 0.0
  %2026 = vmatprep.subr.mxu0 0.0
  %2027 = vmatpush1.msra.mxu0 0.0
  %2028 = vmatprep.subr.mxu0 0.0
  %2029 = vmatpush1.msra.mxu0 0.0
  %2030 = vmatprep.subr.mxu0 0.0
  %2031 = vmatpush1.msra.mxu0 0.0
  %2032 = vmatprep.subr.mxu0 0.0
  %2033 = vmatpush1.msra.mxu0 0.0
  %2034 = vmatprep.subr.mxu0 0.0
  %2035 = vmatpush1.msra.mxu0 0.0
  %2036 = vmatprep.subr.mxu0 0.0
  %2037 = vmatpush1.msra.mxu0 0.0
  %2038 = vmatprep.subr.mxu0 0.0
  %2039 = vmatpush1.msra.mxu0 0.0
  %2040 = vmatprep.subr.mxu0 0.0
  %2041 = vmatpush1.msra.mxu0 0.0
  %2042 = vmatprep.subr.mxu0 0.0
  %2043 = vmatpush1.msra.mxu0 0.0
  %2044 = vmatprep.subr.mxu0 0.0
  %2045 = vmatpush1.msra.mxu0 0.0
  %2046 = vmatprep.subr.mxu0 0.0
  %2047 = vmatpush1.msra.mxu0 0.0
  %2048 = vmatprep.subr.mxu0 0.0
  %2049 = vmatpush1.msra.mxu0 0.0
  %2050 = vmatprep.subr.mxu0 0.0
  %2051 = vmatpush1.msra.mxu0 0.0
  %2052 = vmatprep.subr.mxu0 0.0
  %2053 = vmatpush1.msra.mxu0 0.0
  %2054 = vmatprep.mubr.f32.mxu0 0.0
  %2055 = vmatmul.mubr.f32.gmra.mrb[0].mxu0 %v144
  %v2056 = vpop.f32.mrb[0].mxu0
  %v2057 = vadd.f32 %v1989, %v2056
  %v2058 = vpop.f32.mrb[0].mxu0
  %2059 = vmatprep.mubr.f32.mxu0 0.0
  %2060 = vmatmul.mubr.f32.gmra.mrb[0].mxu0 %v147
  %v2061 = vpop.f32.mrb[0].mxu0
  %v2062 = vadd.f32 %v1989, %v2061
  %v2063 = vpop.f32.mrb[0].mxu0
  %2064 = vdwg.mxu0
  %v2065 = vmul.f32 %v2057, %v233
  %v2066 = vmul.f32 %v2062, %v235
  %v2067 = vmul.f32 %v2057, %v237
  %v2068 = vmul.f32 %v2062, %v239
  %v2069 = vmul.f32 %v2057, %v241
  %v2070 = vmul.f32 %v2062, %v243
  %v2071 = vmul.f32 %v2057, %v245
  %v2072 = vmul.f32 %v2062, %v247
  %v2073 = vmul.f32 %v2057, %v265
  %v2074 = vmul.f32 %v2062, %v267
  %v2075 = vmul.f32 %v2057, %v269
  %v2076 = vmul.f32 %v2062, %v271
  %v2077 = vmul.f32 %v2057, %v273
  %v2078 = vmul.f32 %v2062, %v275
  %v2079 = vmul.f32 %v2057, %v277
  %v2080 = vmul.f32 %v2062, %v279
  %2089 = vrot.lane.b32.xlu0 %v2065, 96
  %v2090 = vpop.permute.xlu0 %2089
  %2091 = vrot.lane.b32.xlu0 %v2066, 96
  %v2092 = vpop.permute.xlu0 %2091
  %2093 = vrot.lane.b32.xlu0 %v2067, 96
  %v2094 = vpop.permute.xlu0 %2093
  %2095 = vrot.lane.b32.xlu0 %v2068, 96
  %v2096 = vpop.permute.xlu0 %2095
  %2097 = vrot.lane.b32.xlu0 %v2069, 96
  %v2098 = vpop.permute.xlu0 %2097
  %2099 = vrot.lane.b32.xlu0 %v2070, 96
  %v2100 = vpop.permute.xlu0 %2099
  %2101 = vrot.lane.b32.xlu0 %v2071, 96
  %v2102 = vpop.permute.xlu0 %2101
  %2103 = vrot.lane.b32.xlu0 %v2072, 96
  %v2104 = vpop.permute.xlu0 %2103
  %v2106 = vsel %vm142, %v2057, 0
  %v2109 = vsel %vm142, %v2062, 0
  %v2111 = vsel %vm142, %v2090, 0
  %v2113 = vsel %vm142, %v2092, 0
  %v2115 = vsel %vm142, %v2094, 0
  %v2117 = vsel %vm142, %v2096, 0
  %v2119 = vsel %vm142, %v2098, 0
  %v2121 = vsel %vm142, %v2100, 0
  %v2123 = vsel %vm142, %v2102, 0
  %v2125 = vsel %vm142, %v2104, 0
  %2127 = vmatprep.subr.mxu0 0.0
  %2128 = vmatpush1.xpose.msra.mxu0 %v2111
  %2129 = vmatprep.subr.mxu0 0.0
  %2130 = vmatpush1.xpose.msra.mxu0 %v2113
  %2131 = vmatprep.subr.mxu0 0.0
  %2132 = vmatpush1.xpose.msra.mxu0 %v2115
  %2133 = vmatprep.subr.mxu0 0.0
  %2134 = vmatpush1.xpose.msra.mxu0 %v2117
  %2135 = vmatprep.subr.mxu0 0.0
  %2136 = vmatpush1.xpose.msra.mxu0 %v2119
  %2137 = vmatprep.subr.mxu0 0.0
  %2138 = vmatpush1.xpose.msra.mxu0 %v2121
  %2139 = vmatprep.subr.mxu0 0.0
  %2140 = vmatpush1.xpose.msra.mxu0 %v2123
  %2141 = vmatprep.subr.mxu0 0.0
  %2142 = vmatpush1.xpose.msra.mxu0 %v2125
  %2143 = vmatprep.subr.mxu0 0.0
  %2144 = vmatpush1.xpose.msra.mxu0 0.0
  %2145 = vmatprep.subr.mxu0 0.0
  %2146 = vmatpush1.xpose.msra.mxu0 0.0
  %2147 = vmatprep.subr.mxu0 0.0
  %2148 = vmatpush1.xpose.msra.mxu0 0.0
  %2149 = vmatprep.subr.mxu0 0.0
  %2150 = vmatpush1.xpose.msra.mxu0 0.0
  %2151 = vmatprep.subr.mxu0 0.0
  %2152 = vmatpush1.xpose.msra.mxu0 0.0
  %2153 = vmatprep.subr.mxu0 0.0
  %2154 = vmatpush1.xpose.msra.mxu0 0.0
  %2155 = vmatprep.subr.mxu0 0.0
  %2156 = vmatpush1.xpose.msra.mxu0 0.0
  %2157 = vmatprep.subr.mxu0 0.0
  %2158 = vmatpush1.xpose.msra.mxu0 0.0
  %2159 = vmatprep.subr.mxu0 0.0
  %2160 = vmatpush1.xpose.msra.mxu0 0.0
  %2161 = vmatprep.subr.mxu0 0.0
  %2162 = vmatpush1.xpose.msra.mxu0 0.0
  %2163 = vmatprep.subr.mxu0 0.0
  %2164 = vmatpush1.xpose.msra.mxu0 0.0
  %2165 = vmatprep.subr.mxu0 0.0
  %2166 = vmatpush1.xpose.msra.mxu0 0.0
  %2167 = vmatprep.subr.mxu0 0.0
  %2168 = vmatpush1.xpose.msra.mxu0 0.0
  %2169 = vmatprep.subr.mxu0 0.0
  %2170 = vmatpush1.xpose.msra.mxu0 0.0
  %2171 = vmatprep.subr.mxu0 0.0
  %2172 = vmatpush1.xpose.msra.mxu0 0.0
  %2173 = vmatprep.subr.mxu0 0.0
  %2174 = vmatpush1.xpose.msra.mxu0 0.0
  %2175 = vmatprep.subr.mxu0 0.0
  %2176 = vmatpush1.xpose.msra.mxu0 0.0
  %2177 = vmatprep.subr.mxu0 0.0
  %2178 = vmatpush1.xpose.msra.mxu0 0.0
  %2179 = vmatprep.subr.mxu0 0.0
  %2180 = vmatpush1.xpose.msra.mxu0 0.0
  %2181 = vmatprep.subr.mxu0 0.0
  %2182 = vmatpush1.xpose.msra.mxu0 0.0
  %2183 = vmatprep.subr.mxu0 0.0
  %2184 = vmatpush1.xpose.msra.mxu0 0.0
  %2185 = vmatprep.subr.mxu0 0.0
  %2186 = vmatpush1.xpose.msra.mxu0 0.0
  %2187 = vmatprep.subr.mxu0 0.0
  %2188 = vmatpush1.xpose.msra.mxu0 0.0
  %2189 = vmatprep.subr.mxu0 0.0
  %2190 = vmatpush1.xpose.msra.mxu0 0.0
  %2191 = vmatprep.mubr.f32.mxu0 0.0
  %2192 = vmatmul.mubr.f32.gmra.mrb[0].mxu0 %v2106
  %v2193 = vpop.f32.mrb[0].mxu0
  %v2194 = vadd.f32 0.0, %v2193
  %v2195 = vpop.f32.mrb[0].mxu0
  %2196 = vmatprep.mubr.f32.mxu0 0.0
  %2197 = vmatmul.mubr.f32.gmra.mrb[0].mxu0 %v2109
  %v2198 = vpop.f32.mrb[0].mxu0
  %v2199 = vadd.f32 0.0, %v2198
  %v2200 = vpop.f32.mrb[0].mxu0
  %2201 = vdwg.mxu0
  %v2202 = vmul.f32 %v2194, 0.35355338
  %v2203 = vmul.f32 %v2199, 0.35355338
  %v2204 = vadd.f32 %v2202, %v36
  %v2205 = vadd.f32 %v2203, %v37
  %v2206 = vsel %vm421, %v2204, -inf
  %2207 = vmax.xlane.f32.xlu0 %v2206
  %v2208 = vpop.xlane.xlu0 %2207
  %v2209 = vsel %vm421, %v2205, -inf
  %2210 = vmax.xlane.f32.xlu0 %v2209
  %v2211 = vpop.xlane.xlu0 %2210
  %v2212 = vsub.f32 %v2204, %v2208
  %v2213 = vsub.f32 %v2205, %v2211
  %v2214 = vmul.f32 %v2212, 1.442695
  %v2215 = vpow.pop %v2214
  %v2216 = vmul.f32 %v2213, 1.442695
  %v2217 = vpow.pop %v2216
  %v2219 = vsel %vm421, %v2215, 0
  %v2222 = vsel %vm421, %v2217, 0
  %2224 = vmatprep.subr.mxu0 0.0
  %2225 = vmatpush1.msra.mxu0 %v28
  %2226 = vmatprep.subr.mxu0 0.0
  %2227 = vmatpush1.msra.mxu0 %v29
  %2228 = vmatprep.subr.mxu0 0.0
  %2229 = vmatpush1.msra.mxu0 %v30
  %2230 = vmatprep.subr.mxu0 0.0
  %2231 = vmatpush1.msra.mxu0 %v31
  %2232 = vmatprep.subr.mxu0 0.0
  %2233 = vmatpush1.msra.mxu0 %v32
  %2234 = vmatprep.subr.mxu0 0.0
  %2235 = vmatpush1.msra.mxu0 %v33
  %2236 = vmatprep.subr.mxu0 0.0
  %2237 = vmatpush1.msra.mxu0 %v34
  %2238 = vmatprep.subr.mxu0 0.0
  %2239 = vmatpush1.msra.mxu0 %v35
  %2240 = vmatprep.subr.mxu0 0.0
  %2241 = vmatpush1.msra.mxu0 0.0
  %2242 = vmatprep.subr.mxu0 0.0
  %2243 = vmatpush1.msra.mxu0 0.0
  %2244 = vmatprep.subr.mxu0 0.0
  %2245 = vmatpush1.msra.mxu0 0.0
  %2246 = vmatprep.subr.mxu0 0.0
  %2247 = vmatpush1.msra.mxu0 0.0
  %2248 = vmatprep.subr.mxu0 0.0
  %2249 = vmatpush1.msra.mxu0 0.0
  %2250 = vmatprep.subr.mxu0 0.0
  %2251 = vmatpush1.msra.mxu0 0.0
  %2252 = vmatprep.subr.mxu0 0.0
  %2253 = vmatpush1.msra.mxu0 0.0
  %2254 = vmatprep.subr.mxu0 0.0
  %2255 = vmatpush1.msra.mxu0 0.0
  %2256 = vmatprep.subr.mxu0 0.0
  %2257 = vmatpush1.msra.mxu0 0.0
  %2258 = vmatprep.subr.mxu0 0.0
  %2259 = vmatpush1.msra.mxu0 0.0
  %2260 = vmatprep.subr.mxu0 0.0
  %2261 = vmatpush1.msra.mxu0 0.0
  %2262 = vmatprep.subr.mxu0 0.0
  %2263 = vmatpush1.msra.mxu0 0.0
  %2264 = vmatprep.subr.mxu0 0.0
  %2265 = vmatpush1.msra.mxu0 0.0
  %2266 = vmatprep.subr.mxu0 0.0
  %2267 = vmatpush1.msra.mxu0 0.0
  %2268 = vmatprep.subr.mxu0 0.0
  %2269 = vmatpush1.msra.mxu0 0.0
  %2270 = vmatprep.subr.mxu0 0.0
  %2271 = vmatpush1.msra.mxu0 0.0
  %2272 = vmatprep.subr.mxu0 0.0
  %2273 = vmatpush1.msra.mxu0 0.0
  %2274 = vmatprep.subr.mxu0 0.0
  %2275 = vmatpush1.msra.mxu0 0.0
  %2276 = vmatprep.subr.mxu0 0.0
  %2277 = vmatpush1.msra.mxu0 0.0
  %2278 = vmatprep.subr.mxu0 0.0
  %2279 = vmatpush1.msra.mxu0 0.0
  %2280 = vmatprep.subr.mxu0 0.0
  %2281 = vmatpush1.msra.mxu0 0.0
  %2282 = vmatprep.subr.mxu0 0.0
  %2283 = vmatpush1.msra.mxu0 0.0
  %2284 = vmatprep.subr.mxu0 0.0
  %2285 = vmatpush1.msra.mxu0 0.0
  %2286 = vmatprep.subr.mxu0 0.0
  %2287 = vmatpush1.msra.mxu0 0.0
  %2288 = vmatprep.mubr.f32.mxu0 0.0
  %2289 = vmatmul.mubr.f32.gmra.mrb[0].mxu0 %v2219
  %v2290 = vpop.f32.mrb[0].mxu0
  %v2291 = vadd.f32 0.0, %v2290
  %v2292 = vpop.f32.mrb[0].mxu0
  %2293 = vmatprep.mubr.f32.mxu0 0.0
  %2294 = vmatmul.mubr.f32.gmra.mrb[0].mxu0 %v2222
  %v2295 = vpop.f32.mrb[0].mxu0
  %v2296 = vadd.f32 0.0, %v2295
  %v2297 = vpop.f32.mrb[0].mxu0
  %2298 = vdwg.mxu0
  %v2299 = vrcp.pop %v2291
  %v2300 = vrcp.pop %v2296
  %v2302 = vsel %vm517, %v2299, 0
  %v2305 = vsel %vm517, %v2300, 0
  %2307 = vmatprep.subr.mxu0 0.0
  %2308 = vmatpush1.xpose.msra.mxu0 %v525
  %2309 = vmatprep.subr.mxu0 0.0
  %2310 = vmatpush1.xpose.msra.mxu0 %v528
  %2311 = vmatprep.subr.mxu0 0.0
  %2312 = vmatpush1.xpose.msra.mxu0 %v531
  %2313 = vmatprep.subr.mxu0 0.0
  %2314 = vmatpush1.xpose.msra.mxu0 %v534
  %2315 = vmatprep.subr.mxu0 0.0
  %2316 = vmatpush1.xpose.msra.mxu0 %v537
  %2317 = vmatprep.subr.mxu0 0.0
  %2318 = vmatpush1.xpose.msra.mxu0 %v540
  %2319 = vmatprep.subr.mxu0 0.0
  %2320 = vmatpush1.xpose.msra.mxu0 %v543
  %2321 = vmatprep.subr.mxu0 0.0
  %2322 = vmatpush1.xpose.msra.mxu0 %v546
  %2323 = vmatprep.subr.mxu0 0.0
  %2324 = vmatpush1.xpose.msra.mxu0 0.0
  %2325 = vmatprep.subr.mxu0 0.0
  %2326 = vmatpush1.xpose.msra.mxu0 0.0
  %2327 = vmatprep.subr.mxu0 0.0
  %2328 = vmatpush1.xpose.msra.mxu0 0.0
  %2329 = vmatprep.subr.mxu0 0.0
  %2330 = vmatpush1.xpose.msra.mxu0 0.0
  %2331 = vmatprep.subr.mxu0 0.0
  %2332 = vmatpush1.xpose.msra.mxu0 0.0
  %2333 = vmatprep.subr.mxu0 0.0
  %2334 = vmatpush1.xpose.msra.mxu0 0.0
  %2335 = vmatprep.subr.mxu0 0.0
  %2336 = vmatpush1.xpose.msra.mxu0 0.0
  %2337 = vmatprep.subr.mxu0 0.0
  %2338 = vmatpush1.xpose.msra.mxu0 0.0
  %2339 = vmatprep.subr.mxu0 0.0
  %2340 = vmatpush1.xpose.msra.mxu0 0.0
  %2341 = vmatprep.subr.mxu0 0.0
  %2342 = vmatpush1.xpose.msra.mxu0 0.0
  %2343 = vmatprep.subr.mxu0 0.0
  %2344 = vmatpush1.xpose.msra.mxu0 0.0
  %2345 = vmatprep.subr.mxu0 0.0
  %2346 = vmatpush1.xpose.msra.mxu0 0.0
  %2347 = vmatprep.subr.mxu0 0.0
  %2348 = vmatpush1.xpose.msra.mxu0 0.0
  %2349 = vmatprep.subr.mxu0 0.0
  %2350 = vmatpush1.xpose.msra.mxu0 0.0
  %2351 = vmatprep.subr.mxu0 0.0
  %2352 = vmatpush1.xpose.msra.mxu0 0.0
  %2353 = vmatprep.subr.mxu0 0.0
  %2354 = vmatpush1.xpose.msra.mxu0 0.0
  %2355 = vmatprep.subr.mxu0 0.0
  %2356 = vmatpush1.xpose.msra.mxu0 0.0
  %2357 = vmatprep.subr.mxu0 0.0
  %2358 = vmatpush1.xpose.msra.mxu0 0.0
  %2359 = vmatprep.subr.mxu0 0.0
  %2360 = vmatpush1.xpose.msra.mxu0 0.0
  %2361 = vmatprep.subr.mxu0 0.0
  %2362 = vmatpush1.xpose.msra.mxu0 0.0
  %2363 = vmatprep.subr.mxu0 0.0
  %2364 = vmatpush1.xpose.msra.mxu0 0.0
  %2365 = vmatprep.subr.mxu0 0.0
  %2366 = vmatpush1.xpose.msra.mxu0 0.0
  %2367 = vmatprep.subr.mxu0 0.0
  %2368 = vmatpush1.xpose.msra.mxu0 0.0
  %2369 = vmatprep.subr.mxu0 0.0
  %2370 = vmatpush1.xpose.msra.mxu0 0.0
  %2371 = vmatprep.mubr.f32.mxu0 0.0
  %2372 = vmatmul.mubr.f32.gmra.mrb[0].mxu0 %v2302
  %v2373 = vpop.f32.mrb[0].mxu0
  %v2374 = vadd.f32 0.0, %v2373
  %v2375 = vpop.f32.mrb[0].mxu0
  %2376 = vmatprep.mubr.f32.mxu0 0.0
  %2377 = vmatmul.mubr.f32.gmra.mrb[0].mxu0 %v2305
  %v2378 = vpop.f32.mrb[0].mxu0
  %v2379 = vadd.f32 0.0, %v2378
  %v2380 = vpop.f32.mrb[0].mxu0
  %2381 = vdwg.mxu0
  %v2382 = vmul.f32 %v2215, %v2374
  %v2383 = vmul.f32 %v2217, %v2379
  %2392 = vrot.lane.b32.xlu0 %v2073, 64
  %v2393 = vpop.permute.xlu0 %2392
  %2394 = vrot.lane.b32.xlu0 %v2074, 64
  %v2395 = vpop.permute.xlu0 %2394
  %2396 = vrot.lane.b32.xlu0 %v2075, 64
  %v2397 = vpop.permute.xlu0 %2396
  %2398 = vrot.lane.b32.xlu0 %v2076, 64
  %v2399 = vpop.permute.xlu0 %2398
  %2400 = vrot.lane.b32.xlu0 %v2077, 64
  %v2401 = vpop.permute.xlu0 %2400
  %2402 = vrot.lane.b32.xlu0 %v2078, 64
  %v2403 = vpop.permute.xlu0 %2402
  %2404 = vrot.lane.b32.xlu0 %v2079, 64
  %v2405 = vpop.permute.xlu0 %2404
  %2406 = vrot.lane.b32.xlu0 %v2080, 64
  %v2407 = vpop.permute.xlu0 %2406
  %v2417 = vsel %vm421, %v2382, 0
  %v2420 = vsel %vm421, %v2383, 0
  %2422 = vmatprep.subr.mxu0 0.0
  %2423 = vmatpush1.msra.mxu0 %v2393
  %2424 = vmatprep.subr.mxu0 0.0
  %2425 = vmatpush1.msra.mxu0 %v2395
  %2426 = vmatprep.subr.mxu0 0.0
  %2427 = vmatpush1.msra.mxu0 %v2397
  %2428 = vmatprep.subr.mxu0 0.0
  %2429 = vmatpush1.msra.mxu0 %v2399
  %2430 = vmatprep.subr.mxu0 0.0
  %2431 = vmatpush1.msra.mxu0 %v2401
  %2432 = vmatprep.subr.mxu0 0.0
  %2433 = vmatpush1.msra.mxu0 %v2403
  %2434 = vmatprep.subr.mxu0 0.0
  %2435 = vmatpush1.msra.mxu0 %v2405
  %2436 = vmatprep.subr.mxu0 0.0
  %2437 = vmatpush1.msra.mxu0 %v2407
  %2438 = vmatprep.subr.mxu0 0.0
  %2439 = vmatpush1.msra.mxu0 0.0
  %2440 = vmatprep.subr.mxu0 0.0
  %2441 = vmatpush1.msra.mxu0 0.0
  %2442 = vmatprep.subr.mxu0 0.0
  %2443 = vmatpush1.msra.mxu0 0.0
  %2444 = vmatprep.subr.mxu0 0.0
  %2445 = vmatpush1.msra.mxu0 0.0
  %2446 = vmatprep.subr.mxu0 0.0
  %2447 = vmatpush1.msra.mxu0 0.0
  %2448 = vmatprep.subr.mxu0 0.0
  %2449 = vmatpush1.msra.mxu0 0.0
  %2450 = vmatprep.subr.mxu0 0.0
  %2451 = vmatpush1.msra.mxu0 0.0
  %2452 = vmatprep.subr.mxu0 0.0
  %2453 = vmatpush1.msra.mxu0 0.0
  %2454 = vmatprep.subr.mxu0 0.0
  %2455 = vmatpush1.msra.mxu0 0.0
  %2456 = vmatprep.subr.mxu0 0.0
  %2457 = vmatpush1.msra.mxu0 0.0
  %2458 = vmatprep.subr.mxu0 0.0
  %2459 = vmatpush1.msra.mxu0 0.0
  %2460 = vmatprep.subr.mxu0 0.0
  %2461 = vmatpush1.msra.mxu0 0.0
  %2462 = vmatprep.subr.mxu0 0.0
  %2463 = vmatpush1.msra.mxu0 0.0
  %2464 = vmatprep.subr.mxu0 0.0
  %2465 = vmatpush1.msra.mxu0 0.0
  %2466 = vmatprep.subr.mxu0 0.0
  %2467 = vmatpush1.msra.mxu0 0.0
  %2468 = vmatprep.subr.mxu0 0.0
  %2469 = vmatpush1.msra.mxu0 0.0
  %2470 = vmatprep.subr.mxu0 0.0
  %2471 = vmatpush1.msra.mxu0 0.0
  %2472 = vmatprep.subr.mxu0 0.0
  %2473 = vmatpush1.msra.mxu0 0.0
  %2474 = vmatprep.subr.mxu0 0.0
  %2475 = vmatpush1.msra.mxu0 0.0
  %2476 = vmatprep.subr.mxu0 0.0
  %2477 = vmatpush1.msra.mxu0 0.0
  %2478 = vmatprep.subr.mxu0 0.0
  %2479 = vmatpush1.msra.mxu0 0.0
  %2480 = vmatprep.subr.mxu0 0.0
  %2481 = vmatpush1.msra.mxu0 0.0
  %2482 = vmatprep.subr.mxu0 0.0
  %2483 = vmatpush1.msra.mxu0 0.0
  %2484 = vmatprep.subr.mxu0 0.0
  %2485 = vmatpush1.msra.mxu0 0.0
  %2486 = vmatprep.mubr.f32.mxu0 0.0
  %2487 = vmatmul.mubr.f32.gmra.mrb[0].mxu0 %v2417
  %v2488 = vpop.f32.mrb[0].mxu0
  %v2489 = vadd.f32 0.0, %v2488
  %v2490 = vpop.f32.mrb[0].mxu0
  %2491 = vmatprep.mubr.f32.mxu0 0.0
  %2492 = vmatmul.mubr.f32.gmra.mrb[0].mxu0 %v2420
  %v2493 = vpop.f32.mrb[0].mxu0
  %v2494 = vadd.f32 0.0, %v2493
  %v2495 = vpop.f32.mrb[0].mxu0
  %2496 = vdwg.mxu0
  %v2497 = vld [vmem:[%s3 + $0xd0] sm:$0xff]
  %v2498 = vld [vmem:[%s3 + $0xd8] sm:$0xff]
  %v2499 = vld [vmem:[%s3 + $0xe0] sm:$0xff]
  %v2500 = vld [vmem:[%s3 + $0xe8] sm:$0xff]
  %v2501 = vld [vmem:[%s4 + $0x38] sm:$0x1]
  %v2502 = vlaneseq
  %v2503 = vshrl.u32 %v2502, 7
  %v2504 = vsub.s32 0, %v2503
  %v2505 = vrot.slane %v2501, %v2504
  %v2507 = vsel %vm142, %v2489, 0
  %v2510 = vsel %vm142, %v2494, 0
  %2512 = vmatprep.subr.mxu0 0.0
  %2513 = vmatpush1.msra.mxu0 %v2497
  %2514 = vmatprep.subr.mxu0 0.0
  %2515 = vmatpush1.msra.mxu0 %v2498
  %2516 = vmatprep.subr.mxu0 0.0
  %2517 = vmatpush1.msra.mxu0 %v2499
  %2518 = vmatprep.subr.mxu0 0.0
  %2519 = vmatpush1.msra.mxu0 %v2500
  %2520 = vmatprep.subr.mxu0 0.0
  %2521 = vmatpush1.msra.mxu0 0.0
  %2522 = vmatprep.subr.mxu0 0.0
  %2523 = vmatpush1.msra.mxu0 0.0
  %2524 = vmatprep.subr.mxu0 0.0
  %2525 = vmatpush1.msra.mxu0 0.0
  %2526 = vmatprep.subr.mxu0 0.0
  %2527 = vmatpush1.msra.mxu0 0.0
  %2528 = vmatprep.subr.mxu0 0.0
  %2529 = vmatpush1.msra.mxu0 0.0
  %2530 = vmatprep.subr.mxu0 0.0
  %2531 = vmatpush1.msra.mxu0 0.0
  %2532 = vmatprep.subr.mxu0 0.0
  %2533 = vmatpush1.msra.mxu0 0.0
  %2534 = vmatprep.subr.mxu0 0.0
  %2535 = vmatpush1.msra.mxu0 0.0
  %2536 = vmatprep.subr.mxu0 0.0
  %2537 = vmatpush1.msra.mxu0 0.0
  %2538 = vmatprep.subr.mxu0 0.0
  %2539 = vmatpush1.msra.mxu0 0.0
  %2540 = vmatprep.subr.mxu0 0.0
  %2541 = vmatpush1.msra.mxu0 0.0
  %2542 = vmatprep.subr.mxu0 0.0
  %2543 = vmatpush1.msra.mxu0 0.0
  %2544 = vmatprep.subr.mxu0 0.0
  %2545 = vmatpush1.msra.mxu0 0.0
  %2546 = vmatprep.subr.mxu0 0.0
  %2547 = vmatpush1.msra.mxu0 0.0
  %2548 = vmatprep.subr.mxu0 0.0
  %2549 = vmatpush1.msra.mxu0 0.0
  %2550 = vmatprep.subr.mxu0 0.0
  %2551 = vmatpush1.msra.mxu0 0.0
  %2552 = vmatprep.subr.mxu0 0.0
  %2553 = vmatpush1.msra.mxu0 0.0
  %2554 = vmatprep.subr.mxu0 0.0
  %2555 = vmatpush1.msra.mxu0 0.0
  %2556 = vmatprep.subr.mxu0 0.0
  %2557 = vmatpush1.msra.mxu0 0.0
  %2558 = vmatprep.subr.mxu0 0.0
  %2559 = vmatpush1.msra.mxu0 0.0
  %2560 = vmatprep.subr.mxu0 0.0
  %2561 = vmatpush1.msra.mxu0 0.0
  %2562 = vmatprep.subr.mxu0 0.0
  %2563 = vmatpush1.msra.mxu0 0.0
  %2564 = vmatprep.subr.mxu0 0.0
  %2565 = vmatpush1.msra.mxu0 0.0
  %2566 = vmatprep.subr.mxu0 0.0
  %2567 = vmatpush1.msra.mxu0 0.0
  %2568 = vmatprep.subr.mxu0 0.0
  %2569 = vmatpush1.msra.mxu0 0.0
  %2570 = vmatprep.subr.mxu0 0.0
  %2571 = vmatpush1.msra.mxu0 0.0
  %2572 = vmatprep.subr.mxu0 0.0
  %2573 = vmatpush1.msra.mxu0 0.0
  %2574 = vmatprep.subr.mxu0 0.0
  %2575 = vmatpush1.msra.mxu0 0.0
  %2576 = vmatprep.mubr.f32.mxu0 0.0
  %2577 = vmatmul.mubr.f32.gmra.mrb[0].mxu0 %v2507
  %v2578 = vpop.f32.mrb[0].mxu0
  %v2579 = vadd.f32 %v2505, %v2578
  %v2580 = vpop.f32.mrb[0].mxu0
  %2581 = vmatprep.mubr.f32.mxu0 0.0
  %2582 = vmatmul.mubr.f32.gmra.mrb[0].mxu0 %v2510
  %v2583 = vpop.f32.mrb[0].mxu0
  %v2584 = vadd.f32 %v2505, %v2583
  %v2585 = vpop.f32.mrb[0].mxu0
  %2586 = vdwg.mxu0
  %v2587 = vadd.f32 %v131, %v2579
  %v2588 = vadd.f32 %v132, %v2584
  %v2589 = vsel %vm142, %v2587, 0.0
  %2590 = vadd.xlane.f32.xlu0 %v2589
  %v2591 = vpop.xlane.xlu0 %2590
  %v2592 = vsel %vm142, %v2588, 0.0
  %2593 = vadd.xlane.f32.xlu0 %v2592
  %v2594 = vpop.xlane.xlu0 %2593
  %v2595 = vmul.f32 %v2591, %v836
  %v2596 = vmul.f32 %v2594, %v836
  %v2597 = vsub.f32 %v2587, %v2595
  %v2598 = vsub.f32 %v2588, %v2596
  %v2599 = vmul.f32 %v2597, %v2597
  %v2600 = vmul.f32 %v2598, %v2598
  %v2601 = vsel %vm142, %v2599, 0.0
  %2602 = vadd.xlane.f32.xlu0 %v2601
  %v2603 = vpop.xlane.xlu0 %2602
  %v2604 = vsel %vm142, %v2600, 0.0
  %2605 = vadd.xlane.f32.xlu0 %v2604
  %v2606 = vpop.xlane.xlu0 %2605
  %v2607 = vmul.f32 %v2603, %v836
  %v2608 = vmul.f32 %v2606, %v836
  %v2609 = vadd.f32 %v2607, 1e-05
  %v2610 = vadd.f32 %v2608, 1e-05
  %v2611 = vrsqrt.pop %v2609
  %v2612 = vrsqrt.pop %v2610
  %v2613 = vmul.f32 %v2597, %v2611
  %v2614 = vmul.f32 %v2598, %v2612
  %v2615 = vld [vmem:[%s4 + $0xf0] sm:$0x1]
  %v2616 = vlaneseq
  %v2617 = vshrl.u32 %v2616, 7
  %v2618 = vsub.s32 0, %v2617
  %v2619 = vrot.slane %v2615, %v2618
  %v2620 = vmul.f32 %v2613, %v2619
  %v2621 = vmul.f32 %v2614, %v2619
  %v2622 = vld [vmem:[%s4 + $0xf8] sm:$0x1]
  %v2623 = vlaneseq
  %v2624 = vshrl.u32 %v2623, 7
  %v2625 = vsub.s32 0, %v2624
  %v2626 = vrot.slane %v2622, %v2625
  %v2627 = vadd.f32 %v2620, %v2626
  %v2628 = vadd.f32 %v2621, %v2626
  %v2629 = vld [vmem:[%s3 + $0xf0] sm:$0xff]
  %v2630 = vld [vmem:[%s3 + $0xf8] sm:$0xff]
  %v2631 = vld [vmem:[%s3 + $0x100] sm:$0xff]
  %v2632 = vld [vmem:[%s3 + $0x108] sm:$0xff]
  %v2633 = vld [vmem:[%s4 + $0x40] sm:$0x1]
  %v2634 = vlaneseq
  %v2635 = vshrl.u32 %v2634, 7
  %v2636 = vsub.s32 0, %v2635
  %v2637 = vrot.slane %v2633, %v2636
  %v2639 = vsel %vm142, %v2627, 0
  %v2642 = vsel %vm142, %v2628, 0
  %2644 = vmatprep.subr.mxu0 0.0
  %2645 = vmatpush1.msra.mxu0 %v2629
  %2646 = vmatprep.subr.mxu0 0.0
  %2647 = vmatpush1.msra.mxu0 %v2630
  %2648 = vmatprep.subr.mxu0 0.0
  %2649 = vmatpush1.msra.mxu0 %v2631
  %2650 = vmatprep.subr.mxu0 0.0
  %2651 = vmatpush1.msra.mxu0 %v2632
  %2652 = vmatprep.subr.mxu0 0.0
  %2653 = vmatpush1.msra.mxu0 0.0
  %2654 = vmatprep.subr.mxu0 0.0
  %2655 = vmatpush1.msra.mxu0 0.0
  %2656 = vmatprep.subr.mxu0 0.0
  %2657 = vmatpush1.msra.mxu0 0.0
  %2658 = vmatprep.subr.mxu0 0.0
  %2659 = vmatpush1.msra.mxu0 0.0
  %2660 = vmatprep.subr.mxu0 0.0
  %2661 = vmatpush1.msra.mxu0 0.0
  %2662 = vmatprep.subr.mxu0 0.0
  %2663 = vmatpush1.msra.mxu0 0.0
  %2664 = vmatprep.subr.mxu0 0.0
  %2665 = vmatpush1.msra.mxu0 0.0
  %2666 = vmatprep.subr.mxu0 0.0
  %2667 = vmatpush1.msra.mxu0 0.0
  %2668 = vmatprep.subr.mxu0 0.0
  %2669 = vmatpush1.msra.mxu0 0.0
  %2670 = vmatprep.subr.mxu0 0.0
  %2671 = vmatpush1.msra.mxu0 0.0
  %2672 = vmatprep.subr.mxu0 0.0
  %2673 = vmatpush1.msra.mxu0 0.0
  %2674 = vmatprep.subr.mxu0 0.0
  %2675 = vmatpush1.msra.mxu0 0.0
  %2676 = vmatprep.subr.mxu0 0.0
  %2677 = vmatpush1.msra.mxu0 0.0
  %2678 = vmatprep.subr.mxu0 0.0
  %2679 = vmatpush1.msra.mxu0 0.0
  %2680 = vmatprep.subr.mxu0 0.0
  %2681 = vmatpush1.msra.mxu0 0.0
  %2682 = vmatprep.subr.mxu0 0.0
  %2683 = vmatpush1.msra.mxu0 0.0
  %2684 = vmatprep.subr.mxu0 0.0
  %2685 = vmatpush1.msra.mxu0 0.0
  %2686 = vmatprep.subr.mxu0 0.0
  %2687 = vmatpush1.msra.mxu0 0.0
  %2688 = vmatprep.subr.mxu0 0.0
  %2689 = vmatpush1.msra.mxu0 0.0
  %2690 = vmatprep.subr.mxu0 0.0
  %2691 = vmatpush1.msra.mxu0 0.0
  %2692 = vmatprep.subr.mxu0 0.0
  %2693 = vmatpush1.msra.mxu0 0.0
  %2694 = vmatprep.subr.mxu0 0.0
  %2695 = vmatpush1.msra.mxu0 0.0
  %2696 = vmatprep.subr.mxu0 0.0
  %2697 = vmatpush1.msra.mxu0 0.0
  %2698 = vmatprep.subr.mxu0 0.0
  %2699 = vmatpush1.msra.mxu0 0.0
  %2700 = vmatprep.subr.mxu0 0.0
  %2701 = vmatpush1.msra.mxu0 0.0
  %2702 = vmatprep.subr.mxu0 0.0
  %2703 = vmatpush1.msra.mxu0 0.0
  %2704 = vmatprep.subr.mxu0 0.0
  %2705 = vmatpush1.msra.mxu0 0.0
  %2706 = vmatprep.subr.mxu0 0.0
  %2707 = vmatpush1.msra.mxu0 0.0
  %2708 = vmatprep.mubr.f32.mxu0 0.0
  %2709 = vmatmul.mubr.f32.gmra.mrb[0].mxu0 %v2639
  %v2710 = vpop.f32.mrb[0].mxu0
  %v2711 = vadd.f32 %v2637, %v2710
  %v2712 = vpop.f32.mrb[0].mxu0
  %2713 = vmatprep.mubr.f32.mxu0 0.0
  %2714 = vmatmul.mubr.f32.gmra.mrb[0].mxu0 %v2642
  %v2715 = vpop.f32.mrb[0].mxu0
  %v2716 = vadd.f32 %v2637, %v2715
  %v2717 = vpop.f32.mrb[0].mxu0
  %2718 = vdwg.mxu0
  %2723 = vrot.lane.b32.xlu0 %v2629, 96
  %v2724 = vpop.permute.xlu0 %2723
  %2725 = vrot.lane.b32.xlu0 %v2630, 96
  %v2726 = vpop.permute.xlu0 %2725
  %2727 = vrot.lane.b32.xlu0 %v2631, 96
  %v2728 = vpop.permute.xlu0 %2727
  %2729 = vrot.lane.b32.xlu0 %v2632, 96
  %v2730 = vpop.permute.xlu0 %2729
  %2736 = vrot.lane.b32.xlu0 %v2637, 96
  %v2737 = vpop.permute.xlu0 %2736
  %v2740 = vsel %vm142, %v1979, 0
  %v2743 = vsel %vm142, %v1980, 0
  %2745 = vmatprep.subr.mxu0 0.0
  %2746 = vmatpush1.msra.mxu0 %v2724
  %2747 = vmatprep.subr.mxu0 0.0
  %2748 = vmatpush1.msra.mxu0 %v2726
  %2749 = vmatprep.subr.mxu0 0.0
  %2750 = vmatpush1.msra.mxu0 %v2728
  %2751 = vmatprep.subr.mxu0 0.0
  %2752 = vmatpush1.msra.mxu0 %v2730
  %2753 = vmatprep.subr.mxu0 0.0
  %2754 = vmatpush1.msra.mxu0 0.0
  %2755 = vmatprep.subr.mxu0 0.0
  %2756 = vmatpush1.msra.mxu0 0.0
  %2757 = vmatprep.subr.mxu0 0.0
  %2758 = vmatpush1.msra.mxu0 0.0
  %2759 = vmatprep.subr.mxu0 0.0
  %2760 = vmatpush1.msra.mxu0 0.0
  %2761 = vmatprep.subr.mxu0 0.0
  %2762 = vmatpush1.msra.mxu0 0.0
  %2763 = vmatprep.subr.mxu0 0.0
  %2764 = vmatpush1.msra.mxu0 0.0
  %2765 = vmatprep.subr.mxu0 0.0
  %2766 = vmatpush1.msra.mxu0 0.0
  %2767 = vmatprep.subr.mxu0 0.0
  %2768 = vmatpush1.msra.mxu0 0.0
  %2769 = vmatprep.subr.mxu0 0.0
  %2770 = vmatpush1.msra.mxu0 0.0
  %2771 = vmatprep.subr.mxu0 0.0
  %2772 = vmatpush1.msra.mxu0 0.0
  %2773 = vmatprep.subr.mxu0 0.0
  %2774 = vmatpush1.msra.mxu0 0.0
  %2775 = vmatprep.subr.mxu0 0.0
  %2776 = vmatpush1.msra.mxu0 0.0
  %2777 = vmatprep.subr.mxu0 0.0
  %2778 = vmatpush1.msra.mxu0 0.0
  %2779 = vmatprep.subr.mxu0 0.0
  %2780 = vmatpush1.msra.mxu0 0.0
  %2781 = vmatprep.subr.mxu0 0.0
  %2782 = vmatpush1.msra.mxu0 0.0
  %2783 = vmatprep.subr.mxu0 0.0
  %2784 = vmatpush1.msra.mxu0 0.0
  %2785 = vmatprep.subr.mxu0 0.0
  %2786 = vmatpush1.msra.mxu0 0.0
  %2787 = vmatprep.subr.mxu0 0.0
  %2788 = vmatpush1.msra.mxu0 0.0
  %2789 = vmatprep.subr.mxu0 0.0
  %2790 = vmatpush1.msra.mxu0 0.0
  %2791 = vmatprep.subr.mxu0 0.0
  %2792 = vmatpush1.msra.mxu0 0.0
  %2793 = vmatprep.subr.mxu0 0.0
  %2794 = vmatpush1.msra.mxu0 0.0
  %2795 = vmatprep.subr.mxu0 0.0
  %2796 = vmatpush1.msra.mxu0 0.0
  %2797 = vmatprep.subr.mxu0 0.0
  %2798 = vmatpush1.msra.mxu0 0.0
  %2799 = vmatprep.subr.mxu0 0.0
  %2800 = vmatpush1.msra.mxu0 0.0
  %2801 = vmatprep.subr.mxu0 0.0
  %2802 = vmatpush1.msra.mxu0 0.0
  %2803 = vmatprep.subr.mxu0 0.0
  %2804 = vmatpush1.msra.mxu0 0.0
  %2805 = vmatprep.subr.mxu0 0.0
  %2806 = vmatpush1.msra.mxu0 0.0
  %2807 = vmatprep.subr.mxu0 0.0
  %2808 = vmatpush1.msra.mxu0 0.0
  %2809 = vmatprep.mubr.f32.mxu0 0.0
  %2810 = vmatmul.mubr.f32.gmra.mrb[0].mxu0 %v2740
  %v2811 = vpop.f32.mrb[0].mxu0
  %v2812 = vadd.f32 %v2737, %v2811
  %v2813 = vpop.f32.mrb[0].mxu0
  %2814 = vmatprep.mubr.f32.mxu0 0.0
  %2815 = vmatmul.mubr.f32.gmra.mrb[0].mxu0 %v2743
  %v2816 = vpop.f32.mrb[0].mxu0
  %v2817 = vadd.f32 %v2737, %v2816
  %v2818 = vpop.f32.mrb[0].mxu0
  %2819 = vdwg.mxu0
  %v2820 = vmul.f32 %v2812, %v20
  %v2821 = vmul.f32 %v2817, %v21
  %v2822 = vmul.f32 %v2812, %v22
  %v2823 = vmul.f32 %v2817, %v23
  %v2824 = vmul.f32 %v2812, %v24
  %v2825 = vmul.f32 %v2817, %v25
  %v2826 = vmul.f32 %v2812, %v26
  %v2827 = vmul.f32 %v2817, %v27
  %v2828 = vmul.f32 %v2812, %v233
  %v2829 = vmul.f32 %v2817, %v235
  %v2830 = vmul.f32 %v2812, %v237
  %v2831 = vmul.f32 %v2817, %v239
  %v2832 = vmul.f32 %v2812, %v241
  %v2833 = vmul.f32 %v2817, %v243
  %v2834 = vmul.f32 %v2812, %v245
  %v2835 = vmul.f32 %v2817, %v247
  %v2837 = vsel %vm142, %v2711, 0
  %v2840 = vsel %vm142, %v2716, 0
  %v2843 = vsel %vm142, %v2820, 0
  %v2846 = vsel %vm142, %v2821, 0
  %v2849 = vsel %vm142, %v2822, 0
  %v2852 = vsel %vm142, %v2823, 0
  %v2855 = vsel %vm142, %v2824, 0
  %v2858 = vsel %vm142, %v2825, 0
  %v2861 = vsel %vm142, %v2826, 0
  %v2864 = vsel %vm142, %v2827, 0
  %2866 = vmatprep.subr.mxu0 0.0
  %2867 = vmatpush1.xpose.msra.mxu0 %v2843
  %2868 = vmatprep.subr.mxu0 0.0
  %2869 = vmatpush1.xpose.msra.mxu0 %v2846
  %2870 = vmatprep.subr.mxu0 0.0
  %2871 = vmatpush1.xpose.msra.mxu0 %v2849
  %2872 = vmatprep.subr.mxu0 0.0
  %2873 = vmatpush1.xpose.msra.mxu0 %v2852
  %2874 = vmatprep.subr.mxu0 0.0
  %2875 = vmatpush1.xpose.msra.mxu0 %v2855
  %2876 = vmatprep.subr.mxu0 0.0
  %2877 = vmatpush1.xpose.msra.mxu0 %v2858
  %2878 = vmatprep.subr.mxu0 0.0
  %2879 = vmatpush1.xpose.msra.mxu0 %v2861
  %2880 = vmatprep.subr.mxu0 0.0
  %2881 = vmatpush1.xpose.msra.mxu0 %v2864
  %2882 = vmatprep.subr.mxu0 0.0
  %2883 = vmatpush1.xpose.msra.mxu0 0.0
  %2884 = vmatprep.subr.mxu0 0.0
  %2885 = vmatpush1.xpose.msra.mxu0 0.0
  %2886 = vmatprep.subr.mxu0 0.0
  %2887 = vmatpush1.xpose.msra.mxu0 0.0
  %2888 = vmatprep.subr.mxu0 0.0
  %2889 = vmatpush1.xpose.msra.mxu0 0.0
  %2890 = vmatprep.subr.mxu0 0.0
  %2891 = vmatpush1.xpose.msra.mxu0 0.0
  %2892 = vmatprep.subr.mxu0 0.0
  %2893 = vmatpush1.xpose.msra.mxu0 0.0
  %2894 = vmatprep.subr.mxu0 0.0
  %2895 = vmatpush1.xpose.msra.mxu0 0.0
  %2896 = vmatprep.subr.mxu0 0.0
  %2897 = vmatpush1.xpose.msra.mxu0 0.0
  %2898 = vmatprep.subr.mxu0 0.0
  %2899 = vmatpush1.xpose.msra.mxu0 0.0
  %2900 = vmatprep.subr.mxu0 0.0
  %2901 = vmatpush1.xpose.msra.mxu0 0.0
  %2902 = vmatprep.subr.mxu0 0.0
  %2903 = vmatpush1.xpose.msra.mxu0 0.0
  %2904 = vmatprep.subr.mxu0 0.0
  %2905 = vmatpush1.xpose.msra.mxu0 0.0
  %2906 = vmatprep.subr.mxu0 0.0
  %2907 = vmatpush1.xpose.msra.mxu0 0.0
  %2908 = vmatprep.subr.mxu0 0.0
  %2909 = vmatpush1.xpose.msra.mxu0 0.0
  %2910 = vmatprep.subr.mxu0 0.0
  %2911 = vmatpush1.xpose.msra.mxu0 0.0
  %2912 = vmatprep.subr.mxu0 0.0
  %2913 = vmatpush1.xpose.msra.mxu0 0.0
  %2914 = vmatprep.subr.mxu0 0.0
  %2915 = vmatpush1.xpose.msra.mxu0 0.0
  %2916 = vmatprep.subr.mxu0 0.0
  %2917 = vmatpush1.xpose.msra.mxu0 0.0
  %2918 = vmatprep.subr.mxu0 0.0
  %2919 = vmatpush1.xpose.msra.mxu0 0.0
  %2920 = vmatprep.subr.mxu0 0.0
  %2921 = vmatpush1.xpose.msra.mxu0 0.0
  %2922 = vmatprep.subr.mxu0 0.0
  %2923 = vmatpush1.xpose.msra.mxu0 0.0
  %2924 = vmatprep.subr.mxu0 0.0
  %2925 = vmatpush1.xpose.msra.mxu0 0.0
  %2926 = vmatprep.subr.mxu0 0.0
  %2927 = vmatpush1.xpose.msra.mxu0 0.0
  %2928 = vmatprep.subr.mxu0 0.0
  %2929 = vmatpush1.xpose.msra.mxu0 0.0
  %2930 = vmatprep.mubr.f32.mxu0 0.0
  %2931 = vmatmul.mubr.f32.gmra.mrb[0].mxu0 %v2837
  %v2932 = vpop.f32.mrb[0].mxu0
  %v2933 = vadd.f32 0.0, %v2932
  %v2934 = vpop.f32.mrb[0].mxu0
  %2935 = vmatprep.mubr.f32.mxu0 0.0
  %2936 = vmatmul.mubr.f32.gmra.mrb[0].mxu0 %v2840
  %v2937 = vpop.f32.mrb[0].mxu0
  %v2938 = vadd.f32 0.0, %v2937
  %v2939 = vpop.f32.mrb[0].mxu0
  %2940 = vdwg.mxu0
  %v2941 = vmul.f32 %v2933, 0.35355338
  %v2942 = vmul.f32 %v2938, 0.35355338
  %v2943 = vadd.f32 %v2941, %v36
  %v2944 = vadd.f32 %v2942, %v37
  %v2945 = vsel %vm421, %v2943, -inf
  %2946 = vmax.xlane.f32.xlu0 %v2945
  %v2947 = vpop.xlane.xlu0 %2946
  %v2948 = vsel %vm421, %v2944, -inf
  %2949 = vmax.xlane.f32.xlu0 %v2948
  %v2950 = vpop.xlane.xlu0 %2949
  %v2951 = vsub.f32 %v2943, %v2947
  %v2952 = vsub.f32 %v2944, %v2950
  %v2953 = vmul.f32 %v2951, 1.442695
  %v2954 = vpow.pop %v2953
  %v2955 = vmul.f32 %v2952, 1.442695
  %v2956 = vpow.pop %v2955
  %v2958 = vsel %vm421, %v2954, 0
  %v2961 = vsel %vm421, %v2956, 0
  %2963 = vmatprep.subr.mxu0 0.0
  %2964 = vmatpush1.msra.mxu0 %v28
  %2965 = vmatprep.subr.mxu0 0.0
  %2966 = vmatpush1.msra.mxu0 %v29
  %2967 = vmatprep.subr.mxu0 0.0
  %2968 = vmatpush1.msra.mxu0 %v30
  %2969 = vmatprep.subr.mxu0 0.0
  %2970 = vmatpush1.msra.mxu0 %v31
  %2971 = vmatprep.subr.mxu0 0.0
  %2972 = vmatpush1.msra.mxu0 %v32
  %2973 = vmatprep.subr.mxu0 0.0
  %2974 = vmatpush1.msra.mxu0 %v33
  %2975 = vmatprep.subr.mxu0 0.0
  %2976 = vmatpush1.msra.mxu0 %v34
  %2977 = vmatprep.subr.mxu0 0.0
  %2978 = vmatpush1.msra.mxu0 %v35
  %2979 = vmatprep.subr.mxu0 0.0
  %2980 = vmatpush1.msra.mxu0 0.0
  %2981 = vmatprep.subr.mxu0 0.0
  %2982 = vmatpush1.msra.mxu0 0.0
  %2983 = vmatprep.subr.mxu0 0.0
  %2984 = vmatpush1.msra.mxu0 0.0
  %2985 = vmatprep.subr.mxu0 0.0
  %2986 = vmatpush1.msra.mxu0 0.0
  %2987 = vmatprep.subr.mxu0 0.0
  %2988 = vmatpush1.msra.mxu0 0.0
  %2989 = vmatprep.subr.mxu0 0.0
  %2990 = vmatpush1.msra.mxu0 0.0
  %2991 = vmatprep.subr.mxu0 0.0
  %2992 = vmatpush1.msra.mxu0 0.0
  %2993 = vmatprep.subr.mxu0 0.0
  %2994 = vmatpush1.msra.mxu0 0.0
  %2995 = vmatprep.subr.mxu0 0.0
  %2996 = vmatpush1.msra.mxu0 0.0
  %2997 = vmatprep.subr.mxu0 0.0
  %2998 = vmatpush1.msra.mxu0 0.0
  %2999 = vmatprep.subr.mxu0 0.0
  %3000 = vmatpush1.msra.mxu0 0.0
  %3001 = vmatprep.subr.mxu0 0.0
  %3002 = vmatpush1.msra.mxu0 0.0
  %3003 = vmatprep.subr.mxu0 0.0
  %3004 = vmatpush1.msra.mxu0 0.0
  %3005 = vmatprep.subr.mxu0 0.0
  %3006 = vmatpush1.msra.mxu0 0.0
  %3007 = vmatprep.subr.mxu0 0.0
  %3008 = vmatpush1.msra.mxu0 0.0
  %3009 = vmatprep.subr.mxu0 0.0
  %3010 = vmatpush1.msra.mxu0 0.0
  %3011 = vmatprep.subr.mxu0 0.0
  %3012 = vmatpush1.msra.mxu0 0.0
  %3013 = vmatprep.subr.mxu0 0.0
  %3014 = vmatpush1.msra.mxu0 0.0
  %3015 = vmatprep.subr.mxu0 0.0
  %3016 = vmatpush1.msra.mxu0 0.0
  %3017 = vmatprep.subr.mxu0 0.0
  %3018 = vmatpush1.msra.mxu0 0.0
  %3019 = vmatprep.subr.mxu0 0.0
  %3020 = vmatpush1.msra.mxu0 0.0
  %3021 = vmatprep.subr.mxu0 0.0
  %3022 = vmatpush1.msra.mxu0 0.0
  %3023 = vmatprep.subr.mxu0 0.0
  %3024 = vmatpush1.msra.mxu0 0.0
  %3025 = vmatprep.subr.mxu0 0.0
  %3026 = vmatpush1.msra.mxu0 0.0
  %3027 = vmatprep.mubr.f32.mxu0 0.0
  %3028 = vmatmul.mubr.f32.gmra.mrb[0].mxu0 %v2958
  %v3029 = vpop.f32.mrb[0].mxu0
  %v3030 = vadd.f32 0.0, %v3029
  %v3031 = vpop.f32.mrb[0].mxu0
  %3032 = vmatprep.mubr.f32.mxu0 0.0
  %3033 = vmatmul.mubr.f32.gmra.mrb[0].mxu0 %v2961
  %v3034 = vpop.f32.mrb[0].mxu0
  %v3035 = vadd.f32 0.0, %v3034
  %v3036 = vpop.f32.mrb[0].mxu0
  %3037 = vdwg.mxu0
  %v3038 = vrcp.pop %v3030
  %v3039 = vrcp.pop %v3035
  %v3041 = vsel %vm517, %v3038, 0
  %v3044 = vsel %vm517, %v3039, 0
  %3046 = vmatprep.subr.mxu0 0.0
  %3047 = vmatpush1.xpose.msra.mxu0 %v525
  %3048 = vmatprep.subr.mxu0 0.0
  %3049 = vmatpush1.xpose.msra.mxu0 %v528
  %3050 = vmatprep.subr.mxu0 0.0
  %3051 = vmatpush1.xpose.msra.mxu0 %v531
  %3052 = vmatprep.subr.mxu0 0.0
  %3053 = vmatpush1.xpose.msra.mxu0 %v534
  %3054 = vmatprep.subr.mxu0 0.0
  %3055 = vmatpush1.xpose.msra.mxu0 %v537
  %3056 = vmatprep.subr.mxu0 0.0
  %3057 = vmatpush1.xpose.msra.mxu0 %v540
  %3058 = vmatprep.subr.mxu0 0.0
  %3059 = vmatpush1.xpose.msra.mxu0 %v543
  %3060 = vmatprep.subr.mxu0 0.0
  %3061 = vmatpush1.xpose.msra.mxu0 %v546
  %3062 = vmatprep.subr.mxu0 0.0
  %3063 = vmatpush1.xpose.msra.mxu0 0.0
  %3064 = vmatprep.subr.mxu0 0.0
  %3065 = vmatpush1.xpose.msra.mxu0 0.0
  %3066 = vmatprep.subr.mxu0 0.0
  %3067 = vmatpush1.xpose.msra.mxu0 0.0
  %3068 = vmatprep.subr.mxu0 0.0
  %3069 = vmatpush1.xpose.msra.mxu0 0.0
  %3070 = vmatprep.subr.mxu0 0.0
  %3071 = vmatpush1.xpose.msra.mxu0 0.0
  %3072 = vmatprep.subr.mxu0 0.0
  %3073 = vmatpush1.xpose.msra.mxu0 0.0
  %3074 = vmatprep.subr.mxu0 0.0
  %3075 = vmatpush1.xpose.msra.mxu0 0.0
  %3076 = vmatprep.subr.mxu0 0.0
  %3077 = vmatpush1.xpose.msra.mxu0 0.0
  %3078 = vmatprep.subr.mxu0 0.0
  %3079 = vmatpush1.xpose.msra.mxu0 0.0
  %3080 = vmatprep.subr.mxu0 0.0
  %3081 = vmatpush1.xpose.msra.mxu0 0.0
  %3082 = vmatprep.subr.mxu0 0.0
  %3083 = vmatpush1.xpose.msra.mxu0 0.0
  %3084 = vmatprep.subr.mxu0 0.0
  %3085 = vmatpush1.xpose.msra.mxu0 0.0
  %3086 = vmatprep.subr.mxu0 0.0
  %3087 = vmatpush1.xpose.msra.mxu0 0.0
  %3088 = vmatprep.subr.mxu0 0.0
  %3089 = vmatpush1.xpose.msra.mxu0 0.0
  %3090 = vmatprep.subr.mxu0 0.0
  %3091 = vmatpush1.xpose.msra.mxu0 0.0
  %3092 = vmatprep.subr.mxu0 0.0
  %3093 = vmatpush1.xpose.msra.mxu0 0.0
  %3094 = vmatprep.subr.mxu0 0.0
  %3095 = vmatpush1.xpose.msra.mxu0 0.0
  %3096 = vmatprep.subr.mxu0 0.0
  %3097 = vmatpush1.xpose.msra.mxu0 0.0
  %3098 = vmatprep.subr.mxu0 0.0
  %3099 = vmatpush1.xpose.msra.mxu0 0.0
  %3100 = vmatprep.subr.mxu0 0.0
  %3101 = vmatpush1.xpose.msra.mxu0 0.0
  %3102 = vmatprep.subr.mxu0 0.0
  %3103 = vmatpush1.xpose.msra.mxu0 0.0
  %3104 = vmatprep.subr.mxu0 0.0
  %3105 = vmatpush1.xpose.msra.mxu0 0.0
  %3106 = vmatprep.subr.mxu0 0.0
  %3107 = vmatpush1.xpose.msra.mxu0 0.0
  %3108 = vmatprep.subr.mxu0 0.0
  %3109 = vmatpush1.xpose.msra.mxu0 0.0
  %3110 = vmatprep.mubr.f32.mxu0 0.0
  %3111 = vmatmul.mubr.f32.gmra.mrb[0].mxu0 %v3041
  %v3112 = vpop.f32.mrb[0].mxu0
  %v3113 = vadd.f32 0.0, %v3112
  %v3114 = vpop.f32.mrb[0].mxu0
  %3115 = vmatprep.mubr.f32.mxu0 0.0
  %3116 = vmatmul.mubr.f32.gmra.mrb[0].mxu0 %v3044
  %v3117 = vpop.f32.mrb[0].mxu0
  %v3118 = vadd.f32 0.0, %v3117
  %v3119 = vpop.f32.mrb[0].mxu0
  %3120 = vdwg.mxu0
  %v3121 = vmul.f32 %v2954, %v3113
  %v3122 = vmul.f32 %v2956, %v3118
  %3131 = vrot.lane.b32.xlu0 %v2828, 96
  %v3132 = vpop.permute.xlu0 %3131
  %3133 = vrot.lane.b32.xlu0 %v2829, 96
  %v3134 = vpop.permute.xlu0 %3133
  %3135 = vrot.lane.b32.xlu0 %v2830, 96
  %v3136 = vpop.permute.xlu0 %3135
  %3137 = vrot.lane.b32.xlu0 %v2831, 96
  %v3138 = vpop.permute.xlu0 %3137
  %3139 = vrot.lane.b32.xlu0 %v2832, 96
  %v3140 = vpop.permute.xlu0 %3139
  %3141 = vrot.lane.b32.xlu0 %v2833, 96
  %v3142 = vpop.permute.xlu0 %3141
  %3143 = vrot.lane.b32.xlu0 %v2834, 96
  %v3144 = vpop.permute.xlu0 %3143
  %3145 = vrot.lane.b32.xlu0 %v2835, 96
  %v3146 = vpop.permute.xlu0 %3145
  %v3156 = vsel %vm421, %v3121, 0
  %v3159 = vsel %vm421, %v3122, 0
  %3161 = vmatprep.subr.mxu0 0.0
  %3162 = vmatpush1.msra.mxu0 %v3132
  %3163 = vmatprep.subr.mxu0 0.0
  %3164 = vmatpush1.msra.mxu0 %v3134
  %3165 = vmatprep.subr.mxu0 0.0
  %3166 = vmatpush1.msra.mxu0 %v3136
  %3167 = vmatprep.subr.mxu0 0.0
  %3168 = vmatpush1.msra.mxu0 %v3138
  %3169 = vmatprep.subr.mxu0 0.0
  %3170 = vmatpush1.msra.mxu0 %v3140
  %3171 = vmatprep.subr.mxu0 0.0
  %3172 = vmatpush1.msra.mxu0 %v3142
  %3173 = vmatprep.subr.mxu0 0.0
  %3174 = vmatpush1.msra.mxu0 %v3144
  %3175 = vmatprep.subr.mxu0 0.0
  %3176 = vmatpush1.msra.mxu0 %v3146
  %3177 = vmatprep.subr.mxu0 0.0
  %3178 = vmatpush1.msra.mxu0 0.0
  %3179 = vmatprep.subr.mxu0 0.0
  %3180 = vmatpush1.msra.mxu0 0.0
  %3181 = vmatprep.subr.mxu0 0.0
  %3182 = vmatpush1.msra.mxu0 0.0
  %3183 = vmatprep.subr.mxu0 0.0
  %3184 = vmatpush1.msra.mxu0 0.0
  %3185 = vmatprep.subr.mxu0 0.0
  %3186 = vmatpush1.msra.mxu0 0.0
  %3187 = vmatprep.subr.mxu0 0.0
  %3188 = vmatpush1.msra.mxu0 0.0
  %3189 = vmatprep.subr.mxu0 0.0
  %3190 = vmatpush1.msra.mxu0 0.0
  %3191 = vmatprep.subr.mxu0 0.0
  %3192 = vmatpush1.msra.mxu0 0.0
  %3193 = vmatprep.subr.mxu0 0.0
  %3194 = vmatpush1.msra.mxu0 0.0
  %3195 = vmatprep.subr.mxu0 0.0
  %3196 = vmatpush1.msra.mxu0 0.0
  %3197 = vmatprep.subr.mxu0 0.0
  %3198 = vmatpush1.msra.mxu0 0.0
  %3199 = vmatprep.subr.mxu0 0.0
  %3200 = vmatpush1.msra.mxu0 0.0
  %3201 = vmatprep.subr.mxu0 0.0
  %3202 = vmatpush1.msra.mxu0 0.0
  %3203 = vmatprep.subr.mxu0 0.0
  %3204 = vmatpush1.msra.mxu0 0.0
  %3205 = vmatprep.subr.mxu0 0.0
  %3206 = vmatpush1.msra.mxu0 0.0
  %3207 = vmatprep.subr.mxu0 0.0
  %3208 = vmatpush1.msra.mxu0 0.0
  %3209 = vmatprep.subr.mxu0 0.0
  %3210 = vmatpush1.msra.mxu0 0.0
  %3211 = vmatprep.subr.mxu0 0.0
  %3212 = vmatpush1.msra.mxu0 0.0
  %3213 = vmatprep.subr.mxu0 0.0
  %3214 = vmatpush1.msra.mxu0 0.0
  %3215 = vmatprep.subr.mxu0 0.0
  %3216 = vmatpush1.msra.mxu0 0.0
  %3217 = vmatprep.subr.mxu0 0.0
  %3218 = vmatpush1.msra.mxu0 0.0
  %3219 = vmatprep.subr.mxu0 0.0
  %3220 = vmatpush1.msra.mxu0 0.0
  %3221 = vmatprep.subr.mxu0 0.0
  %3222 = vmatpush1.msra.mxu0 0.0
  %3223 = vmatprep.subr.mxu0 0.0
  %3224 = vmatpush1.msra.mxu0 0.0
  %3225 = vmatprep.mubr.f32.mxu0 0.0
  %3226 = vmatmul.mubr.f32.gmra.mrb[0].mxu0 %v3156
  %v3227 = vpop.f32.mrb[0].mxu0
  %v3228 = vadd.f32 0.0, %v3227
  %v3229 = vpop.f32.mrb[0].mxu0
  %3230 = vmatprep.mubr.f32.mxu0 0.0
  %3231 = vmatmul.mubr.f32.gmra.mrb[0].mxu0 %v3159
  %v3232 = vpop.f32.mrb[0].mxu0
  %v3233 = vadd.f32 0.0, %v3232
  %v3234 = vpop.f32.mrb[0].mxu0
  %3235 = vdwg.mxu0
  %v3236 = vld [vmem:[%s3 + $0x110] sm:$0xff]
  %v3237 = vld [vmem:[%s3 + $0x118] sm:$0xff]
  %v3238 = vld [vmem:[%s3 + $0x120] sm:$0xff]
  %v3239 = vld [vmem:[%s3 + $0x128] sm:$0xff]
  %v3240 = vld [vmem:[%s4 + $0x48] sm:$0x1]
  %v3241 = vlaneseq
  %v3242 = vshrl.u32 %v3241, 7
  %v3243 = vsub.s32 0, %v3242
  %v3244 = vrot.slane %v3240, %v3243
  %v3246 = vsel %vm142, %v3228, 0
  %v3249 = vsel %vm142, %v3233, 0
  %3251 = vmatprep.subr.mxu0 0.0
  %3252 = vmatpush1.msra.mxu0 %v3236
  %3253 = vmatprep.subr.mxu0 0.0
  %3254 = vmatpush1.msra.mxu0 %v3237
  %3255 = vmatprep.subr.mxu0 0.0
  %3256 = vmatpush1.msra.mxu0 %v3238
  %3257 = vmatprep.subr.mxu0 0.0
  %3258 = vmatpush1.msra.mxu0 %v3239
  %3259 = vmatprep.subr.mxu0 0.0
  %3260 = vmatpush1.msra.mxu0 0.0
  %3261 = vmatprep.subr.mxu0 0.0
  %3262 = vmatpush1.msra.mxu0 0.0
  %3263 = vmatprep.subr.mxu0 0.0
  %3264 = vmatpush1.msra.mxu0 0.0
  %3265 = vmatprep.subr.mxu0 0.0
  %3266 = vmatpush1.msra.mxu0 0.0
  %3267 = vmatprep.subr.mxu0 0.0
  %3268 = vmatpush1.msra.mxu0 0.0
  %3269 = vmatprep.subr.mxu0 0.0
  %3270 = vmatpush1.msra.mxu0 0.0
  %3271 = vmatprep.subr.mxu0 0.0
  %3272 = vmatpush1.msra.mxu0 0.0
  %3273 = vmatprep.subr.mxu0 0.0
  %3274 = vmatpush1.msra.mxu0 0.0
  %3275 = vmatprep.subr.mxu0 0.0
  %3276 = vmatpush1.msra.mxu0 0.0
  %3277 = vmatprep.subr.mxu0 0.0
  %3278 = vmatpush1.msra.mxu0 0.0
  %3279 = vmatprep.subr.mxu0 0.0
  %3280 = vmatpush1.msra.mxu0 0.0
  %3281 = vmatprep.subr.mxu0 0.0
  %3282 = vmatpush1.msra.mxu0 0.0
  %3283 = vmatprep.subr.mxu0 0.0
  %3284 = vmatpush1.msra.mxu0 0.0
  %3285 = vmatprep.subr.mxu0 0.0
  %3286 = vmatpush1.msra.mxu0 0.0
  %3287 = vmatprep.subr.mxu0 0.0
  %3288 = vmatpush1.msra.mxu0 0.0
  %3289 = vmatprep.subr.mxu0 0.0
  %3290 = vmatpush1.msra.mxu0 0.0
  %3291 = vmatprep.subr.mxu0 0.0
  %3292 = vmatpush1.msra.mxu0 0.0
  %3293 = vmatprep.subr.mxu0 0.0
  %3294 = vmatpush1.msra.mxu0 0.0
  %3295 = vmatprep.subr.mxu0 0.0
  %3296 = vmatpush1.msra.mxu0 0.0
  %3297 = vmatprep.subr.mxu0 0.0
  %3298 = vmatpush1.msra.mxu0 0.0
  %3299 = vmatprep.subr.mxu0 0.0
  %3300 = vmatpush1.msra.mxu0 0.0
  %3301 = vmatprep.subr.mxu0 0.0
  %3302 = vmatpush1.msra.mxu0 0.0
  %3303 = vmatprep.subr.mxu0 0.0
  %3304 = vmatpush1.msra.mxu0 0.0
  %3305 = vmatprep.subr.mxu0 0.0
  %3306 = vmatpush1.msra.mxu0 0.0
  %3307 = vmatprep.subr.mxu0 0.0
  %3308 = vmatpush1.msra.mxu0 0.0
  %3309 = vmatprep.subr.mxu0 0.0
  %3310 = vmatpush1.msra.mxu0 0.0
  %3311 = vmatprep.subr.mxu0 0.0
  %3312 = vmatpush1.msra.mxu0 0.0
  %3313 = vmatprep.subr.mxu0 0.0
  %3314 = vmatpush1.msra.mxu0 0.0
  %3315 = vmatprep.mubr.f32.mxu0 0.0
  %3316 = vmatmul.mubr.f32.gmra.mrb[0].mxu0 %v3246
  %v3317 = vpop.f32.mrb[0].mxu0
  %v3318 = vadd.f32 %v3244, %v3317
  %v3319 = vpop.f32.mrb[0].mxu0
  %3320 = vmatprep.mubr.f32.mxu0 0.0
  %3321 = vmatmul.mubr.f32.gmra.mrb[0].mxu0 %v3249
  %v3322 = vpop.f32.mrb[0].mxu0
  %v3323 = vadd.f32 %v3244, %v3322
  %v3324 = vpop.f32.mrb[0].mxu0
  %3325 = vdwg.mxu0
  %v3326 = vadd.f32 %v2627, %v3318
  %v3327 = vadd.f32 %v2628, %v3323
  %v3328 = vsel %vm142, %v3326, 0.0
  %3329 = vadd.xlane.f32.xlu0 %v3328
  %v3330 = vpop.xlane.xlu0 %3329
  %v3331 = vsel %vm142, %v3327, 0.0
  %3332 = vadd.xlane.f32.xlu0 %v3331
  %v3333 = vpop.xlane.xlu0 %3332
  %v3334 = vmul.f32 %v3330, %v836
  %v3335 = vmul.f32 %v3333, %v836
  %v3336 = vsub.f32 %v3326, %v3334
  %v3337 = vsub.f32 %v3327, %v3335
  %v3338 = vmul.f32 %v3336, %v3336
  %v3339 = vmul.f32 %v3337, %v3337
  %v3340 = vsel %vm142, %v3338, 0.0
  %3341 = vadd.xlane.f32.xlu0 %v3340
  %v3342 = vpop.xlane.xlu0 %3341
  %v3343 = vsel %vm142, %v3339, 0.0
  %3344 = vadd.xlane.f32.xlu0 %v3343
  %v3345 = vpop.xlane.xlu0 %3344
  %v3346 = vmul.f32 %v3342, %v836
  %v3347 = vmul.f32 %v3345, %v836
  %v3348 = vadd.f32 %v3346, 1e-05
  %v3349 = vadd.f32 %v3347, 1e-05
  %v3350 = vrsqrt.pop %v3348
  %v3351 = vrsqrt.pop %v3349
  %v3352 = vmul.f32 %v3336, %v3350
  %v3353 = vmul.f32 %v3337, %v3351
  %v3354 = vld [vmem:[%s4 + $0x100] sm:$0x1]
  %v3355 = vlaneseq
  %v3356 = vshrl.u32 %v3355, 7
  %v3357 = vsub.s32 0, %v3356
  %v3358 = vrot.slane %v3354, %v3357
  %v3359 = vmul.f32 %v3352, %v3358
  %v3360 = vmul.f32 %v3353, %v3358
  %v3361 = vld [vmem:[%s4 + $0x108] sm:$0x1]
  %v3362 = vlaneseq
  %v3363 = vshrl.u32 %v3362, 7
  %v3364 = vsub.s32 0, %v3363
  %v3365 = vrot.slane %v3361, %v3364
  %v3366 = vadd.f32 %v3359, %v3365
  %v3367 = vadd.f32 %v3360, %v3365
  %v3368 = vld [vmem:[%s3 + $0x270] sm:$0xff]
  %v3369 = vld [vmem:[%s3 + $0x278] sm:$0xff]
  %v3370 = vld [vmem:[%s3 + $0x280] sm:$0xff]
  %v3371 = vld [vmem:[%s3 + $0x288] sm:$0xff]
  %v3372 = vld [vmem:[%s4 + $0x90] sm:$0x1]
  %v3373 = vlaneseq
  %v3374 = vshrl.u32 %v3373, 7
  %v3375 = vsub.s32 0, %v3374
  %v3376 = vrot.slane %v3372, %v3375
  %v3378 = vsel %vm142, %v3366, 0
  %v3381 = vsel %vm142, %v3367, 0
  %3383 = vmatprep.subr.mxu0 0.0
  %3384 = vmatpush1.msra.mxu0 %v3368
  %3385 = vmatprep.subr.mxu0 0.0
  %3386 = vmatpush1.msra.mxu0 %v3369
  %3387 = vmatprep.subr.mxu0 0.0
  %3388 = vmatpush1.msra.mxu0 %v3370
  %3389 = vmatprep.subr.mxu0 0.0
  %3390 = vmatpush1.msra.mxu0 %v3371
  %3391 = vmatprep.subr.mxu0 0.0
  %3392 = vmatpush1.msra.mxu0 0.0
  %3393 = vmatprep.subr.mxu0 0.0
  %3394 = vmatpush1.msra.mxu0 0.0
  %3395 = vmatprep.subr.mxu0 0.0
  %3396 = vmatpush1.msra.mxu0 0.0
  %3397 = vmatprep.subr.mxu0 0.0
  %3398 = vmatpush1.msra.mxu0 0.0
  %3399 = vmatprep.subr.mxu0 0.0
  %3400 = vmatpush1.msra.mxu0 0.0
  %3401 = vmatprep.subr.mxu0 0.0
  %3402 = vmatpush1.msra.mxu0 0.0
  %3403 = vmatprep.subr.mxu0 0.0
  %3404 = vmatpush1.msra.mxu0 0.0
  %3405 = vmatprep.subr.mxu0 0.0
  %3406 = vmatpush1.msra.mxu0 0.0
  %3407 = vmatprep.subr.mxu0 0.0
  %3408 = vmatpush1.msra.mxu0 0.0
  %3409 = vmatprep.subr.mxu0 0.0
  %3410 = vmatpush1.msra.mxu0 0.0
  %3411 = vmatprep.subr.mxu0 0.0
  %3412 = vmatpush1.msra.mxu0 0.0
  %3413 = vmatprep.subr.mxu0 0.0
  %3414 = vmatpush1.msra.mxu0 0.0
  %3415 = vmatprep.subr.mxu0 0.0
  %3416 = vmatpush1.msra.mxu0 0.0
  %3417 = vmatprep.subr.mxu0 0.0
  %3418 = vmatpush1.msra.mxu0 0.0
  %3419 = vmatprep.subr.mxu0 0.0
  %3420 = vmatpush1.msra.mxu0 0.0
  %3421 = vmatprep.subr.mxu0 0.0
  %3422 = vmatpush1.msra.mxu0 0.0
  %3423 = vmatprep.subr.mxu0 0.0
  %3424 = vmatpush1.msra.mxu0 0.0
  %3425 = vmatprep.subr.mxu0 0.0
  %3426 = vmatpush1.msra.mxu0 0.0
  %3427 = vmatprep.subr.mxu0 0.0
  %3428 = vmatpush1.msra.mxu0 0.0
  %3429 = vmatprep.subr.mxu0 0.0
  %3430 = vmatpush1.msra.mxu0 0.0
  %3431 = vmatprep.subr.mxu0 0.0
  %3432 = vmatpush1.msra.mxu0 0.0
  %3433 = vmatprep.subr.mxu0 0.0
  %3434 = vmatpush1.msra.mxu0 0.0
  %3435 = vmatprep.subr.mxu0 0.0
  %3436 = vmatpush1.msra.mxu0 0.0
  %3437 = vmatprep.subr.mxu0 0.0
  %3438 = vmatpush1.msra.mxu0 0.0
  %3439 = vmatprep.subr.mxu0 0.0
  %3440 = vmatpush1.msra.mxu0 0.0
  %3441 = vmatprep.subr.mxu0 0.0
  %3442 = vmatpush1.msra.mxu0 0.0
  %3443 = vmatprep.subr.mxu0 0.0
  %3444 = vmatpush1.msra.mxu0 0.0
  %3445 = vmatprep.subr.mxu0 0.0
  %3446 = vmatpush1.msra.mxu0 0.0
  %3447 = vmatprep.mubr.f32.mxu0 0.0
  %3448 = vmatmul.mubr.f32.gmra.mrb[0].mxu0 %v3378
  %v3449 = vpop.f32.mrb[0].mxu0
  %v3450 = vadd.f32 %v3376, %v3449
  %v3451 = vpop.f32.mrb[0].mxu0
  %3452 = vmatprep.mubr.f32.mxu0 0.0
  %3453 = vmatmul.mubr.f32.gmra.mrb[0].mxu0 %v3381
  %v3454 = vpop.f32.mrb[0].mxu0
  %v3455 = vadd.f32 %v3376, %v3454
  %v3456 = vpop.f32.mrb[0].mxu0
  %3457 = vdwg.mxu0
  %v3458 = vmax.f32 %v3450, 0.0
  %v3459 = vmax.f32 %v3455, 0.0
  %v3460 = vld [vmem:[%s3 + $0x290] sm:$0xff]
  %v3461 = vld [vmem:[%s3 + $0x298] sm:$0xff]
  %v3462 = vld [vmem:[%s3 + $0x2a0] sm:$0xff]
  %v3463 = vld [vmem:[%s3 + $0x2a8] sm:$0xff]
  %v3464 = vld [vmem:[%s3 + $0x2b0] sm:$0xff]
  %v3465 = vld [vmem:[%s3 + $0x2b8] sm:$0xff]
  %v3466 = vld [vmem:[%s3 + $0x2c0] sm:$0xff]
  %v3467 = vld [vmem:[%s3 + $0x2c8] sm:$0xff]
  %v3468 = vld [vmem:[%s4 + $0x98] sm:$0x1]
  %v3469 = vlaneseq
  %v3470 = vshrl.u32 %v3469, 7
  %v3471 = vsub.s32 0, %v3470
  %v3472 = vrot.slane %v3468, %v3471
  %v3474 = vsel %vm421, %v3458, 0
  %v3477 = vsel %vm421, %v3459, 0
  %3479 = vmatprep.subr.mxu0 0.0
  %3480 = vmatpush1.msra.mxu0 %v3460
  %3481 = vmatprep.subr.mxu0 0.0
  %3482 = vmatpush1.msra.mxu0 %v3461
  %3483 = vmatprep.subr.mxu0 0.0
  %3484 = vmatpush1.msra.mxu0 %v3462
  %3485 = vmatprep.subr.mxu0 0.0
  %3486 = vmatpush1.msra.mxu0 %v3463
  %3487 = vmatprep.subr.mxu0 0.0
  %3488 = vmatpush1.msra.mxu0 %v3464
  %3489 = vmatprep.subr.mxu0 0.0
  %3490 = vmatpush1.msra.mxu0 %v3465
  %3491 = vmatprep.subr.mxu0 0.0
  %3492 = vmatpush1.msra.mxu0 %v3466
  %3493 = vmatprep.subr.mxu0 0.0
  %3494 = vmatpush1.msra.mxu0 %v3467
  %3495 = vmatprep.subr.mxu0 0.0
  %3496 = vmatpush1.msra.mxu0 0.0
  %3497 = vmatprep.subr.mxu0 0.0
  %3498 = vmatpush1.msra.mxu0 0.0
  %3499 = vmatprep.subr.mxu0 0.0
  %3500 = vmatpush1.msra.mxu0 0.0
  %3501 = vmatprep.subr.mxu0 0.0
  %3502 = vmatpush1.msra.mxu0 0.0
  %3503 = vmatprep.subr.mxu0 0.0
  %3504 = vmatpush1.msra.mxu0 0.0
  %3505 = vmatprep.subr.mxu0 0.0
  %3506 = vmatpush1.msra.mxu0 0.0
  %3507 = vmatprep.subr.mxu0 0.0
  %3508 = vmatpush1.msra.mxu0 0.0
  %3509 = vmatprep.subr.mxu0 0.0
  %3510 = vmatpush1.msra.mxu0 0.0
  %3511 = vmatprep.subr.mxu0 0.0
  %3512 = vmatpush1.msra.mxu0 0.0
  %3513 = vmatprep.subr.mxu0 0.0
  %3514 = vmatpush1.msra.mxu0 0.0
  %3515 = vmatprep.subr.mxu0 0.0
  %3516 = vmatpush1.msra.mxu0 0.0
  %3517 = vmatprep.subr.mxu0 0.0
  %3518 = vmatpush1.msra.mxu0 0.0
  %3519 = vmatprep.subr.mxu0 0.0
  %3520 = vmatpush1.msra.mxu0 0.0
  %3521 = vmatprep.subr.mxu0 0.0
  %3522 = vmatpush1.msra.mxu0 0.0
  %3523 = vmatprep.subr.mxu0 0.0
  %3524 = vmatpush1.msra.mxu0 0.0
  %3525 = vmatprep.subr.mxu0 0.0
  %3526 = vmatpush1.msra.mxu0 0.0
  %3527 = vmatprep.subr.mxu0 0.0
  %3528 = vmatpush1.msra.mxu0 0.0
  %3529 = vmatprep.subr.mxu0 0.0
  %3530 = vmatpush1.msra.mxu0 0.0
  %3531 = vmatprep.subr.mxu0 0.0
  %3532 = vmatpush1.msra.mxu0 0.0
  %3533 = vmatprep.subr.mxu0 0.0
  %3534 = vmatpush1.msra.mxu0 0.0
  %3535 = vmatprep.subr.mxu0 0.0
  %3536 = vmatpush1.msra.mxu0 0.0
  %3537 = vmatprep.subr.mxu0 0.0
  %3538 = vmatpush1.msra.mxu0 0.0
  %3539 = vmatprep.subr.mxu0 0.0
  %3540 = vmatpush1.msra.mxu0 0.0
  %3541 = vmatprep.subr.mxu0 0.0
  %3542 = vmatpush1.msra.mxu0 0.0
  %3543 = vmatprep.mubr.f32.mxu0 0.0
  %3544 = vmatmul.mubr.f32.gmra.mrb[0].mxu0 %v3474
  %v3545 = vpop.f32.mrb[0].mxu0
  %v3546 = vadd.f32 %v3472, %v3545
  %v3547 = vpop.f32.mrb[0].mxu0
  %3548 = vmatprep.mubr.f32.mxu0 0.0
  %3549 = vmatmul.mubr.f32.gmra.mrb[0].mxu0 %v3477
  %v3550 = vpop.f32.mrb[0].mxu0
  %v3551 = vadd.f32 %v3472, %v3550
  %v3552 = vpop.f32.mrb[0].mxu0
  %3553 = vdwg.mxu0
  %v3554 = vadd.f32 %v3366, %v3546
  %v3555 = vadd.f32 %v3367, %v3551
  %v3556 = vsel %vm142, %v3554, 0.0
  %3557 = vadd.xlane.f32.xlu0 %v3556
  %v3558 = vpop.xlane.xlu0 %3557
  %v3559 = vsel %vm142, %v3555, 0.0
  %3560 = vadd.xlane.f32.xlu0 %v3559
  %v3561 = vpop.xlane.xlu0 %3560
  %v3562 = vmul.f32 %v3558, %v836
  %v3563 = vmul.f32 %v3561, %v836
  %v3564 = vsub.f32 %v3554, %v3562
  %v3565 = vsub.f32 %v3555, %v3563
  %v3566 = vmul.f32 %v3564, %v3564
  %v3567 = vmul.f32 %v3565, %v3565
  %v3568 = vsel %vm142, %v3566, 0.0
  %3569 = vadd.xlane.f32.xlu0 %v3568
  %v3570 = vpop.xlane.xlu0 %3569
  %v3571 = vsel %vm142, %v3567, 0.0
  %3572 = vadd.xlane.f32.xlu0 %v3571
  %v3573 = vpop.xlane.xlu0 %3572
  %v3574 = vmul.f32 %v3570, %v836
  %v3575 = vmul.f32 %v3573, %v836
  %v3576 = vadd.f32 %v3574, 1e-05
  %v3577 = vadd.f32 %v3575, 1e-05
  %v3578 = vrsqrt.pop %v3576
  %v3579 = vrsqrt.pop %v3577
  %v3580 = vmul.f32 %v3564, %v3578
  %v3581 = vmul.f32 %v3565, %v3579
  %v3582 = vld [vmem:[%s4 + $0x110] sm:$0x1]
  %v3583 = vlaneseq
  %v3584 = vshrl.u32 %v3583, 7
  %v3585 = vsub.s32 0, %v3584
  %v3586 = vrot.slane %v3582, %v3585
  %v3587 = vmul.f32 %v3580, %v3586
  %v3588 = vmul.f32 %v3581, %v3586
  %v3589 = vld [vmem:[%s4 + $0x118] sm:$0x1]
  %v3590 = vlaneseq
  %v3591 = vshrl.u32 %v3590, 7
  %v3592 = vsub.s32 0, %v3591
  %v3593 = vrot.slane %v3589, %v3592
  %v3594 = vadd.f32 %v3587, %v3593
  %v3595 = vadd.f32 %v3588, %v3593
  %v3596 = vld [vmem:[%s3 + $0x130] sm:$0xff]
  %v3597 = vld [vmem:[%s3 + $0x138] sm:$0xff]
  %v3598 = vld [vmem:[%s3 + $0x140] sm:$0xff]
  %v3599 = vld [vmem:[%s3 + $0x148] sm:$0xff]
  %v3600 = vld [vmem:[%s4 + $0x50] sm:$0x1]
  %v3601 = vlaneseq
  %v3602 = vshrl.u32 %v3601, 7
  %v3603 = vsub.s32 0, %v3602
  %v3604 = vrot.slane %v3600, %v3603
  %v3606 = vsel %vm142, %v3594, 0
  %v3609 = vsel %vm142, %v3595, 0
  %3611 = vmatprep.subr.mxu0 0.0
  %3612 = vmatpush1.msra.mxu0 %v3596
  %3613 = vmatprep.subr.mxu0 0.0
  %3614 = vmatpush1.msra.mxu0 %v3597
  %3615 = vmatprep.subr.mxu0 0.0
  %3616 = vmatpush1.msra.mxu0 %v3598
  %3617 = vmatprep.subr.mxu0 0.0
  %3618 = vmatpush1.msra.mxu0 %v3599
  %3619 = vmatprep.subr.mxu0 0.0
  %3620 = vmatpush1.msra.mxu0 0.0
  %3621 = vmatprep.subr.mxu0 0.0
  %3622 = vmatpush1.msra.mxu0 0.0
  %3623 = vmatprep.subr.mxu0 0.0
  %3624 = vmatpush1.msra.mxu0 0.0
  %3625 = vmatprep.subr.mxu0 0.0
  %3626 = vmatpush1.msra.mxu0 0.0
  %3627 = vmatprep.subr.mxu0 0.0
  %3628 = vmatpush1.msra.mxu0 0.0
  %3629 = vmatprep.subr.mxu0 0.0
  %3630 = vmatpush1.msra.mxu0 0.0
  %3631 = vmatprep.subr.mxu0 0.0
  %3632 = vmatpush1.msra.mxu0 0.0
  %3633 = vmatprep.subr.mxu0 0.0
  %3634 = vmatpush1.msra.mxu0 0.0
  %3635 = vmatprep.subr.mxu0 0.0
  %3636 = vmatpush1.msra.mxu0 0.0
  %3637 = vmatprep.subr.mxu0 0.0
  %3638 = vmatpush1.msra.mxu0 0.0
  %3639 = vmatprep.subr.mxu0 0.0
  %3640 = vmatpush1.msra.mxu0 0.0
  %3641 = vmatprep.subr.mxu0 0.0
  %3642 = vmatpush1.msra.mxu0 0.0
  %3643 = vmatprep.subr.mxu0 0.0
  %3644 = vmatpush1.msra.mxu0 0.0
  %3645 = vmatprep.subr.mxu0 0.0
  %3646 = vmatpush1.msra.mxu0 0.0
  %3647 = vmatprep.subr.mxu0 0.0
  %3648 = vmatpush1.msra.mxu0 0.0
  %3649 = vmatprep.subr.mxu0 0.0
  %3650 = vmatpush1.msra.mxu0 0.0
  %3651 = vmatprep.subr.mxu0 0.0
  %3652 = vmatpush1.msra.mxu0 0.0
  %3653 = vmatprep.subr.mxu0 0.0
  %3654 = vmatpush1.msra.mxu0 0.0
  %3655 = vmatprep.subr.mxu0 0.0
  %3656 = vmatpush1.msra.mxu0 0.0
  %3657 = vmatprep.subr.mxu0 0.0
  %3658 = vmatpush1.msra.mxu0 0.0
  %3659 = vmatprep.subr.mxu0 0.0
  %3660 = vmatpush1.msra.mxu0 0.0
  %3661 = vmatprep.subr.mxu0 0.0
  %3662 = vmatpush1.msra.mxu0 0.0
  %3663 = vmatprep.subr.mxu0 0.0
  %3664 = vmatpush1.msra.mxu0 0.0
  %3665 = vmatprep.subr.mxu0 0.0
  %3666 = vmatpush1.msra.mxu0 0.0
  %3667 = vmatprep.subr.mxu0 0.0
  %3668 = vmatpush1.msra.mxu0 0.0
  %3669 = vmatprep.subr.mxu0 0.0
  %3670 = vmatpush1.msra.mxu0 0.0
  %3671 = vmatprep.subr.mxu0 0.0
  %3672 = vmatpush1.msra.mxu0 0.0
  %3673 = vmatprep.subr.mxu0 0.0
  %3674 = vmatpush1.msra.mxu0 0.0
  %3675 = vmatprep.mubr.f32.mxu0 0.0
  %3676 = vmatmul.mubr.f32.gmra.mrb[0].mxu0 %v3606
  %v3677 = vpop.f32.mrb[0].mxu0
  %v3678 = vadd.f32 %v3604, %v3677
  %v3679 = vpop.f32.mrb[0].mxu0
  %3680 = vmatprep.mubr.f32.mxu0 0.0
  %3681 = vmatmul.mubr.f32.gmra.mrb[0].mxu0 %v3609
  %v3682 = vpop.f32.mrb[0].mxu0
  %v3683 = vadd.f32 %v3604, %v3682
  %v3684 = vpop.f32.mrb[0].mxu0
  %3685 = vdwg.mxu0
  %v3686 = vmul.f32 %v3678, %v233
  %v3687 = vmul.f32 %v3683, %v235
  %v3688 = vmul.f32 %v3678, %v237
  %v3689 = vmul.f32 %v3683, %v239
  %v3690 = vmul.f32 %v3678, %v241
  %v3691 = vmul.f32 %v3683, %v243
  %v3692 = vmul.f32 %v3678, %v245
  %v3693 = vmul.f32 %v3683, %v247
  %v3694 = vmul.f32 %v3678, %v265
  %v3695 = vmul.f32 %v3683, %v267
  %v3696 = vmul.f32 %v3678, %v269
  %v3697 = vmul.f32 %v3683, %v271
  %v3698 = vmul.f32 %v3678, %v273
  %v3699 = vmul.f32 %v3683, %v275
  %v3700 = vmul.f32 %v3678, %v277
  %v3701 = vmul.f32 %v3683, %v279
  %3710 = vrot.lane.b32.xlu0 %v3686, 96
  %v3711 = vpop.permute.xlu0 %3710
  %3712 = vrot.lane.b32.xlu0 %v3687, 96
  %v3713 = vpop.permute.xlu0 %3712
  %3714 = vrot.lane.b32.xlu0 %v3688, 96
  %v3715 = vpop.permute.xlu0 %3714
  %3716 = vrot.lane.b32.xlu0 %v3689, 96
  %v3717 = vpop.permute.xlu0 %3716
  %3718 = vrot.lane.b32.xlu0 %v3690, 96
  %v3719 = vpop.permute.xlu0 %3718
  %3720 = vrot.lane.b32.xlu0 %v3691, 96
  %v3721 = vpop.permute.xlu0 %3720
  %3722 = vrot.lane.b32.xlu0 %v3692, 96
  %v3723 = vpop.permute.xlu0 %3722
  %3724 = vrot.lane.b32.xlu0 %v3693, 96
  %v3725 = vpop.permute.xlu0 %3724
  %v3727 = vsel %vm142, %v3678, 0
  %v3730 = vsel %vm142, %v3683, 0
  %v3732 = vsel %vm142, %v3711, 0
  %v3734 = vsel %vm142, %v3713, 0
  %v3736 = vsel %vm142, %v3715, 0
  %v3738 = vsel %vm142, %v3717, 0
  %v3740 = vsel %vm142, %v3719, 0
  %v3742 = vsel %vm142, %v3721, 0
  %v3744 = vsel %vm142, %v3723, 0
  %v3746 = vsel %vm142, %v3725, 0
  %3748 = vmatprep.subr.mxu0 0.0
  %3749 = vmatpush1.xpose.msra.mxu0 %v3732
  %3750 = vmatprep.subr.mxu0 0.0
  %3751 = vmatpush1.xpose.msra.mxu0 %v3734
  %3752 = vmatprep.subr.mxu0 0.0
  %3753 = vmatpush1.xpose.msra.mxu0 %v3736
  %3754 = vmatprep.subr.mxu0 0.0
  %3755 = vmatpush1.xpose.msra.mxu0 %v3738
  %3756 = vmatprep.subr.mxu0 0.0
  %3757 = vmatpush1.xpose.msra.mxu0 %v3740
  %3758 = vmatprep.subr.mxu0 0.0
  %3759 = vmatpush1.xpose.msra.mxu0 %v3742
  %3760 = vmatprep.subr.mxu0 0.0
  %3761 = vmatpush1.xpose.msra.mxu0 %v3744
  %3762 = vmatprep.subr.mxu0 0.0
  %3763 = vmatpush1.xpose.msra.mxu0 %v3746
  %3764 = vmatprep.subr.mxu0 0.0
  %3765 = vmatpush1.xpose.msra.mxu0 0.0
  %3766 = vmatprep.subr.mxu0 0.0
  %3767 = vmatpush1.xpose.msra.mxu0 0.0
  %3768 = vmatprep.subr.mxu0 0.0
  %3769 = vmatpush1.xpose.msra.mxu0 0.0
  %3770 = vmatprep.subr.mxu0 0.0
  %3771 = vmatpush1.xpose.msra.mxu0 0.0
  %3772 = vmatprep.subr.mxu0 0.0
  %3773 = vmatpush1.xpose.msra.mxu0 0.0
  %3774 = vmatprep.subr.mxu0 0.0
  %3775 = vmatpush1.xpose.msra.mxu0 0.0
  %3776 = vmatprep.subr.mxu0 0.0
  %3777 = vmatpush1.xpose.msra.mxu0 0.0
  %3778 = vmatprep.subr.mxu0 0.0
  %3779 = vmatpush1.xpose.msra.mxu0 0.0
  %3780 = vmatprep.subr.mxu0 0.0
  %3781 = vmatpush1.xpose.msra.mxu0 0.0
  %3782 = vmatprep.subr.mxu0 0.0
  %3783 = vmatpush1.xpose.msra.mxu0 0.0
  %3784 = vmatprep.subr.mxu0 0.0
  %3785 = vmatpush1.xpose.msra.mxu0 0.0
  %3786 = vmatprep.subr.mxu0 0.0
  %3787 = vmatpush1.xpose.msra.mxu0 0.0
  %3788 = vmatprep.subr.mxu0 0.0
  %3789 = vmatpush1.xpose.msra.mxu0 0.0
  %3790 = vmatprep.subr.mxu0 0.0
  %3791 = vmatpush1.xpose.msra.mxu0 0.0
  %3792 = vmatprep.subr.mxu0 0.0
  %3793 = vmatpush1.xpose.msra.mxu0 0.0
  %3794 = vmatprep.subr.mxu0 0.0
  %3795 = vmatpush1.xpose.msra.mxu0 0.0
  %3796 = vmatprep.subr.mxu0 0.0
  %3797 = vmatpush1.xpose.msra.mxu0 0.0
  %3798 = vmatprep.subr.mxu0 0.0
  %3799 = vmatpush1.xpose.msra.mxu0 0.0
  %3800 = vmatprep.subr.mxu0 0.0
  %3801 = vmatpush1.xpose.msra.mxu0 0.0
  %3802 = vmatprep.subr.mxu0 0.0
  %3803 = vmatpush1.xpose.msra.mxu0 0.0
  %3804 = vmatprep.subr.mxu0 0.0
  %3805 = vmatpush1.xpose.msra.mxu0 0.0
  %3806 = vmatprep.subr.mxu0 0.0
  %3807 = vmatpush1.xpose.msra.mxu0 0.0
  %3808 = vmatprep.subr.mxu0 0.0
  %3809 = vmatpush1.xpose.msra.mxu0 0.0
  %3810 = vmatprep.subr.mxu0 0.0
  %3811 = vmatpush1.xpose.msra.mxu0 0.0
  %3812 = vmatprep.mubr.f32.mxu0 0.0
  %3813 = vmatmul.mubr.f32.gmra.mrb[0].mxu0 %v3727
  %v3814 = vpop.f32.mrb[0].mxu0
  %v3815 = vadd.f32 0.0, %v3814
  %v3816 = vpop.f32.mrb[0].mxu0
  %3817 = vmatprep.mubr.f32.mxu0 0.0
  %3818 = vmatmul.mubr.f32.gmra.mrb[0].mxu0 %v3730
  %v3819 = vpop.f32.mrb[0].mxu0
  %v3820 = vadd.f32 0.0, %v3819
  %v3821 = vpop.f32.mrb[0].mxu0
  %3822 = vdwg.mxu0
  %v3823 = vmul.f32 %v3815, 0.35355338
  %v3824 = vmul.f32 %v3820, 0.35355338
  %v3825 = vadd.f32 %v3823, %v36
  %v3826 = vadd.f32 %v3824, %v37
  %v3827 = vsel %vm421, %v3825, -inf
  %3828 = vmax.xlane.f32.xlu0 %v3827
  %v3829 = vpop.xlane.xlu0 %3828
  %v3830 = vsel %vm421, %v3826, -inf
  %3831 = vmax.xlane.f32.xlu0 %v3830
  %v3832 = vpop.xlane.xlu0 %3831
  %v3833 = vsub.f32 %v3825, %v3829
  %v3834 = vsub.f32 %v3826, %v3832
  %v3835 = vmul.f32 %v3833, 1.442695
  %v3836 = vpow.pop %v3835
  %v3837 = vmul.f32 %v3834, 1.442695
  %v3838 = vpow.pop %v3837
  %v3840 = vsel %vm421, %v3836, 0
  %v3843 = vsel %vm421, %v3838, 0
  %3845 = vmatprep.subr.mxu0 0.0
  %3846 = vmatpush1.msra.mxu0 %v28
  %3847 = vmatprep.subr.mxu0 0.0
  %3848 = vmatpush1.msra.mxu0 %v29
  %3849 = vmatprep.subr.mxu0 0.0
  %3850 = vmatpush1.msra.mxu0 %v30
  %3851 = vmatprep.subr.mxu0 0.0
  %3852 = vmatpush1.msra.mxu0 %v31
  %3853 = vmatprep.subr.mxu0 0.0
  %3854 = vmatpush1.msra.mxu0 %v32
  %3855 = vmatprep.subr.mxu0 0.0
  %3856 = vmatpush1.msra.mxu0 %v33
  %3857 = vmatprep.subr.mxu0 0.0
  %3858 = vmatpush1.msra.mxu0 %v34
  %3859 = vmatprep.subr.mxu0 0.0
  %3860 = vmatpush1.msra.mxu0 %v35
  %3861 = vmatprep.subr.mxu0 0.0
  %3862 = vmatpush1.msra.mxu0 0.0
  %3863 = vmatprep.subr.mxu0 0.0
  %3864 = vmatpush1.msra.mxu0 0.0
  %3865 = vmatprep.subr.mxu0 0.0
  %3866 = vmatpush1.msra.mxu0 0.0
  %3867 = vmatprep.subr.mxu0 0.0
  %3868 = vmatpush1.msra.mxu0 0.0
  %3869 = vmatprep.subr.mxu0 0.0
  %3870 = vmatpush1.msra.mxu0 0.0
  %3871 = vmatprep.subr.mxu0 0.0
  %3872 = vmatpush1.msra.mxu0 0.0
  %3873 = vmatprep.subr.mxu0 0.0
  %3874 = vmatpush1.msra.mxu0 0.0
  %3875 = vmatprep.subr.mxu0 0.0
  %3876 = vmatpush1.msra.mxu0 0.0
  %3877 = vmatprep.subr.mxu0 0.0
  %3878 = vmatpush1.msra.mxu0 0.0
  %3879 = vmatprep.subr.mxu0 0.0
  %3880 = vmatpush1.msra.mxu0 0.0
  %3881 = vmatprep.subr.mxu0 0.0
  %3882 = vmatpush1.msra.mxu0 0.0
  %3883 = vmatprep.subr.mxu0 0.0
  %3884 = vmatpush1.msra.mxu0 0.0
  %3885 = vmatprep.subr.mxu0 0.0
  %3886 = vmatpush1.msra.mxu0 0.0
  %3887 = vmatprep.subr.mxu0 0.0
  %3888 = vmatpush1.msra.mxu0 0.0
  %3889 = vmatprep.subr.mxu0 0.0
  %3890 = vmatpush1.msra.mxu0 0.0
  %3891 = vmatprep.subr.mxu0 0.0
  %3892 = vmatpush1.msra.mxu0 0.0
  %3893 = vmatprep.subr.mxu0 0.0
  %3894 = vmatpush1.msra.mxu0 0.0
  %3895 = vmatprep.subr.mxu0 0.0
  %3896 = vmatpush1.msra.mxu0 0.0
  %3897 = vmatprep.subr.mxu0 0.0
  %3898 = vmatpush1.msra.mxu0 0.0
  %3899 = vmatprep.subr.mxu0 0.0
  %3900 = vmatpush1.msra.mxu0 0.0
  %3901 = vmatprep.subr.mxu0 0.0
  %3902 = vmatpush1.msra.mxu0 0.0
  %3903 = vmatprep.subr.mxu0 0.0
  %3904 = vmatpush1.msra.mxu0 0.0
  %3905 = vmatprep.subr.mxu0 0.0
  %3906 = vmatpush1.msra.mxu0 0.0
  %3907 = vmatprep.subr.mxu0 0.0
  %3908 = vmatpush1.msra.mxu0 0.0
  %3909 = vmatprep.mubr.f32.mxu0 0.0
  %3910 = vmatmul.mubr.f32.gmra.mrb[0].mxu0 %v3840
  %v3911 = vpop.f32.mrb[0].mxu0
  %v3912 = vadd.f32 0.0, %v3911
  %v3913 = vpop.f32.mrb[0].mxu0
  %3914 = vmatprep.mubr.f32.mxu0 0.0
  %3915 = vmatmul.mubr.f32.gmra.mrb[0].mxu0 %v3843
  %v3916 = vpop.f32.mrb[0].mxu0
  %v3917 = vadd.f32 0.0, %v3916
  %v3918 = vpop.f32.mrb[0].mxu0
  %3919 = vdwg.mxu0
  %v3920 = vrcp.pop %v3912
  %v3921 = vrcp.pop %v3917
  %v3923 = vsel %vm517, %v3920, 0
  %v3926 = vsel %vm517, %v3921, 0
  %3928 = vmatprep.subr.mxu0 0.0
  %3929 = vmatpush1.xpose.msra.mxu0 %v525
  %3930 = vmatprep.subr.mxu0 0.0
  %3931 = vmatpush1.xpose.msra.mxu0 %v528
  %3932 = vmatprep.subr.mxu0 0.0
  %3933 = vmatpush1.xpose.msra.mxu0 %v531
  %3934 = vmatprep.subr.mxu0 0.0
  %3935 = vmatpush1.xpose.msra.mxu0 %v534
  %3936 = vmatprep.subr.mxu0 0.0
  %3937 = vmatpush1.xpose.msra.mxu0 %v537
  %3938 = vmatprep.subr.mxu0 0.0
  %3939 = vmatpush1.xpose.msra.mxu0 %v540
  %3940 = vmatprep.subr.mxu0 0.0
  %3941 = vmatpush1.xpose.msra.mxu0 %v543
  %3942 = vmatprep.subr.mxu0 0.0
  %3943 = vmatpush1.xpose.msra.mxu0 %v546
  %3944 = vmatprep.subr.mxu0 0.0
  %3945 = vmatpush1.xpose.msra.mxu0 0.0
  %3946 = vmatprep.subr.mxu0 0.0
  %3947 = vmatpush1.xpose.msra.mxu0 0.0
  %3948 = vmatprep.subr.mxu0 0.0
  %3949 = vmatpush1.xpose.msra.mxu0 0.0
  %3950 = vmatprep.subr.mxu0 0.0
  %3951 = vmatpush1.xpose.msra.mxu0 0.0
  %3952 = vmatprep.subr.mxu0 0.0
  %3953 = vmatpush1.xpose.msra.mxu0 0.0
  %3954 = vmatprep.subr.mxu0 0.0
  %3955 = vmatpush1.xpose.msra.mxu0 0.0
  %3956 = vmatprep.subr.mxu0 0.0
  %3957 = vmatpush1.xpose.msra.mxu0 0.0
  %3958 = vmatprep.subr.mxu0 0.0
  %3959 = vmatpush1.xpose.msra.mxu0 0.0
  %3960 = vmatprep.subr.mxu0 0.0
  %3961 = vmatpush1.xpose.msra.mxu0 0.0
  %3962 = vmatprep.subr.mxu0 0.0
  %3963 = vmatpush1.xpose.msra.mxu0 0.0
  %3964 = vmatprep.subr.mxu0 0.0
  %3965 = vmatpush1.xpose.msra.mxu0 0.0
  %3966 = vmatprep.subr.mxu0 0.0
  %3967 = vmatpush1.xpose.msra.mxu0 0.0
  %3968 = vmatprep.subr.mxu0 0.0
  %3969 = vmatpush1.xpose.msra.mxu0 0.0
  %3970 = vmatprep.subr.mxu0 0.0
  %3971 = vmatpush1.xpose.msra.mxu0 0.0
  %3972 = vmatprep.subr.mxu0 0.0
  %3973 = vmatpush1.xpose.msra.mxu0 0.0
  %3974 = vmatprep.subr.mxu0 0.0
  %3975 = vmatpush1.xpose.msra.mxu0 0.0
  %3976 = vmatprep.subr.mxu0 0.0
  %3977 = vmatpush1.xpose.msra.mxu0 0.0
  %3978 = vmatprep.subr.mxu0 0.0
  %3979 = vmatpush1.xpose.msra.mxu0 0.0
  %3980 = vmatprep.subr.mxu0 0.0
  %3981 = vmatpush1.xpose.msra.mxu0 0.0
  %3982 = vmatprep.subr.mxu0 0.0
  %3983 = vmatpush1.xpose.msra.mxu0 0.0
  %3984 = vmatprep.subr.mxu0 0.0
  %3985 = vmatpush1.xpose.msra.mxu0 0.0
  %3986 = vmatprep.subr.mxu0 0.0
  %3987 = vmatpush1.xpose.msra.mxu0 0.0
  %3988 = vmatprep.subr.mxu0 0.0
  %3989 = vmatpush1.xpose.msra.mxu0 0.0
  %3990 = vmatprep.subr.mxu0 0.0
  %3991 = vmatpush1.xpose.msra.mxu0 0.0
  %3992 = vmatprep.mubr.f32.mxu0 0.0
  %3993 = vmatmul.mubr.f32.gmra.mrb[0].mxu0 %v3923
  %v3994 = vpop.f32.mrb[0].mxu0
  %v3995 = vadd.f32 0.0, %v3994
  %v3996 = vpop.f32.mrb[0].mxu0
  %3997 = vmatprep.mubr.f32.mxu0 0.0
  %3998 = vmatmul.mubr.f32.gmra.mrb[0].mxu0 %v3926
  %v3999 = vpop.f32.mrb[0].mxu0
  %v4000 = vadd.f32 0.0, %v3999
  %v4001 = vpop.f32.mrb[0].mxu0
  %4002 = vdwg.mxu0
  %v4003 = vmul.f32 %v3836, %v3995
  %v4004 = vmul.f32 %v3838, %v4000
  %4013 = vrot.lane.b32.xlu0 %v3694, 64
  %v4014 = vpop.permute.xlu0 %4013
  %4015 = vrot.lane.b32.xlu0 %v3695, 64
  %v4016 = vpop.permute.xlu0 %4015
  %4017 = vrot.lane.b32.xlu0 %v3696, 64
  %v4018 = vpop.permute.xlu0 %4017
  %4019 = vrot.lane.b32.xlu0 %v3697, 64
  %v4020 = vpop.permute.xlu0 %4019
  %4021 = vrot.lane.b32.xlu0 %v3698, 64
  %v4022 = vpop.permute.xlu0 %4021
  %4023 = vrot.lane.b32.xlu0 %v3699, 64
  %v4024 = vpop.permute.xlu0 %4023
  %4025 = vrot.lane.b32.xlu0 %v3700, 64
  %v4026 = vpop.permute.xlu0 %4025
  %4027 = vrot.lane.b32.xlu0 %v3701, 64
  %v4028 = vpop.permute.xlu0 %4027
  %v4038 = vsel %vm421, %v4003, 0
  %v4041 = vsel %vm421, %v4004, 0
  %4043 = vmatprep.subr.mxu0 0.0
  %4044 = vmatpush1.msra.mxu0 %v4014
  %4045 = vmatprep.subr.mxu0 0.0
  %4046 = vmatpush1.msra.mxu0 %v4016
  %4047 = vmatprep.subr.mxu0 0.0
  %4048 = vmatpush1.msra.mxu0 %v4018
  %4049 = vmatprep.subr.mxu0 0.0
  %4050 = vmatpush1.msra.mxu0 %v4020
  %4051 = vmatprep.subr.mxu0 0.0
  %4052 = vmatpush1.msra.mxu0 %v4022
  %4053 = vmatprep.subr.mxu0 0.0
  %4054 = vmatpush1.msra.mxu0 %v4024
  %4055 = vmatprep.subr.mxu0 0.0
  %4056 = vmatpush1.msra.mxu0 %v4026
  %4057 = vmatprep.subr.mxu0 0.0
  %4058 = vmatpush1.msra.mxu0 %v4028
  %4059 = vmatprep.subr.mxu0 0.0
  %4060 = vmatpush1.msra.mxu0 0.0
  %4061 = vmatprep.subr.mxu0 0.0
  %4062 = vmatpush1.msra.mxu0 0.0
  %4063 = vmatprep.subr.mxu0 0.0
  %4064 = vmatpush1.msra.mxu0 0.0
  %4065 = vmatprep.subr.mxu0 0.0
  %4066 = vmatpush1.msra.mxu0 0.0
  %4067 = vmatprep.subr.mxu0 0.0
  %4068 = vmatpush1.msra.mxu0 0.0
  %4069 = vmatprep.subr.mxu0 0.0
  %4070 = vmatpush1.msra.mxu0 0.0
  %4071 = vmatprep.subr.mxu0 0.0
  %4072 = vmatpush1.msra.mxu0 0.0
  %4073 = vmatprep.subr.mxu0 0.0
  %4074 = vmatpush1.msra.mxu0 0.0
  %4075 = vmatprep.subr.mxu0 0.0
  %4076 = vmatpush1.msra.mxu0 0.0
  %4077 = vmatprep.subr.mxu0 0.0
  %4078 = vmatpush1.msra.mxu0 0.0
  %4079 = vmatprep.subr.mxu0 0.0
  %4080 = vmatpush1.msra.mxu0 0.0
  %4081 = vmatprep.subr.mxu0 0.0
  %4082 = vmatpush1.msra.mxu0 0.0
  %4083 = vmatprep.subr.mxu0 0.0
  %4084 = vmatpush1.msra.mxu0 0.0
  %4085 = vmatprep.subr.mxu0 0.0
  %4086 = vmatpush1.msra.mxu0 0.0
  %4087 = vmatprep.subr.mxu0 0.0
  %4088 = vmatpush1.msra.mxu0 0.0
  %4089 = vmatprep.subr.mxu0 0.0
  %4090 = vmatpush1.msra.mxu0 0.0
  %4091 = vmatprep.subr.mxu0 0.0
  %4092 = vmatpush1.msra.mxu0 0.0
  %4093 = vmatprep.subr.mxu0 0.0
  %4094 = vmatpush1.msra.mxu0 0.0
  %4095 = vmatprep.subr.mxu0 0.0
  %4096 = vmatpush1.msra.mxu0 0.0
  %4097 = vmatprep.subr.mxu0 0.0
  %4098 = vmatpush1.msra.mxu0 0.0
  %4099 = vmatprep.subr.mxu0 0.0
  %4100 = vmatpush1.msra.mxu0 0.0
  %4101 = vmatprep.subr.mxu0 0.0
  %4102 = vmatpush1.msra.mxu0 0.0
  %4103 = vmatprep.subr.mxu0 0.0
  %4104 = vmatpush1.msra.mxu0 0.0
  %4105 = vmatprep.subr.mxu0 0.0
  %4106 = vmatpush1.msra.mxu0 0.0
  %4107 = vmatprep.mubr.f32.mxu0 0.0
  %4108 = vmatmul.mubr.f32.gmra.mrb[0].mxu0 %v4038
  %v4109 = vpop.f32.mrb[0].mxu0
  %v4110 = vadd.f32 0.0, %v4109
  %v4111 = vpop.f32.mrb[0].mxu0
  %4112 = vmatprep.mubr.f32.mxu0 0.0
  %4113 = vmatmul.mubr.f32.gmra.mrb[0].mxu0 %v4041
  %v4114 = vpop.f32.mrb[0].mxu0
  %v4115 = vadd.f32 0.0, %v4114
  %v4116 = vpop.f32.mrb[0].mxu0
  %4117 = vdwg.mxu0
  %v4118 = vld [vmem:[%s3 + $0x150] sm:$0xff]
  %v4119 = vld [vmem:[%s3 + $0x158] sm:$0xff]
  %v4120 = vld [vmem:[%s3 + $0x160] sm:$0xff]
  %v4121 = vld [vmem:[%s3 + $0x168] sm:$0xff]
  %v4122 = vld [vmem:[%s4 + $0x58] sm:$0x1]
  %v4123 = vlaneseq
  %v4124 = vshrl.u32 %v4123, 7
  %v4125 = vsub.s32 0, %v4124
  %v4126 = vrot.slane %v4122, %v4125
  %v4128 = vsel %vm142, %v4110, 0
  %v4131 = vsel %vm142, %v4115, 0
  %4133 = vmatprep.subr.mxu0 0.0
  %4134 = vmatpush1.msra.mxu0 %v4118
  %4135 = vmatprep.subr.mxu0 0.0
  %4136 = vmatpush1.msra.mxu0 %v4119
  %4137 = vmatprep.subr.mxu0 0.0
  %4138 = vmatpush1.msra.mxu0 %v4120
  %4139 = vmatprep.subr.mxu0 0.0
  %4140 = vmatpush1.msra.mxu0 %v4121
  %4141 = vmatprep.subr.mxu0 0.0
  %4142 = vmatpush1.msra.mxu0 0.0
  %4143 = vmatprep.subr.mxu0 0.0
  %4144 = vmatpush1.msra.mxu0 0.0
  %4145 = vmatprep.subr.mxu0 0.0
  %4146 = vmatpush1.msra.mxu0 0.0
  %4147 = vmatprep.subr.mxu0 0.0
  %4148 = vmatpush1.msra.mxu0 0.0
  %4149 = vmatprep.subr.mxu0 0.0
  %4150 = vmatpush1.msra.mxu0 0.0
  %4151 = vmatprep.subr.mxu0 0.0
  %4152 = vmatpush1.msra.mxu0 0.0
  %4153 = vmatprep.subr.mxu0 0.0
  %4154 = vmatpush1.msra.mxu0 0.0
  %4155 = vmatprep.subr.mxu0 0.0
  %4156 = vmatpush1.msra.mxu0 0.0
  %4157 = vmatprep.subr.mxu0 0.0
  %4158 = vmatpush1.msra.mxu0 0.0
  %4159 = vmatprep.subr.mxu0 0.0
  %4160 = vmatpush1.msra.mxu0 0.0
  %4161 = vmatprep.subr.mxu0 0.0
  %4162 = vmatpush1.msra.mxu0 0.0
  %4163 = vmatprep.subr.mxu0 0.0
  %4164 = vmatpush1.msra.mxu0 0.0
  %4165 = vmatprep.subr.mxu0 0.0
  %4166 = vmatpush1.msra.mxu0 0.0
  %4167 = vmatprep.subr.mxu0 0.0
  %4168 = vmatpush1.msra.mxu0 0.0
  %4169 = vmatprep.subr.mxu0 0.0
  %4170 = vmatpush1.msra.mxu0 0.0
  %4171 = vmatprep.subr.mxu0 0.0
  %4172 = vmatpush1.msra.mxu0 0.0
  %4173 = vmatprep.subr.mxu0 0.0
  %4174 = vmatpush1.msra.mxu0 0.0
  %4175 = vmatprep.subr.mxu0 0.0
  %4176 = vmatpush1.msra.mxu0 0.0
  %4177 = vmatprep.subr.mxu0 0.0
  %4178 = vmatpush1.msra.mxu0 0.0
  %4179 = vmatprep.subr.mxu0 0.0
  %4180 = vmatpush1.msra.mxu0 0.0
  %4181 = vmatprep.subr.mxu0 0.0
  %4182 = vmatpush1.msra.mxu0 0.0
  %4183 = vmatprep.subr.mxu0 0.0
  %4184 = vmatpush1.msra.mxu0 0.0
  %4185 = vmatprep.subr.mxu0 0.0
  %4186 = vmatpush1.msra.mxu0 0.0
  %4187 = vmatprep.subr.mxu0 0.0
  %4188 = vmatpush1.msra.mxu0 0.0
  %4189 = vmatprep.subr.mxu0 0.0
  %4190 = vmatpush1.msra.mxu0 0.0
  %4191 = vmatprep.subr.mxu0 0.0
  %4192 = vmatpush1.msra.mxu0 0.0
  %4193 = vmatprep.subr.mxu0 0.0
  %4194 = vmatpush1.msra.mxu0 0.0
  %4195 = vmatprep.subr.mxu0 0.0
  %4196 = vmatpush1.msra.mxu0 0.0
  %4197 = vmatprep.mubr.f32.mxu0 0.0
  %4198 = vmatmul.mubr.f32.gmra.mrb[0].mxu0 %v4128
  %v4199 = vpop.f32.mrb[0].mxu0
  %v4200 = vadd.f32 %v4126, %v4199
  %v4201 = vpop.f32.mrb[0].mxu0
  %4202 = vmatprep.mubr.f32.mxu0 0.0
  %4203 = vmatmul.mubr.f32.gmra.mrb[0].mxu0 %v4131
  %v4204 = vpop.f32.mrb[0].mxu0
  %v4205 = vadd.f32 %v4126, %v4204
  %v4206 = vpop.f32.mrb[0].mxu0
  %4207 = vdwg.mxu0
  %v4208 = vadd.f32 %v3594, %v4200
  %v4209 = vadd.f32 %v3595, %v4205
  %v4210 = vsel %vm142, %v4208, 0.0
  %4211 = vadd.xlane.f32.xlu0 %v4210
  %v4212 = vpop.xlane.xlu0 %4211
  %v4213 = vsel %vm142, %v4209, 0.0
  %4214 = vadd.xlane.f32.xlu0 %v4213
  %v4215 = vpop.xlane.xlu0 %4214
  %v4216 = vmul.f32 %v4212, %v836
  %v4217 = vmul.f32 %v4215, %v836
  %v4218 = vsub.f32 %v4208, %v4216
  %v4219 = vsub.f32 %v4209, %v4217
  %v4220 = vmul.f32 %v4218, %v4218
  %v4221 = vmul.f32 %v4219, %v4219
  %v4222 = vsel %vm142, %v4220, 0.0
  %4223 = vadd.xlane.f32.xlu0 %v4222
  %v4224 = vpop.xlane.xlu0 %4223
  %v4225 = vsel %vm142, %v4221, 0.0
  %4226 = vadd.xlane.f32.xlu0 %v4225
  %v4227 = vpop.xlane.xlu0 %4226
  %v4228 = vmul.f32 %v4224, %v836
  %v4229 = vmul.f32 %v4227, %v836
  %v4230 = vadd.f32 %v4228, 1e-05
  %v4231 = vadd.f32 %v4229, 1e-05
  %v4232 = vrsqrt.pop %v4230
  %v4233 = vrsqrt.pop %v4231
  %v4234 = vmul.f32 %v4218, %v4232
  %v4235 = vmul.f32 %v4219, %v4233
  %v4236 = vld [vmem:[%s4 + $0x120] sm:$0x1]
  %v4237 = vlaneseq
  %v4238 = vshrl.u32 %v4237, 7
  %v4239 = vsub.s32 0, %v4238
  %v4240 = vrot.slane %v4236, %v4239
  %v4241 = vmul.f32 %v4234, %v4240
  %v4242 = vmul.f32 %v4235, %v4240
  %v4243 = vld [vmem:[%s4 + $0x128] sm:$0x1]
  %v4244 = vlaneseq
  %v4245 = vshrl.u32 %v4244, 7
  %v4246 = vsub.s32 0, %v4245
  %v4247 = vrot.slane %v4243, %v4246
  %v4248 = vadd.f32 %v4241, %v4247
  %v4249 = vadd.f32 %v4242, %v4247
  %v4250 = vld [vmem:[%s3 + $0x170] sm:$0xff]
  %v4251 = vld [vmem:[%s3 + $0x178] sm:$0xff]
  %v4252 = vld [vmem:[%s3 + $0x180] sm:$0xff]
  %v4253 = vld [vmem:[%s3 + $0x188] sm:$0xff]
  %v4254 = vld [vmem:[%s4 + $0x60] sm:$0x1]
  %v4255 = vlaneseq
  %v4256 = vshrl.u32 %v4255, 7
  %v4257 = vsub.s32 0, %v4256
  %v4258 = vrot.slane %v4254, %v4257
  %v4260 = vsel %vm142, %v4248, 0
  %v4263 = vsel %vm142, %v4249, 0
  %4265 = vmatprep.subr.mxu0 0.0
  %4266 = vmatpush1.msra.mxu0 %v4250
  %4267 = vmatprep.subr.mxu0 0.0
  %4268 = vmatpush1.msra.mxu0 %v4251
  %4269 = vmatprep.subr.mxu0 0.0
  %4270 = vmatpush1.msra.mxu0 %v4252
  %4271 = vmatprep.subr.mxu0 0.0
  %4272 = vmatpush1.msra.mxu0 %v4253
  %4273 = vmatprep.subr.mxu0 0.0
  %4274 = vmatpush1.msra.mxu0 0.0
  %4275 = vmatprep.subr.mxu0 0.0
  %4276 = vmatpush1.msra.mxu0 0.0
  %4277 = vmatprep.subr.mxu0 0.0
  %4278 = vmatpush1.msra.mxu0 0.0
  %4279 = vmatprep.subr.mxu0 0.0
  %4280 = vmatpush1.msra.mxu0 0.0
  %4281 = vmatprep.subr.mxu0 0.0
  %4282 = vmatpush1.msra.mxu0 0.0
  %4283 = vmatprep.subr.mxu0 0.0
  %4284 = vmatpush1.msra.mxu0 0.0
  %4285 = vmatprep.subr.mxu0 0.0
  %4286 = vmatpush1.msra.mxu0 0.0
  %4287 = vmatprep.subr.mxu0 0.0
  %4288 = vmatpush1.msra.mxu0 0.0
  %4289 = vmatprep.subr.mxu0 0.0
  %4290 = vmatpush1.msra.mxu0 0.0
  %4291 = vmatprep.subr.mxu0 0.0
  %4292 = vmatpush1.msra.mxu0 0.0
  %4293 = vmatprep.subr.mxu0 0.0
  %4294 = vmatpush1.msra.mxu0 0.0
  %4295 = vmatprep.subr.mxu0 0.0
  %4296 = vmatpush1.msra.mxu0 0.0
  %4297 = vmatprep.subr.mxu0 0.0
  %4298 = vmatpush1.msra.mxu0 0.0
  %4299 = vmatprep.subr.mxu0 0.0
  %4300 = vmatpush1.msra.mxu0 0.0
  %4301 = vmatprep.subr.mxu0 0.0
  %4302 = vmatpush1.msra.mxu0 0.0
  %4303 = vmatprep.subr.mxu0 0.0
  %4304 = vmatpush1.msra.mxu0 0.0
  %4305 = vmatprep.subr.mxu0 0.0
  %4306 = vmatpush1.msra.mxu0 0.0
  %4307 = vmatprep.subr.mxu0 0.0
  %4308 = vmatpush1.msra.mxu0 0.0
  %4309 = vmatprep.subr.mxu0 0.0
  %4310 = vmatpush1.msra.mxu0 0.0
  %4311 = vmatprep.subr.mxu0 0.0
  %4312 = vmatpush1.msra.mxu0 0.0
  %4313 = vmatprep.subr.mxu0 0.0
  %4314 = vmatpush1.msra.mxu0 0.0
  %4315 = vmatprep.subr.mxu0 0.0
  %4316 = vmatpush1.msra.mxu0 0.0
  %4317 = vmatprep.subr.mxu0 0.0
  %4318 = vmatpush1.msra.mxu0 0.0
  %4319 = vmatprep.subr.mxu0 0.0
  %4320 = vmatpush1.msra.mxu0 0.0
  %4321 = vmatprep.subr.mxu0 0.0
  %4322 = vmatpush1.msra.mxu0 0.0
  %4323 = vmatprep.subr.mxu0 0.0
  %4324 = vmatpush1.msra.mxu0 0.0
  %4325 = vmatprep.subr.mxu0 0.0
  %4326 = vmatpush1.msra.mxu0 0.0
  %4327 = vmatprep.subr.mxu0 0.0
  %4328 = vmatpush1.msra.mxu0 0.0
  %4329 = vmatprep.mubr.f32.mxu0 0.0
  %4330 = vmatmul.mubr.f32.gmra.mrb[0].mxu0 %v4260
  %v4331 = vpop.f32.mrb[0].mxu0
  %v4332 = vadd.f32 %v4258, %v4331
  %v4333 = vpop.f32.mrb[0].mxu0
  %4334 = vmatprep.mubr.f32.mxu0 0.0
  %4335 = vmatmul.mubr.f32.gmra.mrb[0].mxu0 %v4263
  %v4336 = vpop.f32.mrb[0].mxu0
  %v4337 = vadd.f32 %v4258, %v4336
  %v4338 = vpop.f32.mrb[0].mxu0
  %4339 = vdwg.mxu0
  %4344 = vrot.lane.b32.xlu0 %v4250, 96
  %v4345 = vpop.permute.xlu0 %4344
  %4346 = vrot.lane.b32.xlu0 %v4251, 96
  %v4347 = vpop.permute.xlu0 %4346
  %4348 = vrot.lane.b32.xlu0 %v4252, 96
  %v4349 = vpop.permute.xlu0 %4348
  %4350 = vrot.lane.b32.xlu0 %v4253, 96
  %v4351 = vpop.permute.xlu0 %4350
  %4357 = vrot.lane.b32.xlu0 %v4258, 96
  %v4358 = vpop.permute.xlu0 %4357
  %4360 = vmatprep.subr.mxu0 0.0
  %4361 = vmatpush1.msra.mxu0 %v4345
  %4362 = vmatprep.subr.mxu0 0.0
  %4363 = vmatpush1.msra.mxu0 %v4347
  %4364 = vmatprep.subr.mxu0 0.0
  %4365 = vmatpush1.msra.mxu0 %v4349
  %4366 = vmatprep.subr.mxu0 0.0
  %4367 = vmatpush1.msra.mxu0 %v4351
  %4368 = vmatprep.subr.mxu0 0.0
  %4369 = vmatpush1.msra.mxu0 0.0
  %4370 = vmatprep.subr.mxu0 0.0
  %4371 = vmatpush1.msra.mxu0 0.0
  %4372 = vmatprep.subr.mxu0 0.0
  %4373 = vmatpush1.msra.mxu0 0.0
  %4374 = vmatprep.subr.mxu0 0.0
  %4375 = vmatpush1.msra.mxu0 0.0
  %4376 = vmatprep.subr.mxu0 0.0
  %4377 = vmatpush1.msra.mxu0 0.0
  %4378 = vmatprep.subr.mxu0 0.0
  %4379 = vmatpush1.msra.mxu0 0.0
  %4380 = vmatprep.subr.mxu0 0.0
  %4381 = vmatpush1.msra.mxu0 0.0
  %4382 = vmatprep.subr.mxu0 0.0
  %4383 = vmatpush1.msra.mxu0 0.0
  %4384 = vmatprep.subr.mxu0 0.0
  %4385 = vmatpush1.msra.mxu0 0.0
  %4386 = vmatprep.subr.mxu0 0.0
  %4387 = vmatpush1.msra.mxu0 0.0
  %4388 = vmatprep.subr.mxu0 0.0
  %4389 = vmatpush1.msra.mxu0 0.0
  %4390 = vmatprep.subr.mxu0 0.0
  %4391 = vmatpush1.msra.mxu0 0.0
  %4392 = vmatprep.subr.mxu0 0.0
  %4393 = vmatpush1.msra.mxu0 0.0
  %4394 = vmatprep.subr.mxu0 0.0
  %4395 = vmatpush1.msra.mxu0 0.0
  %4396 = vmatprep.subr.mxu0 0.0
  %4397 = vmatpush1.msra.mxu0 0.0
  %4398 = vmatprep.subr.mxu0 0.0
  %4399 = vmatpush1.msra.mxu0 0.0
  %4400 = vmatprep.subr.mxu0 0.0
  %4401 = vmatpush1.msra.mxu0 0.0
  %4402 = vmatprep.subr.mxu0 0.0
  %4403 = vmatpush1.msra.mxu0 0.0
  %4404 = vmatprep.subr.mxu0 0.0
  %4405 = vmatpush1.msra.mxu0 0.0
  %4406 = vmatprep.subr.mxu0 0.0
  %4407 = vmatpush1.msra.mxu0 0.0
  %4408 = vmatprep.subr.mxu0 0.0
  %4409 = vmatpush1.msra.mxu0 0.0
  %4410 = vmatprep.subr.mxu0 0.0
  %4411 = vmatpush1.msra.mxu0 0.0
  %4412 = vmatprep.subr.mxu0 0.0
  %4413 = vmatpush1.msra.mxu0 0.0
  %4414 = vmatprep.subr.mxu0 0.0
  %4415 = vmatpush1.msra.mxu0 0.0
  %4416 = vmatprep.subr.mxu0 0.0
  %4417 = vmatpush1.msra.mxu0 0.0
  %4418 = vmatprep.subr.mxu0 0.0
  %4419 = vmatpush1.msra.mxu0 0.0
  %4420 = vmatprep.subr.mxu0 0.0
  %4421 = vmatpush1.msra.mxu0 0.0
  %4422 = vmatprep.subr.mxu0 0.0
  %4423 = vmatpush1.msra.mxu0 0.0
  %4424 = vmatprep.mubr.f32.mxu0 0.0
  %4425 = vmatmul.mubr.f32.gmra.mrb[0].mxu0 %v2740
  %v4426 = vpop.f32.mrb[0].mxu0
  %v4427 = vadd.f32 %v4358, %v4426
  %v4428 = vpop.f32.mrb[0].mxu0
  %4429 = vmatprep.mubr.f32.mxu0 0.0
  %4430 = vmatmul.mubr.f32.gmra.mrb[0].mxu0 %v2743
  %v4431 = vpop.f32.mrb[0].mxu0
  %v4432 = vadd.f32 %v4358, %v4431
  %v4433 = vpop.f32.mrb[0].mxu0
  %4434 = vdwg.mxu0
  %v4435 = vmul.f32 %v4427, %v20
  %v4436 = vmul.f32 %v4432, %v21
  %v4437 = vmul.f32 %v4427, %v22
  %v4438 = vmul.f32 %v4432, %v23
  %v4439 = vmul.f32 %v4427, %v24
  %v4440 = vmul.f32 %v4432, %v25
  %v4441 = vmul.f32 %v4427, %v26
  %v4442 = vmul.f32 %v4432, %v27
  %v4443 = vmul.f32 %v4427, %v233
  %v4444 = vmul.f32 %v4432, %v235
  %v4445 = vmul.f32 %v4427, %v237
  %v4446 = vmul.f32 %v4432, %v239
  %v4447 = vmul.f32 %v4427, %v241
  %v4448 = vmul.f32 %v4432, %v243
  %v4449 = vmul.f32 %v4427, %v245
  %v4450 = vmul.f32 %v4432, %v247
  %v4452 = vsel %vm142, %v4332, 0
  %v4455 = vsel %vm142, %v4337, 0
  %v4458 = vsel %vm142, %v4435, 0
  %v4461 = vsel %vm142, %v4436, 0
  %v4464 = vsel %vm142, %v4437, 0
  %v4467 = vsel %vm142, %v4438, 0
  %v4470 = vsel %vm142, %v4439, 0
  %v4473 = vsel %vm142, %v4440, 0
  %v4476 = vsel %vm142, %v4441, 0
  %v4479 = vsel %vm142, %v4442, 0
  %4481 = vmatprep.subr.mxu0 0.0
  %4482 = vmatpush1.xpose.msra.mxu0 %v4458
  %4483 = vmatprep.subr.mxu0 0.0
  %4484 = vmatpush1.xpose.msra.mxu0 %v4461
  %4485 = vmatprep.subr.mxu0 0.0
  %4486 = vmatpush1.xpose.msra.mxu0 %v4464
  %4487 = vmatprep.subr.mxu0 0.0
  %4488 = vmatpush1.xpose.msra.mxu0 %v4467
  %4489 = vmatprep.subr.mxu0 0.0
  %4490 = vmatpush1.xpose.msra.mxu0 %v4470
  %4491 = vmatprep.subr.mxu0 0.0
  %4492 = vmatpush1.xpose.msra.mxu0 %v4473
  %4493 = vmatprep.subr.mxu0 0.0
  %4494 = vmatpush1.xpose.msra.mxu0 %v4476
  %4495 = vmatprep.subr.mxu0 0.0
  %4496 = vmatpush1.xpose.msra.mxu0 %v4479
  %4497 = vmatprep.subr.mxu0 0.0
  %4498 = vmatpush1.xpose.msra.mxu0 0.0
  %4499 = vmatprep.subr.mxu0 0.0
  %4500 = vmatpush1.xpose.msra.mxu0 0.0
  %4501 = vmatprep.subr.mxu0 0.0
  %4502 = vmatpush1.xpose.msra.mxu0 0.0
  %4503 = vmatprep.subr.mxu0 0.0
  %4504 = vmatpush1.xpose.msra.mxu0 0.0
  %4505 = vmatprep.subr.mxu0 0.0
  %4506 = vmatpush1.xpose.msra.mxu0 0.0
  %4507 = vmatprep.subr.mxu0 0.0
  %4508 = vmatpush1.xpose.msra.mxu0 0.0
  %4509 = vmatprep.subr.mxu0 0.0
  %4510 = vmatpush1.xpose.msra.mxu0 0.0
  %4511 = vmatprep.subr.mxu0 0.0
  %4512 = vmatpush1.xpose.msra.mxu0 0.0
  %4513 = vmatprep.subr.mxu0 0.0
  %4514 = vmatpush1.xpose.msra.mxu0 0.0
  %4515 = vmatprep.subr.mxu0 0.0
  %4516 = vmatpush1.xpose.msra.mxu0 0.0
  %4517 = vmatprep.subr.mxu0 0.0
  %4518 = vmatpush1.xpose.msra.mxu0 0.0
  %4519 = vmatprep.subr.mxu0 0.0
  %4520 = vmatpush1.xpose.msra.mxu0 0.0
  %4521 = vmatprep.subr.mxu0 0.0
  %4522 = vmatpush1.xpose.msra.mxu0 0.0
  %4523 = vmatprep.subr.mxu0 0.0
  %4524 = vmatpush1.xpose.msra.mxu0 0.0
  %4525 = vmatprep.subr.mxu0 0.0
  %4526 = vmatpush1.xpose.msra.mxu0 0.0
  %4527 = vmatprep.subr.mxu0 0.0
  %4528 = vmatpush1.xpose.msra.mxu0 0.0
  %4529 = vmatprep.subr.mxu0 0.0
  %4530 = vmatpush1.xpose.msra.mxu0 0.0
  %4531 = vmatprep.subr.mxu0 0.0
  %4532 = vmatpush1.xpose.msra.mxu0 0.0
  %4533 = vmatprep.subr.mxu0 0.0
  %4534 = vmatpush1.xpose.msra.mxu0 0.0
  %4535 = vmatprep.subr.mxu0 0.0
  %4536 = vmatpush1.xpose.msra.mxu0 0.0
  %4537 = vmatprep.subr.mxu0 0.0
  %4538 = vmatpush1.xpose.msra.mxu0 0.0
  %4539 = vmatprep.subr.mxu0 0.0
  %4540 = vmatpush1.xpose.msra.mxu0 0.0
  %4541 = vmatprep.subr.mxu0 0.0
  %4542 = vmatpush1.xpose.msra.mxu0 0.0
  %4543 = vmatprep.subr.mxu0 0.0
  %4544 = vmatpush1.xpose.msra.mxu0 0.0
  %4545 = vmatprep.mubr.f32.mxu0 0.0
  %4546 = vmatmul.mubr.f32.gmra.mrb[0].mxu0 %v4452
  %v4547 = vpop.f32.mrb[0].mxu0
  %v4548 = vadd.f32 0.0, %v4547
  %v4549 = vpop.f32.mrb[0].mxu0
  %4550 = vmatprep.mubr.f32.mxu0 0.0
  %4551 = vmatmul.mubr.f32.gmra.mrb[0].mxu0 %v4455
  %v4552 = vpop.f32.mrb[0].mxu0
  %v4553 = vadd.f32 0.0, %v4552
  %v4554 = vpop.f32.mrb[0].mxu0
  %4555 = vdwg.mxu0
  %v4556 = vmul.f32 %v4548, 0.35355338
  %v4557 = vmul.f32 %v4553, 0.35355338
  %v4558 = vadd.f32 %v4556, %v36
  %v4559 = vadd.f32 %v4557, %v37
  %v4560 = vsel %vm421, %v4558, -inf
  %4561 = vmax.xlane.f32.xlu0 %v4560
  %v4562 = vpop.xlane.xlu0 %4561
  %v4563 = vsel %vm421, %v4559, -inf
  %4564 = vmax.xlane.f32.xlu0 %v4563
  %v4565 = vpop.xlane.xlu0 %4564
  %v4566 = vsub.f32 %v4558, %v4562
  %v4567 = vsub.f32 %v4559, %v4565
  %v4568 = vmul.f32 %v4566, 1.442695
  %v4569 = vpow.pop %v4568
  %v4570 = vmul.f32 %v4567, 1.442695
  %v4571 = vpow.pop %v4570
  %v4573 = vsel %vm421, %v4569, 0
  %v4576 = vsel %vm421, %v4571, 0
  %4578 = vmatprep.subr.mxu0 0.0
  %4579 = vmatpush1.msra.mxu0 %v28
  %4580 = vmatprep.subr.mxu0 0.0
  %4581 = vmatpush1.msra.mxu0 %v29
  %4582 = vmatprep.subr.mxu0 0.0
  %4583 = vmatpush1.msra.mxu0 %v30
  %4584 = vmatprep.subr.mxu0 0.0
  %4585 = vmatpush1.msra.mxu0 %v31
  %4586 = vmatprep.subr.mxu0 0.0
  %4587 = vmatpush1.msra.mxu0 %v32
  %4588 = vmatprep.subr.mxu0 0.0
  %4589 = vmatpush1.msra.mxu0 %v33
  %4590 = vmatprep.subr.mxu0 0.0
  %4591 = vmatpush1.msra.mxu0 %v34
  %4592 = vmatprep.subr.mxu0 0.0
  %4593 = vmatpush1.msra.mxu0 %v35
  %4594 = vmatprep.subr.mxu0 0.0
  %4595 = vmatpush1.msra.mxu0 0.0
  %4596 = vmatprep.subr.mxu0 0.0
  %4597 = vmatpush1.msra.mxu0 0.0
  %4598 = vmatprep.subr.mxu0 0.0
  %4599 = vmatpush1.msra.mxu0 0.0
  %4600 = vmatprep.subr.mxu0 0.0
  %4601 = vmatpush1.msra.mxu0 0.0
  %4602 = vmatprep.subr.mxu0 0.0
  %4603 = vmatpush1.msra.mxu0 0.0
  %4604 = vmatprep.subr.mxu0 0.0
  %4605 = vmatpush1.msra.mxu0 0.0
  %4606 = vmatprep.subr.mxu0 0.0
  %4607 = vmatpush1.msra.mxu0 0.0
  %4608 = vmatprep.subr.mxu0 0.0
  %4609 = vmatpush1.msra.mxu0 0.0
  %4610 = vmatprep.subr.mxu0 0.0
  %4611 = vmatpush1.msra.mxu0 0.0
  %4612 = vmatprep.subr.mxu0 0.0
  %4613 = vmatpush1.msra.mxu0 0.0
  %4614 = vmatprep.subr.mxu0 0.0
  %4615 = vmatpush1.msra.mxu0 0.0
  %4616 = vmatprep.subr.mxu0 0.0
  %4617 = vmatpush1.msra.mxu0 0.0
  %4618 = vmatprep.subr.mxu0 0.0
  %4619 = vmatpush1.msra.mxu0 0.0
  %4620 = vmatprep.subr.mxu0 0.0
  %4621 = vmatpush1.msra.mxu0 0.0
  %4622 = vmatprep.subr.mxu0 0.0
  %4623 = vmatpush1.msra.mxu0 0.0
  %4624 = vmatprep.subr.mxu0 0.0
  %4625 = vmatpush1.msra.mxu0 0.0
  %4626 = vmatprep.subr.mxu0 0.0
  %4627 = vmatpush1.msra.mxu0 0.0
  %4628 = vmatprep.subr.mxu0 0.0
  %4629 = vmatpush1.msra.mxu0 0.0
  %4630 = vmatprep.subr.mxu0 0.0
  %4631 = vmatpush1.msra.mxu0 0.0
  %4632 = vmatprep.subr.mxu0 0.0
  %4633 = vmatpush1.msra.mxu0 0.0
  %4634 = vmatprep.subr.mxu0 0.0
  %4635 = vmatpush1.msra.mxu0 0.0
  %4636 = vmatprep.subr.mxu0 0.0
  %4637 = vmatpush1.msra.mxu0 0.0
  %4638 = vmatprep.subr.mxu0 0.0
  %4639 = vmatpush1.msra.mxu0 0.0
  %4640 = vmatprep.subr.mxu0 0.0
  %4641 = vmatpush1.msra.mxu0 0.0
  %4642 = vmatprep.mubr.f32.mxu0 0.0
  %4643 = vmatmul.mubr.f32.gmra.mrb[0].mxu0 %v4573
  %v4644 = vpop.f32.mrb[0].mxu0
  %v4645 = vadd.f32 0.0, %v4644
  %v4646 = vpop.f32.mrb[0].mxu0
  %4647 = vmatprep.mubr.f32.mxu0 0.0
  %4648 = vmatmul.mubr.f32.gmra.mrb[0].mxu0 %v4576
  %v4649 = vpop.f32.mrb[0].mxu0
  %v4650 = vadd.f32 0.0, %v4649
  %v4651 = vpop.f32.mrb[0].mxu0
  %4652 = vdwg.mxu0
  %v4653 = vrcp.pop %v4645
  %v4654 = vrcp.pop %v4650
  %v4656 = vsel %vm517, %v4653, 0
  %v4659 = vsel %vm517, %v4654, 0
  %4661 = vmatprep.subr.mxu0 0.0
  %4662 = vmatpush1.xpose.msra.mxu0 %v525
  %4663 = vmatprep.subr.mxu0 0.0
  %4664 = vmatpush1.xpose.msra.mxu0 %v528
  %4665 = vmatprep.subr.mxu0 0.0
  %4666 = vmatpush1.xpose.msra.mxu0 %v531
  %4667 = vmatprep.subr.mxu0 0.0
  %4668 = vmatpush1.xpose.msra.mxu0 %v534
  %4669 = vmatprep.subr.mxu0 0.0
  %4670 = vmatpush1.xpose.msra.mxu0 %v537
  %4671 = vmatprep.subr.mxu0 0.0
  %4672 = vmatpush1.xpose.msra.mxu0 %v540
  %4673 = vmatprep.subr.mxu0 0.0
  %4674 = vmatpush1.xpose.msra.mxu0 %v543
  %4675 = vmatprep.subr.mxu0 0.0
  %4676 = vmatpush1.xpose.msra.mxu0 %v546
  %4677 = vmatprep.subr.mxu0 0.0
  %4678 = vmatpush1.xpose.msra.mxu0 0.0
  %4679 = vmatprep.subr.mxu0 0.0
  %4680 = vmatpush1.xpose.msra.mxu0 0.0
  %4681 = vmatprep.subr.mxu0 0.0
  %4682 = vmatpush1.xpose.msra.mxu0 0.0
  %4683 = vmatprep.subr.mxu0 0.0
  %4684 = vmatpush1.xpose.msra.mxu0 0.0
  %4685 = vmatprep.subr.mxu0 0.0
  %4686 = vmatpush1.xpose.msra.mxu0 0.0
  %4687 = vmatprep.subr.mxu0 0.0
  %4688 = vmatpush1.xpose.msra.mxu0 0.0
  %4689 = vmatprep.subr.mxu0 0.0
  %4690 = vmatpush1.xpose.msra.mxu0 0.0
  %4691 = vmatprep.subr.mxu0 0.0
  %4692 = vmatpush1.xpose.msra.mxu0 0.0
  %4693 = vmatprep.subr.mxu0 0.0
  %4694 = vmatpush1.xpose.msra.mxu0 0.0
  %4695 = vmatprep.subr.mxu0 0.0
  %4696 = vmatpush1.xpose.msra.mxu0 0.0
  %4697 = vmatprep.subr.mxu0 0.0
  %4698 = vmatpush1.xpose.msra.mxu0 0.0
  %4699 = vmatprep.subr.mxu0 0.0
  %4700 = vmatpush1.xpose.msra.mxu0 0.0
  %4701 = vmatprep.subr.mxu0 0.0
  %4702 = vmatpush1.xpose.msra.mxu0 0.0
  %4703 = vmatprep.subr.mxu0 0.0
  %4704 = vmatpush1.xpose.msra.mxu0 0.0
  %4705 = vmatprep.subr.mxu0 0.0
  %4706 = vmatpush1.xpose.msra.mxu0 0.0
  %4707 = vmatprep.subr.mxu0 0.0
  %4708 = vmatpush1.xpose.msra.mxu0 0.0
  %4709 = vmatprep.subr.mxu0 0.0
  %4710 = vmatpush1.xpose.msra.mxu0 0.0
  %4711 = vmatprep.subr.mxu0 0.0
  %4712 = vmatpush1.xpose.msra.mxu0 0.0
  %4713 = vmatprep.subr.mxu0 0.0
  %4714 = vmatpush1.xpose.msra.mxu0 0.0
  %4715 = vmatprep.subr.mxu0 0.0
  %4716 = vmatpush1.xpose.msra.mxu0 0.0
  %4717 = vmatprep.subr.mxu0 0.0
  %4718 = vmatpush1.xpose.msra.mxu0 0.0
  %4719 = vmatprep.subr.mxu0 0.0
  %4720 = vmatpush1.xpose.msra.mxu0 0.0
  %4721 = vmatprep.subr.mxu0 0.0
  %4722 = vmatpush1.xpose.msra.mxu0 0.0
  %4723 = vmatprep.subr.mxu0 0.0
  %4724 = vmatpush1.xpose.msra.mxu0 0.0
  %4725 = vmatprep.mubr.f32.mxu0 0.0
  %4726 = vmatmul.mubr.f32.gmra.mrb[0].mxu0 %v4656
  %v4727 = vpop.f32.mrb[0].mxu0
  %v4728 = vadd.f32 0.0, %v4727
  %v4729 = vpop.f32.mrb[0].mxu0
  %4730 = vmatprep.mubr.f32.mxu0 0.0
  %4731 = vmatmul.mubr.f32.gmra.mrb[0].mxu0 %v4659
  %v4732 = vpop.f32.mrb[0].mxu0
  %v4733 = vadd.f32 0.0, %v4732
  %v4734 = vpop.f32.mrb[0].mxu0
  %4735 = vdwg.mxu0
  %v4736 = vmul.f32 %v4569, %v4728
  %v4737 = vmul.f32 %v4571, %v4733
  %4746 = vrot.lane.b32.xlu0 %v4443, 96
  %v4747 = vpop.permute.xlu0 %4746
  %4748 = vrot.lane.b32.xlu0 %v4444, 96
  %v4749 = vpop.permute.xlu0 %4748
  %4750 = vrot.lane.b32.xlu0 %v4445, 96
  %v4751 = vpop.permute.xlu0 %4750
  %4752 = vrot.lane.b32.xlu0 %v4446, 96
  %v4753 = vpop.permute.xlu0 %4752
  %4754 = vrot.lane.b32.xlu0 %v4447, 96
  %v4755 = vpop.permute.xlu0 %4754
  %4756 = vrot.lane.b32.xlu0 %v4448, 96
  %v4757 = vpop.permute.xlu0 %4756
  %4758 = vrot.lane.b32.xlu0 %v4449, 96
  %v4759 = vpop.permute.xlu0 %4758
  %4760 = vrot.lane.b32.xlu0 %v4450, 96
  %v4761 = vpop.permute.xlu0 %4760
  %v4771 = vsel %vm421, %v4736, 0
  %v4774 = vsel %vm421, %v4737, 0
  %4776 = vmatprep.subr.mxu0 0.0
  %4777 = vmatpush1.msra.mxu0 %v4747
  %4778 = vmatprep.subr.mxu0 0.0
  %4779 = vmatpush1.msra.mxu0 %v4749
  %4780 = vmatprep.subr.mxu0 0.0
  %4781 = vmatpush1.msra.mxu0 %v4751
  %4782 = vmatprep.subr.mxu0 0.0
  %4783 = vmatpush1.msra.mxu0 %v4753
  %4784 = vmatprep.subr.mxu0 0.0
  %4785 = vmatpush1.msra.mxu0 %v4755
  %4786 = vmatprep.subr.mxu0 0.0
  %4787 = vmatpush1.msra.mxu0 %v4757
  %4788 = vmatprep.subr.mxu0 0.0
  %4789 = vmatpush1.msra.mxu0 %v4759
  %4790 = vmatprep.subr.mxu0 0.0
  %4791 = vmatpush1.msra.mxu0 %v4761
  %4792 = vmatprep.subr.mxu0 0.0
  %4793 = vmatpush1.msra.mxu0 0.0
  %4794 = vmatprep.subr.mxu0 0.0
  %4795 = vmatpush1.msra.mxu0 0.0
  %4796 = vmatprep.subr.mxu0 0.0
  %4797 = vmatpush1.msra.mxu0 0.0
  %4798 = vmatprep.subr.mxu0 0.0
  %4799 = vmatpush1.msra.mxu0 0.0
  %4800 = vmatprep.subr.mxu0 0.0
  %4801 = vmatpush1.msra.mxu0 0.0
  %4802 = vmatprep.subr.mxu0 0.0
  %4803 = vmatpush1.msra.mxu0 0.0
  %4804 = vmatprep.subr.mxu0 0.0
  %4805 = vmatpush1.msra.mxu0 0.0
  %4806 = vmatprep.subr.mxu0 0.0
  %4807 = vmatpush1.msra.mxu0 0.0
  %4808 = vmatprep.subr.mxu0 0.0
  %4809 = vmatpush1.msra.mxu0 0.0
  %4810 = vmatprep.subr.mxu0 0.0
  %4811 = vmatpush1.msra.mxu0 0.0
  %4812 = vmatprep.subr.mxu0 0.0
  %4813 = vmatpush1.msra.mxu0 0.0
  %4814 = vmatprep.subr.mxu0 0.0
  %4815 = vmatpush1.msra.mxu0 0.0
  %4816 = vmatprep.subr.mxu0 0.0
  %4817 = vmatpush1.msra.mxu0 0.0
  %4818 = vmatprep.subr.mxu0 0.0
  %4819 = vmatpush1.msra.mxu0 0.0
  %4820 = vmatprep.subr.mxu0 0.0
  %4821 = vmatpush1.msra.mxu0 0.0
  %4822 = vmatprep.subr.mxu0 0.0
  %4823 = vmatpush1.msra.mxu0 0.0
  %4824 = vmatprep.subr.mxu0 0.0
  %4825 = vmatpush1.msra.mxu0 0.0
  %4826 = vmatprep.subr.mxu0 0.0
  %4827 = vmatpush1.msra.mxu0 0.0
  %4828 = vmatprep.subr.mxu0 0.0
  %4829 = vmatpush1.msra.mxu0 0.0
  %4830 = vmatprep.subr.mxu0 0.0
  %4831 = vmatpush1.msra.mxu0 0.0
  %4832 = vmatprep.subr.mxu0 0.0
  %4833 = vmatpush1.msra.mxu0 0.0
  %4834 = vmatprep.subr.mxu0 0.0
  %4835 = vmatpush1.msra.mxu0 0.0
  %4836 = vmatprep.subr.mxu0 0.0
  %4837 = vmatpush1.msra.mxu0 0.0
  %4838 = vmatprep.subr.mxu0 0.0
  %4839 = vmatpush1.msra.mxu0 0.0
  %4840 = vmatprep.mubr.f32.mxu0 0.0
  %4841 = vmatmul.mubr.f32.gmra.mrb[0].mxu0 %v4771
  %v4842 = vpop.f32.mrb[0].mxu0
  %v4843 = vadd.f32 0.0, %v4842
  %v4844 = vpop.f32.mrb[0].mxu0
  %4845 = vmatprep.mubr.f32.mxu0 0.0
  %4846 = vmatmul.mubr.f32.gmra.mrb[0].mxu0 %v4774
  %v4847 = vpop.f32.mrb[0].mxu0
  %v4848 = vadd.f32 0.0, %v4847
  %v4849 = vpop.f32.mrb[0].mxu0
  %4850 = vdwg.mxu0
  %v4851 = vld [vmem:[%s3 + $0x190] sm:$0xff]
  %v4852 = vld [vmem:[%s3 + $0x198] sm:$0xff]
  %v4853 = vld [vmem:[%s3 + $0x1a0] sm:$0xff]
  %v4854 = vld [vmem:[%s3 + $0x1a8] sm:$0xff]
  %v4855 = vld [vmem:[%s4 + $0x68] sm:$0x1]
  %v4856 = vlaneseq
  %v4857 = vshrl.u32 %v4856, 7
  %v4858 = vsub.s32 0, %v4857
  %v4859 = vrot.slane %v4855, %v4858
  %v4861 = vsel %vm142, %v4843, 0
  %v4864 = vsel %vm142, %v4848, 0
  %4866 = vmatprep.subr.mxu0 0.0
  %4867 = vmatpush1.msra.mxu0 %v4851
  %4868 = vmatprep.subr.mxu0 0.0
  %4869 = vmatpush1.msra.mxu0 %v4852
  %4870 = vmatprep.subr.mxu0 0.0
  %4871 = vmatpush1.msra.mxu0 %v4853
  %4872 = vmatprep.subr.mxu0 0.0
  %4873 = vmatpush1.msra.mxu0 %v4854
  %4874 = vmatprep.subr.mxu0 0.0
  %4875 = vmatpush1.msra.mxu0 0.0
  %4876 = vmatprep.subr.mxu0 0.0
  %4877 = vmatpush1.msra.mxu0 0.0
  %4878 = vmatprep.subr.mxu0 0.0
  %4879 = vmatpush1.msra.mxu0 0.0
  %4880 = vmatprep.subr.mxu0 0.0
  %4881 = vmatpush1.msra.mxu0 0.0
  %4882 = vmatprep.subr.mxu0 0.0
  %4883 = vmatpush1.msra.mxu0 0.0
  %4884 = vmatprep.subr.mxu0 0.0
  %4885 = vmatpush1.msra.mxu0 0.0
  %4886 = vmatprep.subr.mxu0 0.0
  %4887 = vmatpush1.msra.mxu0 0.0
  %4888 = vmatprep.subr.mxu0 0.0
  %4889 = vmatpush1.msra.mxu0 0.0
  %4890 = vmatprep.subr.mxu0 0.0
  %4891 = vmatpush1.msra.mxu0 0.0
  %4892 = vmatprep.subr.mxu0 0.0
  %4893 = vmatpush1.msra.mxu0 0.0
  %4894 = vmatprep.subr.mxu0 0.0
  %4895 = vmatpush1.msra.mxu0 0.0
  %4896 = vmatprep.subr.mxu0 0.0
  %4897 = vmatpush1.msra.mxu0 0.0
  %4898 = vmatprep.subr.mxu0 0.0
  %4899 = vmatpush1.msra.mxu0 0.0
  %4900 = vmatprep.subr.mxu0 0.0
  %4901 = vmatpush1.msra.mxu0 0.0
  %4902 = vmatprep.subr.mxu0 0.0
  %4903 = vmatpush1.msra.mxu0 0.0
  %4904 = vmatprep.subr.mxu0 0.0
  %4905 = vmatpush1.msra.mxu0 0.0
  %4906 = vmatprep.subr.mxu0 0.0
  %4907 = vmatpush1.msra.mxu0 0.0
  %4908 = vmatprep.subr.mxu0 0.0
  %4909 = vmatpush1.msra.mxu0 0.0
  %4910 = vmatprep.subr.mxu0 0.0
  %4911 = vmatpush1.msra.mxu0 0.0
  %4912 = vmatprep.subr.mxu0 0.0
  %4913 = vmatpush1.msra.mxu0 0.0
  %4914 = vmatprep.subr.mxu0 0.0
  %4915 = vmatpush1.msra.mxu0 0.0
  %4916 = vmatprep.subr.mxu0 0.0
  %4917 = vmatpush1.msra.mxu0 0.0
  %4918 = vmatprep.subr.mxu0 0.0
  %4919 = vmatpush1.msra.mxu0 0.0
  %4920 = vmatprep.subr.mxu0 0.0
  %4921 = vmatpush1.msra.mxu0 0.0
  %4922 = vmatprep.subr.mxu0 0.0
  %4923 = vmatpush1.msra.mxu0 0.0
  %4924 = vmatprep.subr.mxu0 0.0
  %4925 = vmatpush1.msra.mxu0 0.0
  %4926 = vmatprep.subr.mxu0 0.0
  %4927 = vmatpush1.msra.mxu0 0.0
  %4928 = vmatprep.subr.mxu0 0.0
  %4929 = vmatpush1.msra.mxu0 0.0
  %4930 = vmatprep.mubr.f32.mxu0 0.0
  %4931 = vmatmul.mubr.f32.gmra.mrb[0].mxu0 %v4861
  %v4932 = vpop.f32.mrb[0].mxu0
  %v4933 = vadd.f32 %v4859, %v4932
  %v4934 = vpop.f32.mrb[0].mxu0
  %4935 = vmatprep.mubr.f32.mxu0 0.0
  %4936 = vmatmul.mubr.f32.gmra.mrb[0].mxu0 %v4864
  %v4937 = vpop.f32.mrb[0].mxu0
  %v4938 = vadd.f32 %v4859, %v4937
  %v4939 = vpop.f32.mrb[0].mxu0
  %4940 = vdwg.mxu0
  %v4941 = vadd.f32 %v4248, %v4933
  %v4942 = vadd.f32 %v4249, %v4938
  %v4943 = vsel %vm142, %v4941, 0.0
  %4944 = vadd.xlane.f32.xlu0 %v4943
  %v4945 = vpop.xlane.xlu0 %4944
  %v4946 = vsel %vm142, %v4942, 0.0
  %4947 = vadd.xlane.f32.xlu0 %v4946
  %v4948 = vpop.xlane.xlu0 %4947
  %v4949 = vmul.f32 %v4945, %v836
  %v4950 = vmul.f32 %v4948, %v836
  %v4951 = vsub.f32 %v4941, %v4949
  %v4952 = vsub.f32 %v4942, %v4950
  %v4953 = vmul.f32 %v4951, %v4951
  %v4954 = vmul.f32 %v4952, %v4952
  %v4955 = vsel %vm142, %v4953, 0.0
  %4956 = vadd.xlane.f32.xlu0 %v4955
  %v4957 = vpop.xlane.xlu0 %4956
  %v4958 = vsel %vm142, %v4954, 0.0
  %4959 = vadd.xlane.f32.xlu0 %v4958
  %v4960 = vpop.xlane.xlu0 %4959
  %v4961 = vmul.f32 %v4957, %v836
  %v4962 = vmul.f32 %v4960, %v836
  %v4963 = vadd.f32 %v4961, 1e-05
  %v4964 = vadd.f32 %v4962, 1e-05
  %v4965 = vrsqrt.pop %v4963
  %v4966 = vrsqrt.pop %v4964
  %v4967 = vmul.f32 %v4951, %v4965
  %v4968 = vmul.f32 %v4952, %v4966
  %v4969 = vld [vmem:[%s4 + $0x130] sm:$0x1]
  %v4970 = vlaneseq
  %v4971 = vshrl.u32 %v4970, 7
  %v4972 = vsub.s32 0, %v4971
  %v4973 = vrot.slane %v4969, %v4972
  %v4974 = vmul.f32 %v4967, %v4973
  %v4975 = vmul.f32 %v4968, %v4973
  %v4976 = vld [vmem:[%s4 + $0x138] sm:$0x1]
  %v4977 = vlaneseq
  %v4978 = vshrl.u32 %v4977, 7
  %v4979 = vsub.s32 0, %v4978
  %v4980 = vrot.slane %v4976, %v4979
  %v4981 = vadd.f32 %v4974, %v4980
  %v4982 = vadd.f32 %v4975, %v4980
  %v4983 = vld [vmem:[%s3 + $0x2d0] sm:$0xff]
  %v4984 = vld [vmem:[%s3 + $0x2d8] sm:$0xff]
  %v4985 = vld [vmem:[%s3 + $0x2e0] sm:$0xff]
  %v4986 = vld [vmem:[%s3 + $0x2e8] sm:$0xff]
  %v4987 = vld [vmem:[%s4 + $0xa0] sm:$0x1]
  %v4988 = vlaneseq
  %v4989 = vshrl.u32 %v4988, 7
  %v4990 = vsub.s32 0, %v4989
  %v4991 = vrot.slane %v4987, %v4990
  %v4993 = vsel %vm142, %v4981, 0
  %v4996 = vsel %vm142, %v4982, 0
  %4998 = vmatprep.subr.mxu0 0.0
  %4999 = vmatpush1.msra.mxu0 %v4983
  %5000 = vmatprep.subr.mxu0 0.0
  %5001 = vmatpush1.msra.mxu0 %v4984
  %5002 = vmatprep.subr.mxu0 0.0
  %5003 = vmatpush1.msra.mxu0 %v4985
  %5004 = vmatprep.subr.mxu0 0.0
  %5005 = vmatpush1.msra.mxu0 %v4986
  %5006 = vmatprep.subr.mxu0 0.0
  %5007 = vmatpush1.msra.mxu0 0.0
  %5008 = vmatprep.subr.mxu0 0.0
  %5009 = vmatpush1.msra.mxu0 0.0
  %5010 = vmatprep.subr.mxu0 0.0
  %5011 = vmatpush1.msra.mxu0 0.0
  %5012 = vmatprep.subr.mxu0 0.0
  %5013 = vmatpush1.msra.mxu0 0.0
  %5014 = vmatprep.subr.mxu0 0.0
  %5015 = vmatpush1.msra.mxu0 0.0
  %5016 = vmatprep.subr.mxu0 0.0
  %5017 = vmatpush1.msra.mxu0 0.0
  %5018 = vmatprep.subr.mxu0 0.0
  %5019 = vmatpush1.msra.mxu0 0.0
  %5020 = vmatprep.subr.mxu0 0.0
  %5021 = vmatpush1.msra.mxu0 0.0
  %5022 = vmatprep.subr.mxu0 0.0
  %5023 = vmatpush1.msra.mxu0 0.0
  %5024 = vmatprep.subr.mxu0 0.0
  %5025 = vmatpush1.msra.mxu0 0.0
  %5026 = vmatprep.subr.mxu0 0.0
  %5027 = vmatpush1.msra.mxu0 0.0
  %5028 = vmatprep.subr.mxu0 0.0
  %5029 = vmatpush1.msra.mxu0 0.0
  %5030 = vmatprep.subr.mxu0 0.0
  %5031 = vmatpush1.msra.mxu0 0.0
  %5032 = vmatprep.subr.mxu0 0.0
  %5033 = vmatpush1.msra.mxu0 0.0
  %5034 = vmatprep.subr.mxu0 0.0
  %5035 = vmatpush1.msra.mxu0 0.0
  %5036 = vmatprep.subr.mxu0 0.0
  %5037 = vmatpush1.msra.mxu0 0.0
  %5038 = vmatprep.subr.mxu0 0.0
  %5039 = vmatpush1.msra.mxu0 0.0
  %5040 = vmatprep.subr.mxu0 0.0
  %5041 = vmatpush1.msra.mxu0 0.0
  %5042 = vmatprep.subr.mxu0 0.0
  %5043 = vmatpush1.msra.mxu0 0.0
  %5044 = vmatprep.subr.mxu0 0.0
  %5045 = vmatpush1.msra.mxu0 0.0
  %5046 = vmatprep.subr.mxu0 0.0
  %5047 = vmatpush1.msra.mxu0 0.0
  %5048 = vmatprep.subr.mxu0 0.0
  %5049 = vmatpush1.msra.mxu0 0.0
  %5050 = vmatprep.subr.mxu0 0.0
  %5051 = vmatpush1.msra.mxu0 0.0
  %5052 = vmatprep.subr.mxu0 0.0
  %5053 = vmatpush1.msra.mxu0 0.0
  %5054 = vmatprep.subr.mxu0 0.0
  %5055 = vmatpush1.msra.mxu0 0.0
  %5056 = vmatprep.subr.mxu0 0.0
  %5057 = vmatpush1.msra.mxu0 0.0
  %5058 = vmatprep.subr.mxu0 0.0
  %5059 = vmatpush1.msra.mxu0 0.0
  %5060 = vmatprep.subr.mxu0 0.0
  %5061 = vmatpush1.msra.mxu0 0.0
  %5062 = vmatprep.mubr.f32.mxu0 0.0
  %5063 = vmatmul.mubr.f32.gmra.mrb[0].mxu0 %v4993
  %v5064 = vpop.f32.mrb[0].mxu0
  %v5065 = vadd.f32 %v4991, %v5064
  %v5066 = vpop.f32.mrb[0].mxu0
  %5067 = vmatprep.mubr.f32.mxu0 0.0
  %5068 = vmatmul.mubr.f32.gmra.mrb[0].mxu0 %v4996
  %v5069 = vpop.f32.mrb[0].mxu0
  %v5070 = vadd.f32 %v4991, %v5069
  %v5071 = vpop.f32.mrb[0].mxu0
  %5072 = vdwg.mxu0
  %v5073 = vmax.f32 %v5065, 0.0
  %v5074 = vmax.f32 %v5070, 0.0
  %v5075 = vld [vmem:[%s3 + $0x2f0] sm:$0xff]
  %v5076 = vld [vmem:[%s3 + $0x2f8] sm:$0xff]
  %v5077 = vld [vmem:[%s3 + $0x300] sm:$0xff]
  %v5078 = vld [vmem:[%s3 + $0x308] sm:$0xff]
  %v5079 = vld [vmem:[%s3 + $0x310] sm:$0xff]
  %v5080 = vld [vmem:[%s3 + $0x318] sm:$0xff]
  %v5081 = vld [vmem:[%s3 + $0x320] sm:$0xff]
  %v5082 = vld [vmem:[%s3 + $0x328] sm:$0xff]
  %v5083 = vld [vmem:[%s4 + $0xa8] sm:$0x1]
  %v5084 = vlaneseq
  %v5085 = vshrl.u32 %v5084, 7
  %v5086 = vsub.s32 0, %v5085
  %v5087 = vrot.slane %v5083, %v5086
  %v5089 = vsel %vm421, %v5073, 0
  %v5092 = vsel %vm421, %v5074, 0
  %5094 = vmatprep.subr.mxu0 0.0
  %5095 = vmatpush1.msra.mxu0 %v5075
  %5096 = vmatprep.subr.mxu0 0.0
  %5097 = vmatpush1.msra.mxu0 %v5076
  %5098 = vmatprep.subr.mxu0 0.0
  %5099 = vmatpush1.msra.mxu0 %v5077
  %5100 = vmatprep.subr.mxu0 0.0
  %5101 = vmatpush1.msra.mxu0 %v5078
  %5102 = vmatprep.subr.mxu0 0.0
  %5103 = vmatpush1.msra.mxu0 %v5079
  %5104 = vmatprep.subr.mxu0 0.0
  %5105 = vmatpush1.msra.mxu0 %v5080
  %5106 = vmatprep.subr.mxu0 0.0
  %5107 = vmatpush1.msra.mxu0 %v5081
  %5108 = vmatprep.subr.mxu0 0.0
  %5109 = vmatpush1.msra.mxu0 %v5082
  %5110 = vmatprep.subr.mxu0 0.0
  %5111 = vmatpush1.msra.mxu0 0.0
  %5112 = vmatprep.subr.mxu0 0.0
  %5113 = vmatpush1.msra.mxu0 0.0
  %5114 = vmatprep.subr.mxu0 0.0
  %5115 = vmatpush1.msra.mxu0 0.0
  %5116 = vmatprep.subr.mxu0 0.0
  %5117 = vmatpush1.msra.mxu0 0.0
  %5118 = vmatprep.subr.mxu0 0.0
  %5119 = vmatpush1.msra.mxu0 0.0
  %5120 = vmatprep.subr.mxu0 0.0
  %5121 = vmatpush1.msra.mxu0 0.0
  %5122 = vmatprep.subr.mxu0 0.0
  %5123 = vmatpush1.msra.mxu0 0.0
  %5124 = vmatprep.subr.mxu0 0.0
  %5125 = vmatpush1.msra.mxu0 0.0
  %5126 = vmatprep.subr.mxu0 0.0
  %5127 = vmatpush1.msra.mxu0 0.0
  %5128 = vmatprep.subr.mxu0 0.0
  %5129 = vmatpush1.msra.mxu0 0.0
  %5130 = vmatprep.subr.mxu0 0.0
  %5131 = vmatpush1.msra.mxu0 0.0
  %5132 = vmatprep.subr.mxu0 0.0
  %5133 = vmatpush1.msra.mxu0 0.0
  %5134 = vmatprep.subr.mxu0 0.0
  %5135 = vmatpush1.msra.mxu0 0.0
  %5136 = vmatprep.subr.mxu0 0.0
  %5137 = vmatpush1.msra.mxu0 0.0
  %5138 = vmatprep.subr.mxu0 0.0
  %5139 = vmatpush1.msra.mxu0 0.0
  %5140 = vmatprep.subr.mxu0 0.0
  %5141 = vmatpush1.msra.mxu0 0.0
  %5142 = vmatprep.subr.mxu0 0.0
  %5143 = vmatpush1.msra.mxu0 0.0
  %5144 = vmatprep.subr.mxu0 0.0
  %5145 = vmatpush1.msra.mxu0 0.0
  %5146 = vmatprep.subr.mxu0 0.0
  %5147 = vmatpush1.msra.mxu0 0.0
  %5148 = vmatprep.subr.mxu0 0.0
  %5149 = vmatpush1.msra.mxu0 0.0
  %5150 = vmatprep.subr.mxu0 0.0
  %5151 = vmatpush1.msra.mxu0 0.0
  %5152 = vmatprep.subr.mxu0 0.0
  %5153 = vmatpush1.msra.mxu0 0.0
  %5154 = vmatprep.subr.mxu0 0.0
  %5155 = vmatpush1.msra.mxu0 0.0
  %5156 = vmatprep.subr.mxu0 0.0
  %5157 = vmatpush1.msra.mxu0 0.0
  %5158 = vmatprep.mubr.f32.mxu0 0.0
  %5159 = vmatmul.mubr.f32.gmra.mrb[0].mxu0 %v5089
  %v5160 = vpop.f32.mrb[0].mxu0
  %v5161 = vadd.f32 %v5087, %v5160
  %v5162 = vpop.f32.mrb[0].mxu0
  %5163 = vmatprep.mubr.f32.mxu0 0.0
  %5164 = vmatmul.mubr.f32.gmra.mrb[0].mxu0 %v5092
  %v5165 = vpop.f32.mrb[0].mxu0
  %v5166 = vadd.f32 %v5087, %v5165
  %v5167 = vpop.f32.mrb[0].mxu0
  %5168 = vdwg.mxu0
  %v5169 = vadd.f32 %v4981, %v5161
  %v5170 = vadd.f32 %v4982, %v5166
  %v5171 = vsel %vm142, %v5169, 0.0
  %5172 = vadd.xlane.f32.xlu0 %v5171
  %v5173 = vpop.xlane.xlu0 %5172
  %v5174 = vsel %vm142, %v5170, 0.0
  %5175 = vadd.xlane.f32.xlu0 %v5174
  %v5176 = vpop.xlane.xlu0 %5175
  %v5177 = vmul.f32 %v5173, %v836
  %v5178 = vmul.f32 %v5176, %v836
  %v5179 = vsub.f32 %v5169, %v5177
  %v5180 = vsub.f32 %v5170, %v5178
  %v5181 = vmul.f32 %v5179, %v5179
  %v5182 = vmul.f32 %v5180, %v5180
  %v5183 = vsel %vm142, %v5181, 0.0
  %5184 = vadd.xlane.f32.xlu0 %v5183
  %v5185 = vpop.xlane.xlu0 %5184
  %v5186 = vsel %vm142, %v5182, 0.0
  %5187 = vadd.xlane.f32.xlu0 %v5186
  %v5188 = vpop.xlane.xlu0 %5187
  %v5189 = vmul.f32 %v5185, %v836
  %v5190 = vmul.f32 %v5188, %v836
  %v5191 = vadd.f32 %v5189, 1e-05
  %v5192 = vadd.f32 %v5190, 1e-05
  %v5193 = vrsqrt.pop %v5191
  %v5194 = vrsqrt.pop %v5192
  %v5195 = vmul.f32 %v5179, %v5193
  %v5196 = vmul.f32 %v5180, %v5194
  %v5197 = vld [vmem:[%s4 + $0x140] sm:$0x1]
  %v5198 = vlaneseq
  %v5199 = vshrl.u32 %v5198, 7
  %v5200 = vsub.s32 0, %v5199
  %v5201 = vrot.slane %v5197, %v5200
  %v5202 = vmul.f32 %v5195, %v5201
  %v5203 = vmul.f32 %v5196, %v5201
  %v5204 = vld [vmem:[%s4 + $0x148] sm:$0x1]
  %v5205 = vlaneseq
  %v5206 = vshrl.u32 %v5205, 7
  %v5207 = vsub.s32 0, %v5206
  %v5208 = vrot.slane %v5204, %v5207
  %v5209 = vadd.f32 %v5202, %v5208
  %v5210 = vadd.f32 %v5203, %v5208
  %v5211 = vld [vmem:[%s3 + $0x10] sm:$0xff]
  %v5212 = vld [vmem:[%s3 + $0x18] sm:$0xff]
  %v5213 = vld [vmem:[%s3 + $0x20] sm:$0xff]
  %v5214 = vld [vmem:[%s3 + $0x28] sm:$0xff]
  %v5215 = vld [vmem:[%s4 + $0x8] sm:$0x1]
  %v5216 = vlaneseq
  %v5217 = vshrl.u32 %v5216, 7
  %v5218 = vsub.s32 0, %v5217
  %v5219 = vrot.slane %v5215, %v5218
  %v5221 = vsel %vm142, %v5209, 0
  %v5224 = vsel %vm142, %v5210, 0
  %5226 = vmatprep.subr.mxu0 0.0
  %5227 = vmatpush1.msra.mxu0 %v5211
  %5228 = vmatprep.subr.mxu0 0.0
  %5229 = vmatpush1.msra.mxu0 %v5212
  %5230 = vmatprep.subr.mxu0 0.0
  %5231 = vmatpush1.msra.mxu0 %v5213
  %5232 = vmatprep.subr.mxu0 0.0
  %5233 = vmatpush1.msra.mxu0 %v5214
  %5234 = vmatprep.subr.mxu0 0.0
  %5235 = vmatpush1.msra.mxu0 0.0
  %5236 = vmatprep.subr.mxu0 0.0
  %5237 = vmatpush1.msra.mxu0 0.0
  %5238 = vmatprep.subr.mxu0 0.0
  %5239 = vmatpush1.msra.mxu0 0.0
  %5240 = vmatprep.subr.mxu0 0.0
  %5241 = vmatpush1.msra.mxu0 0.0
  %5242 = vmatprep.subr.mxu0 0.0
  %5243 = vmatpush1.msra.mxu0 0.0
  %5244 = vmatprep.subr.mxu0 0.0
  %5245 = vmatpush1.msra.mxu0 0.0
  %5246 = vmatprep.subr.mxu0 0.0
  %5247 = vmatpush1.msra.mxu0 0.0
  %5248 = vmatprep.subr.mxu0 0.0
  %5249 = vmatpush1.msra.mxu0 0.0
  %5250 = vmatprep.subr.mxu0 0.0
  %5251 = vmatpush1.msra.mxu0 0.0
  %5252 = vmatprep.subr.mxu0 0.0
  %5253 = vmatpush1.msra.mxu0 0.0
  %5254 = vmatprep.subr.mxu0 0.0
  %5255 = vmatpush1.msra.mxu0 0.0
  %5256 = vmatprep.subr.mxu0 0.0
  %5257 = vmatpush1.msra.mxu0 0.0
  %5258 = vmatprep.subr.mxu0 0.0
  %5259 = vmatpush1.msra.mxu0 0.0
  %5260 = vmatprep.subr.mxu0 0.0
  %5261 = vmatpush1.msra.mxu0 0.0
  %5262 = vmatprep.subr.mxu0 0.0
  %5263 = vmatpush1.msra.mxu0 0.0
  %5264 = vmatprep.subr.mxu0 0.0
  %5265 = vmatpush1.msra.mxu0 0.0
  %5266 = vmatprep.subr.mxu0 0.0
  %5267 = vmatpush1.msra.mxu0 0.0
  %5268 = vmatprep.subr.mxu0 0.0
  %5269 = vmatpush1.msra.mxu0 0.0
  %5270 = vmatprep.subr.mxu0 0.0
  %5271 = vmatpush1.msra.mxu0 0.0
  %5272 = vmatprep.subr.mxu0 0.0
  %5273 = vmatpush1.msra.mxu0 0.0
  %5274 = vmatprep.subr.mxu0 0.0
  %5275 = vmatpush1.msra.mxu0 0.0
  %5276 = vmatprep.subr.mxu0 0.0
  %5277 = vmatpush1.msra.mxu0 0.0
  %5278 = vmatprep.subr.mxu0 0.0
  %5279 = vmatpush1.msra.mxu0 0.0
  %5280 = vmatprep.subr.mxu0 0.0
  %5281 = vmatpush1.msra.mxu0 0.0
  %5282 = vmatprep.subr.mxu0 0.0
  %5283 = vmatpush1.msra.mxu0 0.0
  %5284 = vmatprep.subr.mxu0 0.0
  %5285 = vmatpush1.msra.mxu0 0.0
  %5286 = vmatprep.subr.mxu0 0.0
  %5287 = vmatpush1.msra.mxu0 0.0
  %5288 = vmatprep.subr.mxu0 0.0
  %5289 = vmatpush1.msra.mxu0 0.0
  %5290 = vmatprep.mubr.f32.mxu0 0.0
  %5291 = vmatmul.mubr.f32.gmra.mrb[0].mxu0 %v5221
  %v5292 = vpop.f32.mrb[0].mxu0
  %v5293 = vadd.f32 %v5219, %v5292
  %v5294 = vpop.f32.mrb[0].mxu0
  %5295 = vmatprep.mubr.f32.mxu0 0.0
  %5296 = vmatmul.mubr.f32.gmra.mrb[0].mxu0 %v5224
  %v5297 = vpop.f32.mrb[0].mxu0
  %v5298 = vadd.f32 %v5219, %v5297
  %v5299 = vpop.f32.mrb[0].mxu0
  %5300 = vdwg.mxu0
  %5301 = vst.msk [vmem:[%s5] sm:$0xff] %vm47, %v5293
  %5302 = vst.msk [vmem:[%s5 + $0x8] sm:$0xff] %vm47, %v5298
  // Predicated region
  $region22: #{transformer_autoencoder_forward.1} parent=0 // pred_check
    _
  $region23: #{transformer_autoencoder_forward.1} parent=0 // pred_check_branch
    %5304 = sbr.rel (0) target = $region25
  $region24: #{transformer_autoencoder_forward.1} parent=0 // pred_region
    _
  $region25: #{transformer_autoencoder_forward.1} parent=0 // pred_fallthru
    _
  // Predicated region
  $region26: #{transformer_autoencoder_forward.1} parent=0 // pred_check
    _
  $region27: #{transformer_autoencoder_forward.1} parent=0 // pred_check_branch
    %5306 = sbr.rel (0) target = $region29
  $region28: #{transformer_autoencoder_forward.1} parent=0 // pred_region
    _
  $region29: #{transformer_autoencoder_forward.1} parent=0 // pred_fallthru
    _

</llo_original>
